<compile_context>
chip_gen: v6e
topology: v6e:2x2x1
jax: 0.10.0
libtpu: 0.0.40
codegen_flags: <defaults>
</compile_context>

<pallas_src>
import functools
import math

import jax
import jax.numpy as jnp
from jax import lax
from jax.experimental import pallas as pl
from jax.experimental.pallas import tpu as pltpu

_MIB = 1024 * 1024
# Flipped to False at runtime if this JAX/Mosaic build rejects pl.Buffered(1)
# single-buffering of grid-invariant weight blocks.
_USE_BUFFERED_WEIGHTS = True


def _tpu_vmem_capacity_bytes():
    try:
        return int(pltpu.get_tpu_info().vmem_capacity_bytes)
    except Exception:
        return 128 * _MIB  # conservative default (v5e/v6e class)


def _vmem_limit_bytes():
    # ~54 MiB on v7x (64 MiB physical), ~110 MiB on v5e/v6e (128 MiB physical),
    # always leaving compiler-internal headroom.
    cap = _tpu_vmem_capacity_bytes()
    return min(int(cap * 0.85), 110 * _MIB)


def _pick_qtile(seq_len):
    # Largest multiple-of-8 tile that divides S; tq=256 only on 128 MiB parts.
    if _tpu_vmem_capacity_bytes() >= 128 * _MIB:
        candidates = (256, 128, 64, 32, 16, 8)
    else:
        candidates = (128, 64, 32, 16, 8)
    for t in candidates:
        if seq_len % t == 0:
            return t
    return seq_len  # odd/tiny S: single tile


def _layernorm(h, w, b, eps=1e-5):
    mu = jnp.mean(h, axis=-1, keepdims=True)
    var = jnp.mean((h - mu) ** 2, axis=-1, keepdims=True)
    return (h - mu) * lax.rsqrt(var + eps) * w + b


def gpt2_block_kernel(x_ref,
                      ln1_w_ref, ln1_b_ref,
                      wqkv_ref, bqkv_ref,
                      wproj_ref, bproj_ref,
                      ln2_w_ref, ln2_b_ref,
                      wfc_ref, bfc_ref,
                      wout_ref, bout_ref,
                      o_ref,
                      q_sc, k_sc, v_sc,
                      *, n_head):
    S = x_ref.shape[1]
    D = x_ref.shape[2]
    tq = o_ref.shape[1]
    dh = D // n_head
    scale = 1.0 / math.sqrt(dh)
    qi = pl.program_id(1)
    bf16 = jnp.bfloat16

    # ---- Once per batch element (qi == 0): LN1 + fused QKV projection
    #      (full-D contraction), cached head-split in VMEM scratch and reused
    #      by every query tile.
    @pl.when(qi == 0)
    def _():
        xf = x_ref[0]                                          # (S, D) f32
        h1 = _layernorm(xf, ln1_w_ref[0], ln1_b_ref[0])        # f32
        qkv = jnp.dot(h1.astype(bf16), wqkv_ref[...],
                      preferred_element_type=jnp.float32) + bqkv_ref[0]
        qkv = qkv.astype(bf16)                                 # (S, 3D)
        for h in range(n_head):
            q_sc[h] = qkv[:, h * dh:(h + 1) * dh]
            k_sc[h] = qkv[:, D + h * dh:D + (h + 1) * dh]
            v_sc[h] = qkv[:, 2 * D + h * dh:2 * D + (h + 1) * dh]

    row0 = pl.multiple_of(qi * tq, tq)
    q3 = q_sc[:, pl.ds(row0, tq), :]                           # (H, tq, dh) bf16

    def attend(col0, m, l, acc, masked):
        # One causal key tile: scores -> (masked) online softmax -> AV.
        k_blk = k_sc[:, pl.ds(col0, tq), :]                    # (H, tk, dh) bf16
        v_blk = v_sc[:, pl.ds(col0, tq), :]
        s = jnp.einsum('hqd,hkd->hqk', q3, k_blk,
                       preferred_element_type=jnp.float32) * scale   # (H,tq,tk) f32
        if masked:  # only the diagonal key tile needs the causal mask
            rows = row0 + lax.broadcasted_iota(jnp.int32, (tq, tq), 0)
            cols = col0 + lax.broadcasted_iota(jnp.int32, (tq, tq), 1)
            s = jnp.where((cols <= rows)[None, :, :], s, -1e30)
        m_new = jnp.maximum(m, jnp.max(s, axis=-1, keepdims=True))
        alpha = jnp.exp(m - m_new)
        p = jnp.exp(s - m_new)
        l_new = alpha * l + jnp.sum(p, axis=-1, keepdims=True)
        acc_new = alpha * acc + jnp.einsum('hqk,hkd->hqd', p.astype(bf16), v_blk,
                                           preferred_element_type=jnp.float32)
        return m_new, l_new, acc_new

    m0 = jnp.full((n_head, tq, 1), -jnp.inf, jnp.float32)
    l0 = jnp.zeros((n_head, tq, 1), jnp.float32)
    a0 = jnp.zeros((n_head, tq, dh), jnp.float32)

    def body(kj, carry):
        m, l, acc = carry
        col0 = pl.multiple_of(kj * tq, tq)
        return attend(col0, m, l, acc, masked=False)

    # Off-diagonal (fully unmasked) key tiles kj in [0, qi); fully-masked tiles
    # past the diagonal are never touched -> ~2x fewer attention FLOPs / exp.
    m_i, l_i, acc = lax.fori_loop(0, qi, body, (m0, l0, a0))
    # Diagonal key tile with the causal mask (always runs, so no row is ever
    # fully masked -> no 0/0).
    m_i, l_i, acc = attend(row0, m_i, l_i, acc, masked=True)

    acc = (acc * pl.reciprocal(l_i, approx=True)).astype(bf16)  # (H, tq, dh)

    # Output projection: concat heads lane-wise into a lane-dense (tq, D) tile
    # and do ONE full-D-contraction matmul.
    attn_cat = jnp.concatenate([acc[h] for h in range(n_head)], axis=-1)  # (tq,D) bf16
    attn_out = jnp.dot(attn_cat, wproj_ref[...],
                       preferred_element_type=jnp.float32) + bproj_ref[0]

    x_q = x_ref[0, pl.ds(row0, tq), :]                         # (tq, D) f32
    x2 = x_q + attn_out                                        # residual 1

    # ---- LN2 + MLP (GELU tanh approx, as in HF gelu_new) ----
    h2 = _layernorm(x2, ln2_w_ref[0], ln2_b_ref[0])
    ff = jnp.dot(h2.astype(bf16), wfc_ref[...],
                 preferred_element_type=jnp.float32) + bfc_ref[0]
    ff = jax.nn.gelu(ff, approximate=True)
    ff = jnp.dot(ff.astype(bf16), wout_ref[...],
                 preferred_element_type=jnp.float32) + bout_ref[0]

    o_ref[0] = (x2 + ff).astype(o_ref.dtype)                   # residual 2


def _invariant_spec(a, buffered):
    nd = a.ndim
    idx = lambda b, q, _nd=nd: (0,) * _nd
    if buffered:
        # Grid-invariant block: a single VMEM buffer is enough.
        return pl.BlockSpec(a.shape, idx, pipeline_mode=pl.Buffered(1))
    return pl.BlockSpec(a.shape, idx)


def _block_call(x, arrays, *, n_head, tq, buffered):
    B, S, D = x.shape
    dh = D // n_head
    n_q = S // tq

    cost = pl.CostEstimate(
        flops=2 * B * (12 * S * D * D + S * S * D),
        transcendentals=B * (n_head * S * S // 2 + 4 * S * D),
        bytes_accessed=2 * 4 * B * S * D + 24 * D * D)

    return pl.pallas_call(
        functools.partial(gpt2_block_kernel, n_head=n_head),
        out_shape=jax.ShapeDtypeStruct((B, S, D), jnp.float32),
        grid=(B, n_q),
        in_specs=[pl.BlockSpec((1, S, D), lambda b, q: (b, 0, 0))]  # x: full seq per batch
                 + [_invariant_spec(a, buffered) for a in arrays],
        out_specs=pl.BlockSpec((1, tq, D), lambda b, q: (b, q, 0)),
        scratch_shapes=[
            pltpu.VMEM((n_head, S, dh), jnp.bfloat16),   # Q (head-split cache)
            pltpu.VMEM((n_head, S, dh), jnp.bfloat16),   # K
            pltpu.VMEM((n_head, S, dh), jnp.bfloat16),   # V
        ],
        compiler_params=pltpu.CompilerParams(
            # batch axis parallel (megacore); query-tile axis arbitrary because
            # the qi==0 step fills the QKV scratch reused by later tiles.
            dimension_semantics=("parallel", "arbitrary"),
            vmem_limit_bytes=_vmem_limit_bytes()),
        cost_estimate=cost,
    )(x, *arrays)


def gpt2_block(x, params, *, n_head):
    """One HF-style block. Returns a tuple, like HF GPT2Block, so the sequence
    wrapper can take `[0]` exactly as HFBlockSequence does."""
    global _USE_BUFFERED_WEIGHTS
    B, S, D = x.shape
    tq = _pick_qtile(S)

    (ln1_w, ln1_b, wqkv, bqkv, wproj, bproj,
     ln2_w, ln2_b, wfc, bfc, wout, bout) = params
    bf16 = jnp.bfloat16
    arrays = (ln1_w, ln1_b,
              wqkv.astype(bf16), bqkv,
              wproj.astype(bf16), bproj,
              ln2_w, ln2_b,
              wfc.astype(bf16), bfc,
              wout.astype(bf16), bout)

    try:
        out = _block_call(x, arrays, n_head=n_head, tq=tq,
                          buffered=_USE_BUFFERED_WEIGHTS)
    except Exception:
        if not _USE_BUFFERED_WEIGHTS:
            raise
        # This build rejects single-buffered pipelining; fall back to the
        # default double-buffered weight blocks (previously validated config).
        _USE_BUFFERED_WEIGHTS = False
        out = _block_call(x, arrays, n_head=n_head, tq=tq, buffered=False)
    return (out,)  # mimic HF block tuple output


def hf_block_sequence(x, layer_params, *, n_head):
    # Exact analogue of HFBlockSequence.forward: x = layer(x)[0] per layer.
    for p in layer_params:
        x = gpt2_block(x, p, n_head=n_head)[0]
    return x


def init_block_params(key, d_model):
    ks = jax.random.split(key, 4)
    std = 0.02
    ln1_w = jnp.ones((1, d_model), jnp.float32)
    ln1_b = jnp.zeros((1, d_model), jnp.float32)
    wqkv = std * jax.random.normal(ks[0], (d_model, 3 * d_model), jnp.float32)
    bqkv = jnp.zeros((1, 3 * d_model), jnp.float32)
    wproj = std * jax.random.normal(ks[1], (d_model, d_model), jnp.float32)
    bproj = jnp.zeros((1, d_model), jnp.float32)
    ln2_w = jnp.ones((1, d_model), jnp.float32)
    ln2_b = jnp.zeros((1, d_model), jnp.float32)
    wfc = std * jax.random.normal(ks[2], (d_model, 4 * d_model), jnp.float32)
    bfc = jnp.zeros((1, 4 * d_model), jnp.float32)
    wout = std * jax.random.normal(ks[3], (4 * d_model, d_model), jnp.float32)
    bout = jnp.zeros((1, d_model), jnp.float32)
    return (ln1_w, ln1_b, wqkv, bqkv, wproj, bproj,
            ln2_w, ln2_b, wfc, bfc, wout, bout)


def _block_ref(x, params, *, n_head):
    """Pure-JAX f32 reference for one block (for correctness check)."""
    (ln1_w, ln1_b, wqkv, bqkv, wproj, bproj,
     ln2_w, ln2_b, wfc, bfc, wout, bout) = params
    B, S, D = x.shape
    dh = D // n_head

    def ln(h, w, b):
        mu = h.mean(-1, keepdims=True)
        var = ((h - mu) ** 2).mean(-1, keepdims=True)
        return (h - mu) * lax.rsqrt(var + 1e-5) * w[0] + b[0]

    h1 = ln(x, ln1_w, ln1_b)
    qkv = h1 @ wqkv + bqkv[0]
    q, k, v = qkv[..., :D], qkv[..., D:2 * D], qkv[..., 2 * D:]
    q = q.reshape(B, S, n_head, dh).transpose(0, 2, 1, 3)
    k = k.reshape(B, S, n_head, dh).transpose(0, 2, 1, 3)
    v = v.reshape(B, S, n_head, dh).transpose(0, 2, 1, 3)
    s = jnp.einsum('bhqd,bhkd->bhqk', q, k) / math.sqrt(dh)
    mask = jnp.tril(jnp.ones((S, S), bool))
    s = jnp.where(mask, s, -1e30)
    p = jax.nn.softmax(s, axis=-1)
    a = jnp.einsum('bhqk,bhkd->bhqd', p, v).transpose(0, 2, 1, 3).reshape(B, S, D)
    x2 = x + a @ wproj + bproj[0]
    h2 = ln(x2, ln2_w, ln2_b)
    ff = jax.nn.gelu(h2 @ wfc + bfc[0], approximate=True)
    return x2 + ff @ wout + bout[0]


if __name__ == "__main__":
    B, S, D, H, N_LAYERS = 2, 8, 32, 4, 2

    key = jax.random.PRNGKey(0)
    kx, kp = jax.random.split(key)
    x = jax.random.normal(kx, (B, S, D), jnp.float32)

    layer_keys = jax.random.split(kp, N_LAYERS)
    layer_params = [init_block_params(k, D) for k in layer_keys]

    out = hf_block_sequence(x, layer_params, n_head=H)
    jax.block_until_ready(out)
    assert out.shape == (B, S, D)

    # Correctness check vs. pure-JAX f32 reference (loose tol: bf16 matmuls +
    # approx-reciprocal softmax denominator).
    ref = x
    for p in layer_params:
        ref = _block_ref(ref, p, n_head=H)
    max_err = float(jnp.max(jnp.abs(out - ref)))
    assert max_err < 1e-1, f"max abs err {max_err}"

    print("KERNEL_OK")
</pallas_src>

<mosaic_0001>
module attributes {stable_mosaic.version = 11 : i64} {
  func.func @gpt2_block_kernel(%arg0: i32, %arg1: i32, %arg2: memref<1x8x32xf32, #tpu.memory_space<vmem>>, %arg3: memref<1x32xf32, #tpu.memory_space<vmem>>, %arg4: memref<1x32xf32, #tpu.memory_space<vmem>>, %arg5: memref<32x96xbf16, #tpu.memory_space<vmem>>, %arg6: memref<1x96xf32, #tpu.memory_space<vmem>>, %arg7: memref<32x32xbf16, #tpu.memory_space<vmem>>, %arg8: memref<1x32xf32, #tpu.memory_space<vmem>>, %arg9: memref<1x32xf32, #tpu.memory_space<vmem>>, %arg10: memref<1x32xf32, #tpu.memory_space<vmem>>, %arg11: memref<32x128xbf16, #tpu.memory_space<vmem>>, %arg12: memref<1x128xf32, #tpu.memory_space<vmem>>, %arg13: memref<128x32xbf16, #tpu.memory_space<vmem>>, %arg14: memref<1x32xf32, #tpu.memory_space<vmem>>, %arg15: memref<1x8x32xf32, #tpu.memory_space<vmem>>, %arg16: memref<4x8x8xbf16, #tpu.memory_space<vmem>>, %arg17: memref<4x8x8xbf16, #tpu.memory_space<vmem>>, %arg18: memref<4x8x8xbf16, #tpu.memory_space<vmem>>) attributes {dimension_semantics = [#tpu.dimension_semantics<parallel>, #tpu.dimension_semantics<arbitrary>], iteration_bounds = array<i64: 2, 1>, scalar_prefetch = 0 : i64, scratch_operands = 3 : i64, tpu.core_type = #tpu.core_type<tc>, window_params = [{transform_indices = @transform_0, window_bounds = array<i64: 1, 8, 32>}, {pipeline_mode = #tpu.pipeline_mode<synchronous>, transform_indices = @transform_1, window_bounds = array<i64: 1, 32>}, {pipeline_mode = #tpu.pipeline_mode<synchronous>, transform_indices = @transform_2, window_bounds = array<i64: 1, 32>}, {pipeline_mode = #tpu.pipeline_mode<synchronous>, transform_indices = @transform_3, window_bounds = array<i64: 32, 96>}, {pipeline_mode = #tpu.pipeline_mode<synchronous>, transform_indices = @transform_4, window_bounds = array<i64: 1, 96>}, {pipeline_mode = #tpu.pipeline_mode<synchronous>, transform_indices = @transform_5, window_bounds = array<i64: 32, 32>}, {pipeline_mode = #tpu.pipeline_mode<synchronous>, transform_indices = @transform_6, window_bounds = array<i64: 1, 32>}, {pipeline_mode = #tpu.pipeline_mode<synchronous>, transform_indices = @transform_7, window_bounds = array<i64: 1, 32>}, {pipeline_mode = #tpu.pipeline_mode<synchronous>, transform_indices = @transform_8, window_bounds = array<i64: 1, 32>}, {pipeline_mode = #tpu.pipeline_mode<synchronous>, transform_indices = @transform_9, window_bounds = array<i64: 32, 128>}, {pipeline_mode = #tpu.pipeline_mode<synchronous>, transform_indices = @transform_10, window_bounds = array<i64: 1, 128>}, {pipeline_mode = #tpu.pipeline_mode<synchronous>, transform_indices = @transform_11, window_bounds = array<i64: 128, 32>}, {pipeline_mode = #tpu.pipeline_mode<synchronous>, transform_indices = @transform_12, window_bounds = array<i64: 1, 32>}, {transform_indices = @transform_13, window_bounds = array<i64: 1, 8, 32>}]} {
    %c0_i32 = arith.constant 0 : i32
    %0 = arith.cmpi eq, %arg1, %c0_i32 : i32
    %1 = arith.extui %0 : i1 to i32
    %c0_i32_0 = arith.constant 0 : i32
    %2 = arith.cmpi ne, %1, %c0_i32_0 : i32
    scf.if %2 {
      %c0_48 = arith.constant 0 : index
      %c0_49 = arith.constant 0 : index
      %c0_50 = arith.constant 0 : index
      %134 = vector.load %arg2[%c0_48, %c0_49, %c0_50] : memref<1x8x32xf32, #tpu.memory_space<vmem>>, vector<1x8x32xf32>
      %135 = vector.shape_cast %134 : vector<1x8x32xf32> to vector<8x32xf32>
      %c0_51 = arith.constant 0 : index
      %c0_52 = arith.constant 0 : index
      %136 = vector.load %arg3[%c0_51, %c0_52] : memref<1x32xf32, #tpu.memory_space<vmem>>, vector<1x32xf32>
      %137 = vector.shape_cast %136 : vector<1x32xf32> to vector<32xf32>
      %c0_53 = arith.constant 0 : index
      %c0_54 = arith.constant 0 : index
      %138 = vector.load %arg4[%c0_53, %c0_54] : memref<1x32xf32, #tpu.memory_space<vmem>>, vector<1x32xf32>
      %139 = vector.shape_cast %138 : vector<1x32xf32> to vector<32xf32>
      %cst_55 = arith.constant dense<0.000000e+00> : vector<8xf32>
      %140 = vector.multi_reduction <add>, %135, %cst_55 [1] : vector<8x32xf32> to vector<8xf32>
      %141 = vector.shape_cast %140 : vector<8xf32> to vector<8x1xf32>
      %cst_56 = arith.constant 3.200000e+01 : f32
      %142 = vector.broadcast %cst_56 : f32 to vector<8x1xf32>
      %143 = arith.divf %141, %142 : vector<8x1xf32>
      %144 = vector.broadcast %143 : vector<8x1xf32> to vector<8x32xf32>
      %145 = arith.subf %135, %144 : vector<8x32xf32>
      %146 = arith.mulf %145, %145 : vector<8x32xf32>
      %cst_57 = arith.constant dense<0.000000e+00> : vector<8xf32>
      %147 = vector.multi_reduction <add>, %146, %cst_57 [1] : vector<8x32xf32> to vector<8xf32>
      %148 = vector.shape_cast %147 : vector<8xf32> to vector<8x1xf32>
      %cst_58 = arith.constant 3.200000e+01 : f32
      %149 = vector.broadcast %cst_58 : f32 to vector<8x1xf32>
      %150 = arith.divf %148, %149 : vector<8x1xf32>
      %151 = vector.broadcast %143 : vector<8x1xf32> to vector<8x32xf32>
      %152 = arith.subf %135, %151 : vector<8x32xf32>
      %cst_59 = arith.constant 9.99999974E-6 : f32
      %153 = vector.broadcast %cst_59 : f32 to vector<8x1xf32>
      %154 = arith.addf %150, %153 : vector<8x1xf32>
      %155 = math.rsqrt %154 : vector<8x1xf32>
      %156 = vector.broadcast %155 : vector<8x1xf32> to vector<8x32xf32>
      %157 = arith.mulf %152, %156 : vector<8x32xf32>
      %158 = vector.shape_cast %137 : vector<32xf32> to vector<1x32xf32>
      %159 = vector.broadcast %158 : vector<1x32xf32> to vector<8x32xf32>
      %160 = arith.mulf %157, %159 : vector<8x32xf32>
      %161 = vector.shape_cast %139 : vector<32xf32> to vector<1x32xf32>
      %162 = vector.broadcast %161 : vector<1x32xf32> to vector<8x32xf32>
      %163 = arith.addf %160, %162 : vector<8x32xf32>
      %164 = arith.truncf %163 : vector<8x32xf32> to vector<8x32xbf16>
      %c0_60 = arith.constant 0 : index
      %c0_61 = arith.constant 0 : index
      %165 = vector.load %arg5[%c0_60, %c0_61] : memref<32x96xbf16, #tpu.memory_space<vmem>>, vector<32x96xbf16>
      %cst_62 = arith.constant dense<0.000000e+00> : vector<8x96xf32>
      %166 = tpu.matmul %164, %165, %cst_62 {dimension_numbers = #tpu.dot_dimension_numbers<[1], [0], [0], [1], [0, 0, 1, 1], [], []>} : vector<8x32xbf16>, vector<32x96xbf16>, vector<8x96xf32> -> vector<8x96xf32>
      %c0_63 = arith.constant 0 : index
      %c0_64 = arith.constant 0 : index
      %167 = vector.load %arg6[%c0_63, %c0_64] : memref<1x96xf32, #tpu.memory_space<vmem>>, vector<1x96xf32>
      %168 = vector.shape_cast %167 : vector<1x96xf32> to vector<96xf32>
      %169 = vector.shape_cast %168 : vector<96xf32> to vector<1x96xf32>
      %170 = vector.broadcast %169 : vector<1x96xf32> to vector<8x96xf32>
      %171 = arith.addf %166, %170 : vector<8x96xf32>
      %172 = arith.truncf %171 : vector<8x96xf32> to vector<8x96xbf16>
      %173 = vector.extract_strided_slice %172 {offsets = [0, 0], sizes = [8, 8], strides = [1, 1]} : vector<8x96xbf16> to vector<8x8xbf16>
      %c0_65 = arith.constant 0 : index
      %c0_66 = arith.constant 0 : index
      %c0_67 = arith.constant 0 : index
      %174 = vector.load %arg16[%c0_65, %c0_66, %c0_67] : memref<4x8x8xbf16, #tpu.memory_space<vmem>>, vector<1x8x8xbf16>
      %175 = vector.shape_cast %174 : vector<1x8x8xbf16> to vector<8x8xbf16>
      %176 = vector.shape_cast %173 : vector<8x8xbf16> to vector<1x8x8xbf16>
      tpu.vector_store %arg16[%c0_65, %c0_66, %c0_67], %176 {strides = array<i32>} : memref<4x8x8xbf16, #tpu.memory_space<vmem>>, vector<1x8x8xbf16>,
      %177 = vector.extract_strided_slice %172 {offsets = [0, 32], sizes = [8, 8], strides = [1, 1]} : vector<8x96xbf16> to vector<8x8xbf16>
      %c0_68 = arith.constant 0 : index
      %c0_69 = arith.constant 0 : index
      %c0_70 = arith.constant 0 : index
      %178 = vector.load %arg17[%c0_68, %c0_69, %c0_70] : memref<4x8x8xbf16, #tpu.memory_space<vmem>>, vector<1x8x8xbf16>
      %179 = vector.shape_cast %178 : vector<1x8x8xbf16> to vector<8x8xbf16>
      %180 = vector.shape_cast %177 : vector<8x8xbf16> to vector<1x8x8xbf16>
      tpu.vector_store %arg17[%c0_68, %c0_69, %c0_70], %180 {strides = array<i32>} : memref<4x8x8xbf16, #tpu.memory_space<vmem>>, vector<1x8x8xbf16>,
      %181 = vector.extract_strided_slice %172 {offsets = [0, 64], sizes = [8, 8], strides = [1, 1]} : vector<8x96xbf16> to vector<8x8xbf16>
      %c0_71 = arith.constant 0 : index
      %c0_72 = arith.constant 0 : index
      %c0_73 = arith.constant 0 : index
      %182 = vector.load %arg18[%c0_71, %c0_72, %c0_73] : memref<4x8x8xbf16, #tpu.memory_space<vmem>>, vector<1x8x8xbf16>
      %183 = vector.shape_cast %182 : vector<1x8x8xbf16> to vector<8x8xbf16>
      %184 = vector.shape_cast %181 : vector<8x8xbf16> to vector<1x8x8xbf16>
      tpu.vector_store %arg18[%c0_71, %c0_72, %c0_73], %184 {strides = array<i32>} : memref<4x8x8xbf16, #tpu.memory_space<vmem>>, vector<1x8x8xbf16>,
      %185 = vector.extract_strided_slice %172 {offsets = [0, 8], sizes = [8, 8], strides = [1, 1]} : vector<8x96xbf16> to vector<8x8xbf16>
      %c1 = arith.constant 1 : index
      %c0_74 = arith.constant 0 : index
      %c0_75 = arith.constant 0 : index
      %186 = vector.load %arg16[%c1, %c0_74, %c0_75] : memref<4x8x8xbf16, #tpu.memory_space<vmem>>, vector<1x8x8xbf16>
      %187 = vector.shape_cast %186 : vector<1x8x8xbf16> to vector<8x8xbf16>
      %188 = vector.shape_cast %185 : vector<8x8xbf16> to vector<1x8x8xbf16>
      tpu.vector_store %arg16[%c1, %c0_74, %c0_75], %188 {strides = array<i32>} : memref<4x8x8xbf16, #tpu.memory_space<vmem>>, vector<1x8x8xbf16>,
      %189 = vector.extract_strided_slice %172 {offsets = [0, 40], sizes = [8, 8], strides = [1, 1]} : vector<8x96xbf16> to vector<8x8xbf16>
      %c1_76 = arith.constant 1 : index
      %c0_77 = arith.constant 0 : index
      %c0_78 = arith.constant 0 : index
      %190 = vector.load %arg17[%c1_76, %c0_77, %c0_78] : memref<4x8x8xbf16, #tpu.memory_space<vmem>>, vector<1x8x8xbf16>
      %191 = vector.shape_cast %190 : vector<1x8x8xbf16> to vector<8x8xbf16>
      %192 = vector.shape_cast %189 : vector<8x8xbf16> to vector<1x8x8xbf16>
      tpu.vector_store %arg17[%c1_76, %c0_77, %c0_78], %192 {strides = array<i32>} : memref<4x8x8xbf16, #tpu.memory_space<vmem>>, vector<1x8x8xbf16>,
      %193 = vector.extract_strided_slice %172 {offsets = [0, 72], sizes = [8, 8], strides = [1, 1]} : vector<8x96xbf16> to vector<8x8xbf16>
      %c1_79 = arith.constant 1 : index
      %c0_80 = arith.constant 0 : index
      %c0_81 = arith.constant 0 : index
      %194 = vector.load %arg18[%c1_79, %c0_80, %c0_81] : memref<4x8x8xbf16, #tpu.memory_space<vmem>>, vector<1x8x8xbf16>
      %195 = vector.shape_cast %194 : vector<1x8x8xbf16> to vector<8x8xbf16>
      %196 = vector.shape_cast %193 : vector<8x8xbf16> to vector<1x8x8xbf16>
      tpu.vector_store %arg18[%c1_79, %c0_80, %c0_81], %196 {strides = array<i32>} : memref<4x8x8xbf16, #tpu.memory_space<vmem>>, vector<1x8x8xbf16>,
      %197 = vector.extract_strided_slice %172 {offsets = [0, 16], sizes = [8, 8], strides = [1, 1]} : vector<8x96xbf16> to vector<8x8xbf16>
      %c2 = arith.constant 2 : index
      %c0_82 = arith.constant 0 : index
      %c0_83 = arith.constant 0 : index
      %198 = vector.load %arg16[%c2, %c0_82, %c0_83] : memref<4x8x8xbf16, #tpu.memory_space<vmem>>, vector<1x8x8xbf16>
      %199 = vector.shape_cast %198 : vector<1x8x8xbf16> to vector<8x8xbf16>
      %200 = vector.shape_cast %197 : vector<8x8xbf16> to vector<1x8x8xbf16>
      tpu.vector_store %arg16[%c2, %c0_82, %c0_83], %200 {strides = array<i32>} : memref<4x8x8xbf16, #tpu.memory_space<vmem>>, vector<1x8x8xbf16>,
      %201 = vector.extract_strided_slice %172 {offsets = [0, 48], sizes = [8, 8], strides = [1, 1]} : vector<8x96xbf16> to vector<8x8xbf16>
      %c2_84 = arith.constant 2 : index
      %c0_85 = arith.constant 0 : index
      %c0_86 = arith.constant 0 : index
      %202 = vector.load %arg17[%c2_84, %c0_85, %c0_86] : memref<4x8x8xbf16, #tpu.memory_space<vmem>>, vector<1x8x8xbf16>
      %203 = vector.shape_cast %202 : vector<1x8x8xbf16> to vector<8x8xbf16>
      %204 = vector.shape_cast %201 : vector<8x8xbf16> to vector<1x8x8xbf16>
      tpu.vector_store %arg17[%c2_84, %c0_85, %c0_86], %204 {strides = array<i32>} : memref<4x8x8xbf16, #tpu.memory_space<vmem>>, vector<1x8x8xbf16>,
      %205 = vector.extract_strided_slice %172 {offsets = [0, 80], sizes = [8, 8], strides = [1, 1]} : vector<8x96xbf16> to vector<8x8xbf16>
      %c2_87 = arith.constant 2 : index
      %c0_88 = arith.constant 0 : index
      %c0_89 = arith.constant 0 : index
      %206 = vector.load %arg18[%c2_87, %c0_88, %c0_89] : memref<4x8x8xbf16, #tpu.memory_space<vmem>>, vector<1x8x8xbf16>
      %207 = vector.shape_cast %206 : vector<1x8x8xbf16> to vector<8x8xbf16>
      %208 = vector.shape_cast %205 : vector<8x8xbf16> to vector<1x8x8xbf16>
      tpu.vector_store %arg18[%c2_87, %c0_88, %c0_89], %208 {strides = array<i32>} : memref<4x8x8xbf16, #tpu.memory_space<vmem>>, vector<1x8x8xbf16>,
      %209 = vector.extract_strided_slice %172 {offsets = [0, 24], sizes = [8, 8], strides = [1, 1]} : vector<8x96xbf16> to vector<8x8xbf16>
      %c3 = arith.constant 3 : index
      %c0_90 = arith.constant 0 : index
      %c0_91 = arith.constant 0 : index
      %210 = vector.load %arg16[%c3, %c0_90, %c0_91] : memref<4x8x8xbf16, #tpu.memory_space<vmem>>, vector<1x8x8xbf16>
      %211 = vector.shape_cast %210 : vector<1x8x8xbf16> to vector<8x8xbf16>
      %212 = vector.shape_cast %209 : vector<8x8xbf16> to vector<1x8x8xbf16>
      tpu.vector_store %arg16[%c3, %c0_90, %c0_91], %212 {strides = array<i32>} : memref<4x8x8xbf16, #tpu.memory_space<vmem>>, vector<1x8x8xbf16>,
      %213 = vector.extract_strided_slice %172 {offsets = [0, 56], sizes = [8, 8], strides = [1, 1]} : vector<8x96xbf16> to vector<8x8xbf16>
      %c3_92 = arith.constant 3 : index
      %c0_93 = arith.constant 0 : index
      %c0_94 = arith.constant 0 : index
      %214 = vector.load %arg17[%c3_92, %c0_93, %c0_94] : memref<4x8x8xbf16, #tpu.memory_space<vmem>>, vector<1x8x8xbf16>
      %215 = vector.shape_cast %214 : vector<1x8x8xbf16> to vector<8x8xbf16>
      %216 = vector.shape_cast %213 : vector<8x8xbf16> to vector<1x8x8xbf16>
      tpu.vector_store %arg17[%c3_92, %c0_93, %c0_94], %216 {strides = array<i32>} : memref<4x8x8xbf16, #tpu.memory_space<vmem>>, vector<1x8x8xbf16>,
      %217 = vector.extract_strided_slice %172 {offsets = [0, 88], sizes = [8, 8], strides = [1, 1]} : vector<8x96xbf16> to vector<8x8xbf16>
      %c3_95 = arith.constant 3 : index
      %c0_96 = arith.constant 0 : index
      %c0_97 = arith.constant 0 : index
      %218 = vector.load %arg18[%c3_95, %c0_96, %c0_97] : memref<4x8x8xbf16, #tpu.memory_space<vmem>>, vector<1x8x8xbf16>
      %219 = vector.shape_cast %218 : vector<1x8x8xbf16> to vector<8x8xbf16>
      %220 = vector.shape_cast %217 : vector<8x8xbf16> to vector<1x8x8xbf16>
      tpu.vector_store %arg18[%c3_95, %c0_96, %c0_97], %220 {strides = array<i32>} : memref<4x8x8xbf16, #tpu.memory_space<vmem>>, vector<1x8x8xbf16>,
    } else {
    }
    %c8_i32 = arith.constant 8 : i32
    %3 = arith.muli %arg1, %c8_i32 : i32
    %4 = tpu.assume_multiple %3, 8 : i32
    %c0 = arith.constant 0 : index
    %5 = arith.index_cast %4 : i32 to index
    %c0_1 = arith.constant 0 : index
    %6 = vector.load %arg16[%c0, %5, %c0_1] : memref<4x8x8xbf16, #tpu.memory_space<vmem>>, vector<4x8x8xbf16>
    %cst = arith.constant 0xFF800000 : f32
    %7 = vector.broadcast %cst : f32 to vector<4x8x1xf32>
    %cst_2 = arith.constant 0.000000e+00 : f32
    %8 = vector.broadcast %cst_2 : f32 to vector<4x8x1xf32>
    %cst_3 = arith.constant 0.000000e+00 : f32
    %9 = vector.broadcast %cst_3 : f32 to vector<4x8x8xf32>
    %c0_i32_4 = arith.constant 0 : i32
    %10 = arith.subi %arg1, %c0_i32_4 : i32
    %11 = arith.addi %c0_i32_4, %10 : i32
    %c1_i32 = arith.constant 1 : i32
    %12:3 = scf.for %arg19 = %c0_i32_4 to %11 step %c1_i32 iter_args(%arg20 = %7, %arg21 = %8, %arg22 = %9) -> (vector<4x8x1xf32>, vector<4x8x1xf32>, vector<4x8x8xf32>)  : i32 {
      %c8_i32_48 = arith.constant 8 : i32
      %134 = arith.muli %arg19, %c8_i32_48 : i32
      %135 = tpu.assume_multiple %134, 8 : i32
      %c0_49 = arith.constant 0 : index
      %136 = arith.index_cast %135 : i32 to index
      %c0_50 = arith.constant 0 : index
      %137 = vector.load %arg17[%c0_49, %136, %c0_50] : memref<4x8x8xbf16, #tpu.memory_space<vmem>>, vector<4x8x8xbf16>
      %c0_51 = arith.constant 0 : index
      %138 = arith.index_cast %135 : i32 to index
      %c0_52 = arith.constant 0 : index
      %139 = vector.load %arg18[%c0_51, %138, %c0_52] : memref<4x8x8xbf16, #tpu.memory_space<vmem>>, vector<4x8x8xbf16>
      "tpu.trace_start"() <{level = 10 : i32, message = "hqd,hkd->hqk"}> : () -> ()
      %cst_53 = arith.constant dense<0.000000e+00> : vector<4x8x8xf32>
      %140 = tpu.matmul %6, %137, %cst_53 {dimension_numbers = #tpu.dot_dimension_numbers<[2], [2], [1], [1], [0, 0, 0, 1, 1, 1], [0], [0]>} : vector<4x8x8xbf16>, vector<4x8x8xbf16>, vector<4x8x8xf32> -> vector<4x8x8xf32>
      "tpu.trace_stop"() : () -> ()
      %cst_54 = arith.constant 0.353553385 : f32
      %141 = vector.broadcast %cst_54 : f32 to vector<4x8x8xf32>
      %142 = arith.mulf %140, %141 : vector<4x8x8xf32>
      %cst_55 = arith.constant dense<0xFF800000> : vector<4x8xf32>
      %143 = vector.multi_reduction <maximumf>, %142, %cst_55 [2] : vector<4x8x8xf32> to vector<4x8xf32>
      %144 = vector.shape_cast %143 : vector<4x8xf32> to vector<4x8x1xf32>
      %145 = arith.maximumf %arg20, %144 : vector<4x8x1xf32>
      %146 = arith.subf %arg20, %145 : vector<4x8x1xf32>
      %147 = math.exp %146 : vector<4x8x1xf32>
      %148 = vector.broadcast %145 : vector<4x8x1xf32> to vector<4x8x8xf32>
      %149 = arith.subf %142, %148 : vector<4x8x8xf32>
      %150 = math.exp %149 : vector<4x8x8xf32>
      %151 = arith.mulf %147, %arg21 : vector<4x8x1xf32>
      %cst_56 = arith.constant dense<0.000000e+00> : vector<4x8xf32>
      %152 = vector.multi_reduction <add>, %150, %cst_56 [2] : vector<4x8x8xf32> to vector<4x8xf32>
      %153 = vector.shape_cast %152 : vector<4x8xf32> to vector<4x8x1xf32>
      %154 = arith.addf %151, %153 : vector<4x8x1xf32>
      %155 = vector.broadcast %147 : vector<4x8x1xf32> to vector<4x8x8xf32>
      %156 = arith.mulf %155, %arg22 : vector<4x8x8xf32>
      %157 = arith.truncf %150 : vector<4x8x8xf32> to vector<4x8x8xbf16>
      "tpu.trace_start"() <{level = 10 : i32, message = "hqk,hkd->hqd"}> : () -> ()
      %cst_57 = arith.constant dense<0.000000e+00> : vector<4x8x8xf32>
      %158 = tpu.matmul %157, %139, %cst_57 {dimension_numbers = #tpu.dot_dimension_numbers<[2], [1], [1], [2], [0, 0, 0, 1, 1, 2], [0], [0]>} : vector<4x8x8xbf16>, vector<4x8x8xbf16>, vector<4x8x8xf32> -> vector<4x8x8xf32>
      "tpu.trace_stop"() : () -> ()
      %159 = arith.addf %156, %158 : vector<4x8x8xf32>
      scf.yield %145, %154, %159 : vector<4x8x1xf32>, vector<4x8x1xf32>, vector<4x8x8xf32>
    }
    %c0_5 = arith.constant 0 : index
    %13 = arith.index_cast %4 : i32 to index
    %c0_6 = arith.constant 0 : index
    %14 = vector.load %arg17[%c0_5, %13, %c0_6] : memref<4x8x8xbf16, #tpu.memory_space<vmem>>, vector<4x8x8xbf16>
    %c0_7 = arith.constant 0 : index
    %15 = arith.index_cast %4 : i32 to index
    %c0_8 = arith.constant 0 : index
    %16 = vector.load %arg18[%c0_7, %15, %c0_8] : memref<4x8x8xbf16, #tpu.memory_space<vmem>>, vector<4x8x8xbf16>
    "tpu.trace_start"() <{level = 10 : i32, message = "hqd,hkd->hqk"}> : () -> ()
    %cst_9 = arith.constant dense<0.000000e+00> : vector<4x8x8xf32>
    %17 = tpu.matmul %6, %14, %cst_9 {dimension_numbers = #tpu.dot_dimension_numbers<[2], [2], [1], [1], [0, 0, 0, 1, 1, 1], [0], [0]>} : vector<4x8x8xbf16>, vector<4x8x8xbf16>, vector<4x8x8xf32> -> vector<4x8x8xf32>
    "tpu.trace_stop"() : () -> ()
    %cst_10 = arith.constant 0.353553385 : f32
    %18 = vector.broadcast %cst_10 : f32 to vector<4x8x8xf32>
    %19 = arith.mulf %17, %18 : vector<4x8x8xf32>
    %20 = tpu.iota {dimensions = array<i32: 0>} : vector<8x8xi32>
    %21 = vector.broadcast %4 : i32 to vector<8x8xi32>
    %22 = arith.addi %21, %20 : vector<8x8xi32>
    %23 = tpu.iota {dimensions = array<i32: 1>} : vector<8x8xi32>
    %24 = vector.broadcast %4 : i32 to vector<8x8xi32>
    %25 = arith.addi %24, %23 : vector<8x8xi32>
    %26 = arith.cmpi sle, %25, %22 : vector<8x8xi32>
    %27 = vector.shape_cast %26 : vector<8x8xi1> to vector<1x8x8xi1>
    %cst_11 = arith.constant -1.000000e+30 : f32
    %28 = vector.shape_cast %27 : vector<1x8x8xi1> to vector<1x8x8xi1>
    %29 = vector.broadcast %28 : vector<1x8x8xi1> to vector<4x8x8xi1>
    %30 = vector.broadcast %cst_11 : f32 to vector<4x8x8xf32>
    %31 = arith.select %29, %19, %30 : vector<4x8x8xi1>, vector<4x8x8xf32>
    %cst_12 = arith.constant dense<0xFF800000> : vector<4x8xf32>
    %32 = vector.multi_reduction <maximumf>, %31, %cst_12 [2] : vector<4x8x8xf32> to vector<4x8xf32>
    %33 = vector.shape_cast %32 : vector<4x8xf32> to vector<4x8x1xf32>
    %34 = arith.maximumf %12#0, %33 : vector<4x8x1xf32>
    %35 = arith.subf %12#0, %34 : vector<4x8x1xf32>
    %36 = math.exp %35 : vector<4x8x1xf32>
    %37 = vector.broadcast %34 : vector<4x8x1xf32> to vector<4x8x8xf32>
    %38 = arith.subf %31, %37 : vector<4x8x8xf32>
    %39 = math.exp %38 : vector<4x8x8xf32>
    %40 = arith.mulf %36, %12#1 : vector<4x8x1xf32>
    %cst_13 = arith.constant dense<0.000000e+00> : vector<4x8xf32>
    %41 = vector.multi_reduction <add>, %39, %cst_13 [2] : vector<4x8x8xf32> to vector<4x8xf32>
    %42 = vector.shape_cast %41 : vector<4x8xf32> to vector<4x8x1xf32>
    %43 = arith.addf %40, %42 : vector<4x8x1xf32>
    %44 = vector.broadcast %36 : vector<4x8x1xf32> to vector<4x8x8xf32>
    %45 = arith.mulf %44, %12#2 : vector<4x8x8xf32>
    %46 = arith.truncf %39 : vector<4x8x8xf32> to vector<4x8x8xbf16>
    "tpu.trace_start"() <{level = 10 : i32, message = "hqk,hkd->hqd"}> : () -> ()
    %cst_14 = arith.constant dense<0.000000e+00> : vector<4x8x8xf32>
    %47 = tpu.matmul %46, %16, %cst_14 {dimension_numbers = #tpu.dot_dimension_numbers<[2], [1], [1], [2], [0, 0, 0, 1, 1, 2], [0], [0]>} : vector<4x8x8xbf16>, vector<4x8x8xbf16>, vector<4x8x8xf32> -> vector<4x8x8xf32>
    "tpu.trace_stop"() : () -> ()
    %48 = arith.addf %45, %47 : vector<4x8x8xf32>
    %49 = tpu.reciprocal %43 {approx = true} : vector<4x8x1xf32> -> vector<4x8x1xf32>
    %50 = vector.broadcast %49 : vector<4x8x1xf32> to vector<4x8x8xf32>
    %51 = arith.mulf %48, %50 : vector<4x8x8xf32>
    %52 = arith.truncf %51 : vector<4x8x8xf32> to vector<4x8x8xbf16>
    %53 = vector.extract_strided_slice %52 {offsets = [0, 0, 0], sizes = [1, 8, 8], strides = [1, 1, 1]} : vector<4x8x8xbf16> to vector<1x8x8xbf16>
    %54 = vector.shape_cast %53 : vector<1x8x8xbf16> to vector<8x8xbf16>
    %55 = vector.extract_strided_slice %52 {offsets = [1, 0, 0], sizes = [1, 8, 8], strides = [1, 1, 1]} : vector<4x8x8xbf16> to vector<1x8x8xbf16>
    %56 = vector.shape_cast %55 : vector<1x8x8xbf16> to vector<8x8xbf16>
    %57 = vector.extract_strided_slice %52 {offsets = [2, 0, 0], sizes = [1, 8, 8], strides = [1, 1, 1]} : vector<4x8x8xbf16> to vector<1x8x8xbf16>
    %58 = vector.shape_cast %57 : vector<1x8x8xbf16> to vector<8x8xbf16>
    %59 = vector.extract_strided_slice %52 {offsets = [3, 0, 0], sizes = [1, 8, 8], strides = [1, 1, 1]} : vector<4x8x8xbf16> to vector<1x8x8xbf16>
    %60 = vector.shape_cast %59 : vector<1x8x8xbf16> to vector<8x8xbf16>
    %61 = tpu.concatenate %54, %56, %58, %60 in 1 : vector<8x8xbf16>, vector<8x8xbf16>, vector<8x8xbf16>, vector<8x8xbf16> -> vector<8x32xbf16>
    %c0_15 = arith.constant 0 : index
    %c0_16 = arith.constant 0 : index
    %62 = vector.load %arg7[%c0_15, %c0_16] : memref<32x32xbf16, #tpu.memory_space<vmem>>, vector<32x32xbf16>
    %cst_17 = arith.constant dense<0.000000e+00> : vector<8x32xf32>
    %63 = tpu.matmul %61, %62, %cst_17 {dimension_numbers = #tpu.dot_dimension_numbers<[1], [0], [0], [1], [0, 0, 1, 1], [], []>} : vector<8x32xbf16>, vector<32x32xbf16>, vector<8x32xf32> -> vector<8x32xf32>
    %c0_18 = arith.constant 0 : index
    %c0_19 = arith.constant 0 : index
    %64 = vector.load %arg8[%c0_18, %c0_19] : memref<1x32xf32, #tpu.memory_space<vmem>>, vector<1x32xf32>
    %65 = vector.shape_cast %64 : vector<1x32xf32> to vector<32xf32>
    %66 = vector.shape_cast %65 : vector<32xf32> to vector<1x32xf32>
    %67 = vector.broadcast %66 : vector<1x32xf32> to vector<8x32xf32>
    %68 = arith.addf %63, %67 : vector<8x32xf32>
    %c0_20 = arith.constant 0 : index
    %69 = arith.index_cast %4 : i32 to index
    %c0_21 = arith.constant 0 : index
    %70 = vector.load %arg2[%c0_20, %69, %c0_21] : memref<1x8x32xf32, #tpu.memory_space<vmem>>, vector<1x8x32xf32>
    %71 = vector.shape_cast %70 : vector<1x8x32xf32> to vector<8x32xf32>
    %72 = arith.addf %71, %68 : vector<8x32xf32>
    %c0_22 = arith.constant 0 : index
    %c0_23 = arith.constant 0 : index
    %73 = vector.load %arg9[%c0_22, %c0_23] : memref<1x32xf32, #tpu.memory_space<vmem>>, vector<1x32xf32>
    %74 = vector.shape_cast %73 : vector<1x32xf32> to vector<32xf32>
    %c0_24 = arith.constant 0 : index
    %c0_25 = arith.constant 0 : index
    %75 = vector.load %arg10[%c0_24, %c0_25] : memref<1x32xf32, #tpu.memory_space<vmem>>, vector<1x32xf32>
    %76 = vector.shape_cast %75 : vector<1x32xf32> to vector<32xf32>
    %cst_26 = arith.constant dense<0.000000e+00> : vector<8xf32>
    %77 = vector.multi_reduction <add>, %72, %cst_26 [1] : vector<8x32xf32> to vector<8xf32>
    %78 = vector.shape_cast %77 : vector<8xf32> to vector<8x1xf32>
    %cst_27 = arith.constant 3.200000e+01 : f32
    %79 = vector.broadcast %cst_27 : f32 to vector<8x1xf32>
    %80 = arith.divf %78, %79 : vector<8x1xf32>
    %81 = vector.broadcast %80 : vector<8x1xf32> to vector<8x32xf32>
    %82 = arith.subf %72, %81 : vector<8x32xf32>
    %83 = arith.mulf %82, %82 : vector<8x32xf32>
    %cst_28 = arith.constant dense<0.000000e+00> : vector<8xf32>
    %84 = vector.multi_reduction <add>, %83, %cst_28 [1] : vector<8x32xf32> to vector<8xf32>
    %85 = vector.shape_cast %84 : vector<8xf32> to vector<8x1xf32>
    %cst_29 = arith.constant 3.200000e+01 : f32
    %86 = vector.broadcast %cst_29 : f32 to vector<8x1xf32>
    %87 = arith.divf %85, %86 : vector<8x1xf32>
    %88 = vector.broadcast %80 : vector<8x1xf32> to vector<8x32xf32>
    %89 = arith.subf %72, %88 : vector<8x32xf32>
    %cst_30 = arith.constant 9.99999974E-6 : f32
    %90 = vector.broadcast %cst_30 : f32 to vector<8x1xf32>
    %91 = arith.addf %87, %90 : vector<8x1xf32>
    %92 = math.rsqrt %91 : vector<8x1xf32>
    %93 = vector.broadcast %92 : vector<8x1xf32> to vector<8x32xf32>
    %94 = arith.mulf %89, %93 : vector<8x32xf32>
    %95 = vector.shape_cast %74 : vector<32xf32> to vector<1x32xf32>
    %96 = vector.broadcast %95 : vector<1x32xf32> to vector<8x32xf32>
    %97 = arith.mulf %94, %96 : vector<8x32xf32>
    %98 = vector.shape_cast %76 : vector<32xf32> to vector<1x32xf32>
    %99 = vector.broadcast %98 : vector<1x32xf32> to vector<8x32xf32>
    %100 = arith.addf %97, %99 : vector<8x32xf32>
    %101 = arith.truncf %100 : vector<8x32xf32> to vector<8x32xbf16>
    %c0_31 = arith.constant 0 : index
    %c0_32 = arith.constant 0 : index
    %102 = vector.load %arg11[%c0_31, %c0_32] : memref<32x128xbf16, #tpu.memory_space<vmem>>, vector<32x128xbf16>
    %cst_33 = arith.constant dense<0.000000e+00> : vector<8x128xf32>
    %103 = tpu.matmul %101, %102, %cst_33 {dimension_numbers = #tpu.dot_dimension_numbers<[1], [0], [0], [1], [0, 0, 1, 1], [], []>} : vector<8x32xbf16>, vector<32x128xbf16>, vector<8x128xf32> -> vector<8x128xf32>
    %c0_34 = arith.constant 0 : index
    %c0_35 = arith.constant 0 : index
    %104 = vector.load %arg12[%c0_34, %c0_35] : memref<1x128xf32, #tpu.memory_space<vmem>>, vector<1x128xf32>
    %105 = vector.shape_cast %104 : vector<1x128xf32> to vector<128xf32>
    %106 = vector.shape_cast %105 : vector<128xf32> to vector<1x128xf32>
    %107 = vector.broadcast %106 : vector<1x128xf32> to vector<8x128xf32>
    %108 = arith.addf %103, %107 : vector<8x128xf32>
    %109 = arith.mulf %108, %108 : vector<8x128xf32>
    %110 = arith.mulf %108, %109 : vector<8x128xf32>
    %cst_36 = arith.constant 4.471500e-02 : f32
    %111 = vector.broadcast %cst_36 : f32 to vector<8x128xf32>
    %112 = arith.mulf %111, %110 : vector<8x128xf32>
    %113 = arith.addf %108, %112 : vector<8x128xf32>
    %cst_37 = arith.constant 0.797884583 : f32
    %114 = vector.broadcast %cst_37 : f32 to vector<8x128xf32>
    %115 = arith.mulf %114, %113 : vector<8x128xf32>
    %116 = math.tanh %115 : vector<8x128xf32>
    %cst_38 = arith.constant 1.000000e+00 : f32
    %117 = vector.broadcast %cst_38 : f32 to vector<8x128xf32>
    %118 = arith.addf %117, %116 : vector<8x128xf32>
    %cst_39 = arith.constant 5.000000e-01 : f32
    %119 = vector.broadcast %cst_39 : f32 to vector<8x128xf32>
    %120 = arith.mulf %119, %118 : vector<8x128xf32>
    %121 = arith.mulf %108, %120 : vector<8x128xf32>
    %122 = arith.truncf %121 : vector<8x128xf32> to vector<8x128xbf16>
    %c0_40 = arith.constant 0 : index
    %c0_41 = arith.constant 0 : index
    %123 = vector.load %arg13[%c0_40, %c0_41] : memref<128x32xbf16, #tpu.memory_space<vmem>>, vector<128x32xbf16>
    %cst_42 = arith.constant dense<0.000000e+00> : vector<8x32xf32>
    %124 = tpu.matmul %122, %123, %cst_42 {dimension_numbers = #tpu.dot_dimension_numbers<[1], [0], [0], [1], [0, 0, 1, 1], [], []>} : vector<8x128xbf16>, vector<128x32xbf16>, vector<8x32xf32> -> vector<8x32xf32>
    %c0_43 = arith.constant 0 : index
    %c0_44 = arith.constant 0 : index
    %125 = vector.load %arg14[%c0_43, %c0_44] : memref<1x32xf32, #tpu.memory_space<vmem>>, vector<1x32xf32>
    %126 = vector.shape_cast %125 : vector<1x32xf32> to vector<32xf32>
    %127 = vector.shape_cast %126 : vector<32xf32> to vector<1x32xf32>
    %128 = vector.broadcast %127 : vector<1x32xf32> to vector<8x32xf32>
    %129 = arith.addf %124, %128 : vector<8x32xf32>
    %130 = arith.addf %72, %129 : vector<8x32xf32>
    %c0_45 = arith.constant 0 : index
    %c0_46 = arith.constant 0 : index
    %c0_47 = arith.constant 0 : index
    %131 = vector.load %arg15[%c0_45, %c0_46, %c0_47] : memref<1x8x32xf32, #tpu.memory_space<vmem>>, vector<1x8x32xf32>
    %132 = vector.shape_cast %131 : vector<1x8x32xf32> to vector<8x32xf32>
    %133 = vector.shape_cast %130 : vector<8x32xf32> to vector<1x8x32xf32>
    tpu.vector_store %arg15[%c0_45, %c0_46, %c0_47], %133 {strides = array<i32>} : memref<1x8x32xf32, #tpu.memory_space<vmem>>, vector<1x8x32xf32>,
    return
  }
  func.func @transform_0(%arg0: i32, %arg1: i32) -> (i32, i32, i32) {
    %c0_i32 = arith.constant 0 : i32
    %c0_i32_0 = arith.constant 0 : i32
    %c0_i32_1 = arith.constant 0 : i32
    return %arg0, %c0_i32, %c0_i32_0 : i32, i32, i32
  }
  func.func @transform_1(%arg0: i32, %arg1: i32) -> (i32, i32) {
    %c0_i32 = arith.constant 0 : i32
    %c0_i32_0 = arith.constant 0 : i32
    %c0_i32_1 = arith.constant 0 : i32
    return %c0_i32, %c0_i32_0 : i32, i32
  }
  func.func @transform_2(%arg0: i32, %arg1: i32) -> (i32, i32) {
    %c0_i32 = arith.constant 0 : i32
    %c0_i32_0 = arith.constant 0 : i32
    %c0_i32_1 = arith.constant 0 : i32
    return %c0_i32, %c0_i32_0 : i32, i32
  }
  func.func @transform_3(%arg0: i32, %arg1: i32) -> (i32, i32) {
    %c0_i32 = arith.constant 0 : i32
    %c0_i32_0 = arith.constant 0 : i32
    %c0_i32_1 = arith.constant 0 : i32
    return %c0_i32, %c0_i32_0 : i32, i32
  }
  func.func @transform_4(%arg0: i32, %arg1: i32) -> (i32, i32) {
    %c0_i32 = arith.constant 0 : i32
    %c0_i32_0 = arith.constant 0 : i32
    %c0_i32_1 = arith.constant 0 : i32
    return %c0_i32, %c0_i32_0 : i32, i32
  }
  func.func @transform_5(%arg0: i32, %arg1: i32) -> (i32, i32) {
    %c0_i32 = arith.constant 0 : i32
    %c0_i32_0 = arith.constant 0 : i32
    %c0_i32_1 = arith.constant 0 : i32
    return %c0_i32, %c0_i32_0 : i32, i32
  }
  func.func @transform_6(%arg0: i32, %arg1: i32) -> (i32, i32) {
    %c0_i32 = arith.constant 0 : i32
    %c0_i32_0 = arith.constant 0 : i32
    %c0_i32_1 = arith.constant 0 : i32
    return %c0_i32, %c0_i32_0 : i32, i32
  }
  func.func @transform_7(%arg0: i32, %arg1: i32) -> (i32, i32) {
    %c0_i32 = arith.constant 0 : i32
    %c0_i32_0 = arith.constant 0 : i32
    %c0_i32_1 = arith.constant 0 : i32
    return %c0_i32, %c0_i32_0 : i32, i32
  }
  func.func @transform_8(%arg0: i32, %arg1: i32) -> (i32, i32) {
    %c0_i32 = arith.constant 0 : i32
    %c0_i32_0 = arith.constant 0 : i32
    %c0_i32_1 = arith.constant 0 : i32
    return %c0_i32, %c0_i32_0 : i32, i32
  }
  func.func @transform_9(%arg0: i32, %arg1: i32) -> (i32, i32) {
    %c0_i32 = arith.constant 0 : i32
    %c0_i32_0 = arith.constant 0 : i32
    %c0_i32_1 = arith.constant 0 : i32
    return %c0_i32, %c0_i32_0 : i32, i32
  }
  func.func @transform_10(%arg0: i32, %arg1: i32) -> (i32, i32) {
    %c0_i32 = arith.constant 0 : i32
    %c0_i32_0 = arith.constant 0 : i32
    %c0_i32_1 = arith.constant 0 : i32
    return %c0_i32, %c0_i32_0 : i32, i32
  }
  func.func @transform_11(%arg0: i32, %arg1: i32) -> (i32, i32) {
    %c0_i32 = arith.constant 0 : i32
    %c0_i32_0 = arith.constant 0 : i32
    %c0_i32_1 = arith.constant 0 : i32
    return %c0_i32, %c0_i32_0 : i32, i32
  }
  func.func @transform_12(%arg0: i32, %arg1: i32) -> (i32, i32) {
    %c0_i32 = arith.constant 0 : i32
    %c0_i32_0 = arith.constant 0 : i32
    %c0_i32_1 = arith.constant 0 : i32
    return %c0_i32, %c0_i32_0 : i32, i32
  }
  func.func @transform_13(%arg0: i32, %arg1: i32) -> (i32, i32, i32) {
    %c0_i32 = arith.constant 0 : i32
    %c0_i32_0 = arith.constant 0 : i32
    return %arg0, %arg1, %c0_i32 : i32, i32, i32
  }
}

module attributes {stable_mosaic.version = 11 : i64} {
  func.func @gpt2_block_kernel(%arg0: i32, %arg1: i32, %arg2: memref<1x8x32xf32, #tpu.memory_space<vmem>>, %arg3: memref<1x32xf32, #tpu.memory_space<vmem>>, %arg4: memref<1x32xf32, #tpu.memory_space<vmem>>, %arg5: memref<32x96xbf16, #tpu.memory_space<vmem>>, %arg6: memref<1x96xf32, #tpu.memory_space<vmem>>, %arg7: memref<32x32xbf16, #tpu.memory_space<vmem>>, %arg8: memref<1x32xf32, #tpu.memory_space<vmem>>, %arg9: memref<1x32xf32, #tpu.memory_space<vmem>>, %arg10: memref<1x32xf32, #tpu.memory_space<vmem>>, %arg11: memref<32x128xbf16, #tpu.memory_space<vmem>>, %arg12: memref<1x128xf32, #tpu.memory_space<vmem>>, %arg13: memref<128x32xbf16, #tpu.memory_space<vmem>>, %arg14: memref<1x32xf32, #tpu.memory_space<vmem>>, %arg15: memref<1x8x32xf32, #tpu.memory_space<vmem>>, %arg16: memref<4x8x8xbf16, #tpu.memory_space<vmem>>, %arg17: memref<4x8x8xbf16, #tpu.memory_space<vmem>>, %arg18: memref<4x8x8xbf16, #tpu.memory_space<vmem>>) attributes {dimension_semantics = [#tpu.dimension_semantics<parallel>, #tpu.dimension_semantics<arbitrary>], iteration_bounds = array<i64: 2, 1>, scalar_prefetch = 0 : i64, scratch_operands = 3 : i64, tpu.core_type = #tpu.core_type<tc>, window_params = [{transform_indices = @transform_0, window_bounds = array<i64: 1, 8, 32>}, {pipeline_mode = #tpu.pipeline_mode<synchronous>, transform_indices = @transform_1, window_bounds = array<i64: 1, 32>}, {pipeline_mode = #tpu.pipeline_mode<synchronous>, transform_indices = @transform_2, window_bounds = array<i64: 1, 32>}, {pipeline_mode = #tpu.pipeline_mode<synchronous>, transform_indices = @transform_3, window_bounds = array<i64: 32, 96>}, {pipeline_mode = #tpu.pipeline_mode<synchronous>, transform_indices = @transform_4, window_bounds = array<i64: 1, 96>}, {pipeline_mode = #tpu.pipeline_mode<synchronous>, transform_indices = @transform_5, window_bounds = array<i64: 32, 32>}, {pipeline_mode = #tpu.pipeline_mode<synchronous>, transform_indices = @transform_6, window_bounds = array<i64: 1, 32>}, {pipeline_mode = #tpu.pipeline_mode<synchronous>, transform_indices = @transform_7, window_bounds = array<i64: 1, 32>}, {pipeline_mode = #tpu.pipeline_mode<synchronous>, transform_indices = @transform_8, window_bounds = array<i64: 1, 32>}, {pipeline_mode = #tpu.pipeline_mode<synchronous>, transform_indices = @transform_9, window_bounds = array<i64: 32, 128>}, {pipeline_mode = #tpu.pipeline_mode<synchronous>, transform_indices = @transform_10, window_bounds = array<i64: 1, 128>}, {pipeline_mode = #tpu.pipeline_mode<synchronous>, transform_indices = @transform_11, window_bounds = array<i64: 128, 32>}, {pipeline_mode = #tpu.pipeline_mode<synchronous>, transform_indices = @transform_12, window_bounds = array<i64: 1, 32>}, {transform_indices = @transform_13, window_bounds = array<i64: 1, 8, 32>}]} {
    %c0_i32 = arith.constant 0 : i32
    %0 = arith.cmpi eq, %arg1, %c0_i32 : i32
    %1 = arith.extui %0 : i1 to i32
    %c0_i32_0 = arith.constant 0 : i32
    %2 = arith.cmpi ne, %1, %c0_i32_0 : i32
    scf.if %2 {
      %c0_48 = arith.constant 0 : index
      %c0_49 = arith.constant 0 : index
      %c0_50 = arith.constant 0 : index
      %134 = vector.load %arg2[%c0_48, %c0_49, %c0_50] : memref<1x8x32xf32, #tpu.memory_space<vmem>>, vector<1x8x32xf32>
      %135 = vector.shape_cast %134 : vector<1x8x32xf32> to vector<8x32xf32>
      %c0_51 = arith.constant 0 : index
      %c0_52 = arith.constant 0 : index
      %136 = vector.load %arg3[%c0_51, %c0_52] : memref<1x32xf32, #tpu.memory_space<vmem>>, vector<1x32xf32>
      %137 = vector.shape_cast %136 : vector<1x32xf32> to vector<32xf32>
      %c0_53 = arith.constant 0 : index
      %c0_54 = arith.constant 0 : index
      %138 = vector.load %arg4[%c0_53, %c0_54] : memref<1x32xf32, #tpu.memory_space<vmem>>, vector<1x32xf32>
      %139 = vector.shape_cast %138 : vector<1x32xf32> to vector<32xf32>
      %cst_55 = arith.constant dense<0.000000e+00> : vector<8xf32>
      %140 = vector.multi_reduction <add>, %135, %cst_55 [1] : vector<8x32xf32> to vector<8xf32>
      %141 = vector.shape_cast %140 : vector<8xf32> to vector<8x1xf32>
      %cst_56 = arith.constant 3.200000e+01 : f32
      %142 = vector.broadcast %cst_56 : f32 to vector<8x1xf32>
      %143 = arith.divf %141, %142 : vector<8x1xf32>
      %144 = vector.broadcast %143 : vector<8x1xf32> to vector<8x32xf32>
      %145 = arith.subf %135, %144 : vector<8x32xf32>
      %146 = arith.mulf %145, %145 : vector<8x32xf32>
      %cst_57 = arith.constant dense<0.000000e+00> : vector<8xf32>
      %147 = vector.multi_reduction <add>, %146, %cst_57 [1] : vector<8x32xf32> to vector<8xf32>
      %148 = vector.shape_cast %147 : vector<8xf32> to vector<8x1xf32>
      %cst_58 = arith.constant 3.200000e+01 : f32
      %149 = vector.broadcast %cst_58 : f32 to vector<8x1xf32>
      %150 = arith.divf %148, %149 : vector<8x1xf32>
      %151 = vector.broadcast %143 : vector<8x1xf32> to vector<8x32xf32>
      %152 = arith.subf %135, %151 : vector<8x32xf32>
      %cst_59 = arith.constant 9.99999974E-6 : f32
      %153 = vector.broadcast %cst_59 : f32 to vector<8x1xf32>
      %154 = arith.addf %150, %153 : vector<8x1xf32>
      %155 = math.rsqrt %154 : vector<8x1xf32>
      %156 = vector.broadcast %155 : vector<8x1xf32> to vector<8x32xf32>
      %157 = arith.mulf %152, %156 : vector<8x32xf32>
      %158 = vector.shape_cast %137 : vector<32xf32> to vector<1x32xf32>
      %159 = vector.broadcast %158 : vector<1x32xf32> to vector<8x32xf32>
      %160 = arith.mulf %157, %159 : vector<8x32xf32>
      %161 = vector.shape_cast %139 : vector<32xf32> to vector<1x32xf32>
      %162 = vector.broadcast %161 : vector<1x32xf32> to vector<8x32xf32>
      %163 = arith.addf %160, %162 : vector<8x32xf32>
      %164 = arith.truncf %163 : vector<8x32xf32> to vector<8x32xbf16>
      %c0_60 = arith.constant 0 : index
      %c0_61 = arith.constant 0 : index
      %165 = vector.load %arg5[%c0_60, %c0_61] : memref<32x96xbf16, #tpu.memory_space<vmem>>, vector<32x96xbf16>
      %cst_62 = arith.constant dense<0.000000e+00> : vector<8x96xf32>
      %166 = tpu.matmul %164, %165, %cst_62 {dimension_numbers = #tpu.dot_dimension_numbers<[1], [0], [0], [1], [0, 0, 1, 1], [], []>} : vector<8x32xbf16>, vector<32x96xbf16>, vector<8x96xf32> -> vector<8x96xf32>
      %c0_63 = arith.constant 0 : index
      %c0_64 = arith.constant 0 : index
      %167 = vector.load %arg6[%c0_63, %c0_64] : memref<1x96xf32, #tpu.memory_space<vmem>>, vector<1x96xf32>
      %168 = vector.shape_cast %167 : vector<1x96xf32> to vector<96xf32>
      %169 = vector.shape_cast %168 : vector<96xf32> to vector<1x96xf32>
      %170 = vector.broadcast %169 : vector<1x96xf32> to vector<8x96xf32>
      %171 = arith.addf %166, %170 : vector<8x96xf32>
      %172 = arith.truncf %171 : vector<8x96xf32> to vector<8x96xbf16>
      %173 = vector.extract_strided_slice %172 {offsets = [0, 0], sizes = [8, 8], strides = [1, 1]} : vector<8x96xbf16> to vector<8x8xbf16>
      %c0_65 = arith.constant 0 : index
      %c0_66 = arith.constant 0 : index
      %c0_67 = arith.constant 0 : index
      %174 = vector.load %arg16[%c0_65, %c0_66, %c0_67] : memref<4x8x8xbf16, #tpu.memory_space<vmem>>, vector<1x8x8xbf16>
      %175 = vector.shape_cast %174 : vector<1x8x8xbf16> to vector<8x8xbf16>
      %176 = vector.shape_cast %173 : vector<8x8xbf16> to vector<1x8x8xbf16>
      tpu.vector_store %arg16[%c0_65, %c0_66, %c0_67], %176 {strides = array<i32>} : memref<4x8x8xbf16, #tpu.memory_space<vmem>>, vector<1x8x8xbf16>,
      %177 = vector.extract_strided_slice %172 {offsets = [0, 32], sizes = [8, 8], strides = [1, 1]} : vector<8x96xbf16> to vector<8x8xbf16>
      %c0_68 = arith.constant 0 : index
      %c0_69 = arith.constant 0 : index
      %c0_70 = arith.constant 0 : index
      %178 = vector.load %arg17[%c0_68, %c0_69, %c0_70] : memref<4x8x8xbf16, #tpu.memory_space<vmem>>, vector<1x8x8xbf16>
      %179 = vector.shape_cast %178 : vector<1x8x8xbf16> to vector<8x8xbf16>
      %180 = vector.shape_cast %177 : vector<8x8xbf16> to vector<1x8x8xbf16>
      tpu.vector_store %arg17[%c0_68, %c0_69, %c0_70], %180 {strides = array<i32>} : memref<4x8x8xbf16, #tpu.memory_space<vmem>>, vector<1x8x8xbf16>,
      %181 = vector.extract_strided_slice %172 {offsets = [0, 64], sizes = [8, 8], strides = [1, 1]} : vector<8x96xbf16> to vector<8x8xbf16>
      %c0_71 = arith.constant 0 : index
      %c0_72 = arith.constant 0 : index
      %c0_73 = arith.constant 0 : index
      %182 = vector.load %arg18[%c0_71, %c0_72, %c0_73] : memref<4x8x8xbf16, #tpu.memory_space<vmem>>, vector<1x8x8xbf16>
      %183 = vector.shape_cast %182 : vector<1x8x8xbf16> to vector<8x8xbf16>
      %184 = vector.shape_cast %181 : vector<8x8xbf16> to vector<1x8x8xbf16>
      tpu.vector_store %arg18[%c0_71, %c0_72, %c0_73], %184 {strides = array<i32>} : memref<4x8x8xbf16, #tpu.memory_space<vmem>>, vector<1x8x8xbf16>,
      %185 = vector.extract_strided_slice %172 {offsets = [0, 8], sizes = [8, 8], strides = [1, 1]} : vector<8x96xbf16> to vector<8x8xbf16>
      %c1 = arith.constant 1 : index
      %c0_74 = arith.constant 0 : index
      %c0_75 = arith.constant 0 : index
      %186 = vector.load %arg16[%c1, %c0_74, %c0_75] : memref<4x8x8xbf16, #tpu.memory_space<vmem>>, vector<1x8x8xbf16>
      %187 = vector.shape_cast %186 : vector<1x8x8xbf16> to vector<8x8xbf16>
      %188 = vector.shape_cast %185 : vector<8x8xbf16> to vector<1x8x8xbf16>
      tpu.vector_store %arg16[%c1, %c0_74, %c0_75], %188 {strides = array<i32>} : memref<4x8x8xbf16, #tpu.memory_space<vmem>>, vector<1x8x8xbf16>,
      %189 = vector.extract_strided_slice %172 {offsets = [0, 40], sizes = [8, 8], strides = [1, 1]} : vector<8x96xbf16> to vector<8x8xbf16>
      %c1_76 = arith.constant 1 : index
      %c0_77 = arith.constant 0 : index
      %c0_78 = arith.constant 0 : index
      %190 = vector.load %arg17[%c1_76, %c0_77, %c0_78] : memref<4x8x8xbf16, #tpu.memory_space<vmem>>, vector<1x8x8xbf16>
      %191 = vector.shape_cast %190 : vector<1x8x8xbf16> to vector<8x8xbf16>
      %192 = vector.shape_cast %189 : vector<8x8xbf16> to vector<1x8x8xbf16>
      tpu.vector_store %arg17[%c1_76, %c0_77, %c0_78], %192 {strides = array<i32>} : memref<4x8x8xbf16, #tpu.memory_space<vmem>>, vector<1x8x8xbf16>,
      %193 = vector.extract_strided_slice %172 {offsets = [0, 72], sizes = [8, 8], strides = [1, 1]} : vector<8x96xbf16> to vector<8x8xbf16>
      %c1_79 = arith.constant 1 : index
      %c0_80 = arith.constant 0 : index
      %c0_81 = arith.constant 0 : index
      %194 = vector.load %arg18[%c1_79, %c0_80, %c0_81] : memref<4x8x8xbf16, #tpu.memory_space<vmem>>, vector<1x8x8xbf16>
      %195 = vector.shape_cast %194 : vector<1x8x8xbf16> to vector<8x8xbf16>
      %196 = vector.shape_cast %193 : vector<8x8xbf16> to vector<1x8x8xbf16>
      tpu.vector_store %arg18[%c1_79, %c0_80, %c0_81], %196 {strides = array<i32>} : memref<4x8x8xbf16, #tpu.memory_space<vmem>>, vector<1x8x8xbf16>,
      %197 = vector.extract_strided_slice %172 {offsets = [0, 16], sizes = [8, 8], strides = [1, 1]} : vector<8x96xbf16> to vector<8x8xbf16>
      %c2 = arith.constant 2 : index
      %c0_82 = arith.constant 0 : index
      %c0_83 = arith.constant 0 : index
      %198 = vector.load %arg16[%c2, %c0_82, %c0_83] : memref<4x8x8xbf16, #tpu.memory_space<vmem>>, vector<1x8x8xbf16>
      %199 = vector.shape_cast %198 : vector<1x8x8xbf16> to vector<8x8xbf16>
      %200 = vector.shape_cast %197 : vector<8x8xbf16> to vector<1x8x8xbf16>
      tpu.vector_store %arg16[%c2, %c0_82, %c0_83], %200 {strides = array<i32>} : memref<4x8x8xbf16, #tpu.memory_space<vmem>>, vector<1x8x8xbf16>,
      %201 = vector.extract_strided_slice %172 {offsets = [0, 48], sizes = [8, 8], strides = [1, 1]} : vector<8x96xbf16> to vector<8x8xbf16>
      %c2_84 = arith.constant 2 : index
      %c0_85 = arith.constant 0 : index
      %c0_86 = arith.constant 0 : index
      %202 = vector.load %arg17[%c2_84, %c0_85, %c0_86] : memref<4x8x8xbf16, #tpu.memory_space<vmem>>, vector<1x8x8xbf16>
      %203 = vector.shape_cast %202 : vector<1x8x8xbf16> to vector<8x8xbf16>
      %204 = vector.shape_cast %201 : vector<8x8xbf16> to vector<1x8x8xbf16>
      tpu.vector_store %arg17[%c2_84, %c0_85, %c0_86], %204 {strides = array<i32>} : memref<4x8x8xbf16, #tpu.memory_space<vmem>>, vector<1x8x8xbf16>,
      %205 = vector.extract_strided_slice %172 {offsets = [0, 80], sizes = [8, 8], strides = [1, 1]} : vector<8x96xbf16> to vector<8x8xbf16>
      %c2_87 = arith.constant 2 : index
      %c0_88 = arith.constant 0 : index
      %c0_89 = arith.constant 0 : index
      %206 = vector.load %arg18[%c2_87, %c0_88, %c0_89] : memref<4x8x8xbf16, #tpu.memory_space<vmem>>, vector<1x8x8xbf16>
      %207 = vector.shape_cast %206 : vector<1x8x8xbf16> to vector<8x8xbf16>
      %208 = vector.shape_cast %205 : vector<8x8xbf16> to vector<1x8x8xbf16>
      tpu.vector_store %arg18[%c2_87, %c0_88, %c0_89], %208 {strides = array<i32>} : memref<4x8x8xbf16, #tpu.memory_space<vmem>>, vector<1x8x8xbf16>,
      %209 = vector.extract_strided_slice %172 {offsets = [0, 24], sizes = [8, 8], strides = [1, 1]} : vector<8x96xbf16> to vector<8x8xbf16>
      %c3 = arith.constant 3 : index
      %c0_90 = arith.constant 0 : index
      %c0_91 = arith.constant 0 : index
      %210 = vector.load %arg16[%c3, %c0_90, %c0_91] : memref<4x8x8xbf16, #tpu.memory_space<vmem>>, vector<1x8x8xbf16>
      %211 = vector.shape_cast %210 : vector<1x8x8xbf16> to vector<8x8xbf16>
      %212 = vector.shape_cast %209 : vector<8x8xbf16> to vector<1x8x8xbf16>
      tpu.vector_store %arg16[%c3, %c0_90, %c0_91], %212 {strides = array<i32>} : memref<4x8x8xbf16, #tpu.memory_space<vmem>>, vector<1x8x8xbf16>,
      %213 = vector.extract_strided_slice %172 {offsets = [0, 56], sizes = [8, 8], strides = [1, 1]} : vector<8x96xbf16> to vector<8x8xbf16>
      %c3_92 = arith.constant 3 : index
      %c0_93 = arith.constant 0 : index
      %c0_94 = arith.constant 0 : index
      %214 = vector.load %arg17[%c3_92, %c0_93, %c0_94] : memref<4x8x8xbf16, #tpu.memory_space<vmem>>, vector<1x8x8xbf16>
      %215 = vector.shape_cast %214 : vector<1x8x8xbf16> to vector<8x8xbf16>
      %216 = vector.shape_cast %213 : vector<8x8xbf16> to vector<1x8x8xbf16>
      tpu.vector_store %arg17[%c3_92, %c0_93, %c0_94], %216 {strides = array<i32>} : memref<4x8x8xbf16, #tpu.memory_space<vmem>>, vector<1x8x8xbf16>,
      %217 = vector.extract_strided_slice %172 {offsets = [0, 88], sizes = [8, 8], strides = [1, 1]} : vector<8x96xbf16> to vector<8x8xbf16>
      %c3_95 = arith.constant 3 : index
      %c0_96 = arith.constant 0 : index
      %c0_97 = arith.constant 0 : index
      %218 = vector.load %arg18[%c3_95, %c0_96, %c0_97] : memref<4x8x8xbf16, #tpu.memory_space<vmem>>, vector<1x8x8xbf16>
      %219 = vector.shape_cast %218 : vector<1x8x8xbf16> to vector<8x8xbf16>
      %220 = vector.shape_cast %217 : vector<8x8xbf16> to vector<1x8x8xbf16>
      tpu.vector_store %arg18[%c3_95, %c0_96, %c0_97], %220 {strides = array<i32>} : memref<4x8x8xbf16, #tpu.memory_space<vmem>>, vector<1x8x8xbf16>,
    } else {
    }
    %c8_i32 = arith.constant 8 : i32
    %3 = arith.muli %arg1, %c8_i32 : i32
    %4 = tpu.assume_multiple %3, 8 : i32
    %c0 = arith.constant 0 : index
    %5 = arith.index_cast %4 : i32 to index
    %c0_1 = arith.constant 0 : index
    %6 = vector.load %arg16[%c0, %5, %c0_1] : memref<4x8x8xbf16, #tpu.memory_space<vmem>>, vector<4x8x8xbf16>
    %cst = arith.constant 0xFF800000 : f32
    %7 = vector.broadcast %cst : f32 to vector<4x8x1xf32>
    %cst_2 = arith.constant 0.000000e+00 : f32
    %8 = vector.broadcast %cst_2 : f32 to vector<4x8x1xf32>
    %cst_3 = arith.constant 0.000000e+00 : f32
    %9 = vector.broadcast %cst_3 : f32 to vector<4x8x8xf32>
    %c0_i32_4 = arith.constant 0 : i32
    %10 = arith.subi %arg1, %c0_i32_4 : i32
    %11 = arith.addi %c0_i32_4, %10 : i32
    %c1_i32 = arith.constant 1 : i32
    %12:3 = scf.for %arg19 = %c0_i32_4 to %11 step %c1_i32 iter_args(%arg20 = %7, %arg21 = %8, %arg22 = %9) -> (vector<4x8x1xf32>, vector<4x8x1xf32>, vector<4x8x8xf32>)  : i32 {
      %c8_i32_48 = arith.constant 8 : i32
      %134 = arith.muli %arg19, %c8_i32_48 : i32
      %135 = tpu.assume_multiple %134, 8 : i32
      %c0_49 = arith.constant 0 : index
      %136 = arith.index_cast %135 : i32 to index
      %c0_50 = arith.constant 0 : index
      %137 = vector.load %arg17[%c0_49, %136, %c0_50] : memref<4x8x8xbf16, #tpu.memory_space<vmem>>, vector<4x8x8xbf16>
      %c0_51 = arith.constant 0 : index
      %138 = arith.index_cast %135 : i32 to index
      %c0_52 = arith.constant 0 : index
      %139 = vector.load %arg18[%c0_51, %138, %c0_52] : memref<4x8x8xbf16, #tpu.memory_space<vmem>>, vector<4x8x8xbf16>
      "tpu.trace_start"() <{level = 10 : i32, message = "hqd,hkd->hqk"}> : () -> ()
      %cst_53 = arith.constant dense<0.000000e+00> : vector<4x8x8xf32>
      %140 = tpu.matmul %6, %137, %cst_53 {dimension_numbers = #tpu.dot_dimension_numbers<[2], [2], [1], [1], [0, 0, 0, 1, 1, 1], [0], [0]>} : vector<4x8x8xbf16>, vector<4x8x8xbf16>, vector<4x8x8xf32> -> vector<4x8x8xf32>
      "tpu.trace_stop"() : () -> ()
      %cst_54 = arith.constant 0.353553385 : f32
      %141 = vector.broadcast %cst_54 : f32 to vector<4x8x8xf32>
      %142 = arith.mulf %140, %141 : vector<4x8x8xf32>
      %cst_55 = arith.constant dense<0xFF800000> : vector<4x8xf32>
      %143 = vector.multi_reduction <maximumf>, %142, %cst_55 [2] : vector<4x8x8xf32> to vector<4x8xf32>
      %144 = vector.shape_cast %143 : vector<4x8xf32> to vector<4x8x1xf32>
      %145 = arith.maximumf %arg20, %144 : vector<4x8x1xf32>
      %146 = arith.subf %arg20, %145 : vector<4x8x1xf32>
      %147 = math.exp %146 : vector<4x8x1xf32>
      %148 = vector.broadcast %145 : vector<4x8x1xf32> to vector<4x8x8xf32>
      %149 = arith.subf %142, %148 : vector<4x8x8xf32>
      %150 = math.exp %149 : vector<4x8x8xf32>
      %151 = arith.mulf %147, %arg21 : vector<4x8x1xf32>
      %cst_56 = arith.constant dense<0.000000e+00> : vector<4x8xf32>
      %152 = vector.multi_reduction <add>, %150, %cst_56 [2] : vector<4x8x8xf32> to vector<4x8xf32>
      %153 = vector.shape_cast %152 : vector<4x8xf32> to vector<4x8x1xf32>
      %154 = arith.addf %151, %153 : vector<4x8x1xf32>
      %155 = vector.broadcast %147 : vector<4x8x1xf32> to vector<4x8x8xf32>
      %156 = arith.mulf %155, %arg22 : vector<4x8x8xf32>
      %157 = arith.truncf %150 : vector<4x8x8xf32> to vector<4x8x8xbf16>
      "tpu.trace_start"() <{level = 10 : i32, message = "hqk,hkd->hqd"}> : () -> ()
      %cst_57 = arith.constant dense<0.000000e+00> : vector<4x8x8xf32>
      %158 = tpu.matmul %157, %139, %cst_57 {dimension_numbers = #tpu.dot_dimension_numbers<[2], [1], [1], [2], [0, 0, 0, 1, 1, 2], [0], [0]>} : vector<4x8x8xbf16>, vector<4x8x8xbf16>, vector<4x8x8xf32> -> vector<4x8x8xf32>
      "tpu.trace_stop"() : () -> ()
      %159 = arith.addf %156, %158 : vector<4x8x8xf32>
      scf.yield %145, %154, %159 : vector<4x8x1xf32>, vector<4x8x1xf32>, vector<4x8x8xf32>
    }
    %c0_5 = arith.constant 0 : index
    %13 = arith.index_cast %4 : i32 to index
    %c0_6 = arith.constant 0 : index
    %14 = vector.load %arg17[%c0_5, %13, %c0_6] : memref<4x8x8xbf16, #tpu.memory_space<vmem>>, vector<4x8x8xbf16>
    %c0_7 = arith.constant 0 : index
    %15 = arith.index_cast %4 : i32 to index
    %c0_8 = arith.constant 0 : index
    %16 = vector.load %arg18[%c0_7, %15, %c0_8] : memref<4x8x8xbf16, #tpu.memory_space<vmem>>, vector<4x8x8xbf16>
    "tpu.trace_start"() <{level = 10 : i32, message = "hqd,hkd->hqk"}> : () -> ()
    %cst_9 = arith.constant dense<0.000000e+00> : vector<4x8x8xf32>
    %17 = tpu.matmul %6, %14, %cst_9 {dimension_numbers = #tpu.dot_dimension_numbers<[2], [2], [1], [1], [0, 0, 0, 1, 1, 1], [0], [0]>} : vector<4x8x8xbf16>, vector<4x8x8xbf16>, vector<4x8x8xf32> -> vector<4x8x8xf32>
    "tpu.trace_stop"() : () -> ()
    %cst_10 = arith.constant 0.353553385 : f32
    %18 = vector.broadcast %cst_10 : f32 to vector<4x8x8xf32>
    %19 = arith.mulf %17, %18 : vector<4x8x8xf32>
    %20 = tpu.iota {dimensions = array<i32: 0>} : vector<8x8xi32>
    %21 = vector.broadcast %4 : i32 to vector<8x8xi32>
    %22 = arith.addi %21, %20 : vector<8x8xi32>
    %23 = tpu.iota {dimensions = array<i32: 1>} : vector<8x8xi32>
    %24 = vector.broadcast %4 : i32 to vector<8x8xi32>
    %25 = arith.addi %24, %23 : vector<8x8xi32>
    %26 = arith.cmpi sle, %25, %22 : vector<8x8xi32>
    %27 = vector.shape_cast %26 : vector<8x8xi1> to vector<1x8x8xi1>
    %cst_11 = arith.constant -1.000000e+30 : f32
    %28 = vector.shape_cast %27 : vector<1x8x8xi1> to vector<1x8x8xi1>
    %29 = vector.broadcast %28 : vector<1x8x8xi1> to vector<4x8x8xi1>
    %30 = vector.broadcast %cst_11 : f32 to vector<4x8x8xf32>
    %31 = arith.select %29, %19, %30 : vector<4x8x8xi1>, vector<4x8x8xf32>
    %cst_12 = arith.constant dense<0xFF800000> : vector<4x8xf32>
    %32 = vector.multi_reduction <maximumf>, %31, %cst_12 [2] : vector<4x8x8xf32> to vector<4x8xf32>
    %33 = vector.shape_cast %32 : vector<4x8xf32> to vector<4x8x1xf32>
    %34 = arith.maximumf %12#0, %33 : vector<4x8x1xf32>
    %35 = arith.subf %12#0, %34 : vector<4x8x1xf32>
    %36 = math.exp %35 : vector<4x8x1xf32>
    %37 = vector.broadcast %34 : vector<4x8x1xf32> to vector<4x8x8xf32>
    %38 = arith.subf %31, %37 : vector<4x8x8xf32>
    %39 = math.exp %38 : vector<4x8x8xf32>
    %40 = arith.mulf %36, %12#1 : vector<4x8x1xf32>
    %cst_13 = arith.constant dense<0.000000e+00> : vector<4x8xf32>
    %41 = vector.multi_reduction <add>, %39, %cst_13 [2] : vector<4x8x8xf32> to vector<4x8xf32>
    %42 = vector.shape_cast %41 : vector<4x8xf32> to vector<4x8x1xf32>
    %43 = arith.addf %40, %42 : vector<4x8x1xf32>
    %44 = vector.broadcast %36 : vector<4x8x1xf32> to vector<4x8x8xf32>
    %45 = arith.mulf %44, %12#2 : vector<4x8x8xf32>
    %46 = arith.truncf %39 : vector<4x8x8xf32> to vector<4x8x8xbf16>
    "tpu.trace_start"() <{level = 10 : i32, message = "hqk,hkd->hqd"}> : () -> ()
    %cst_14 = arith.constant dense<0.000000e+00> : vector<4x8x8xf32>
    %47 = tpu.matmul %46, %16, %cst_14 {dimension_numbers = #tpu.dot_dimension_numbers<[2], [1], [1], [2], [0, 0, 0, 1, 1, 2], [0], [0]>} : vector<4x8x8xbf16>, vector<4x8x8xbf16>, vector<4x8x8xf32> -> vector<4x8x8xf32>
    "tpu.trace_stop"() : () -> ()
    %48 = arith.addf %45, %47 : vector<4x8x8xf32>
    %49 = tpu.reciprocal %43 {approx = true} : vector<4x8x1xf32> -> vector<4x8x1xf32>
    %50 = vector.broadcast %49 : vector<4x8x1xf32> to vector<4x8x8xf32>
    %51 = arith.mulf %48, %50 : vector<4x8x8xf32>
    %52 = arith.truncf %51 : vector<4x8x8xf32> to vector<4x8x8xbf16>
    %53 = vector.extract_strided_slice %52 {offsets = [0, 0, 0], sizes = [1, 8, 8], strides = [1, 1, 1]} : vector<4x8x8xbf16> to vector<1x8x8xbf16>
    %54 = vector.shape_cast %53 : vector<1x8x8xbf16> to vector<8x8xbf16>
    %55 = vector.extract_strided_slice %52 {offsets = [1, 0, 0], sizes = [1, 8, 8], strides = [1, 1, 1]} : vector<4x8x8xbf16> to vector<1x8x8xbf16>
    %56 = vector.shape_cast %55 : vector<1x8x8xbf16> to vector<8x8xbf16>
    %57 = vector.extract_strided_slice %52 {offsets = [2, 0, 0], sizes = [1, 8, 8], strides = [1, 1, 1]} : vector<4x8x8xbf16> to vector<1x8x8xbf16>
    %58 = vector.shape_cast %57 : vector<1x8x8xbf16> to vector<8x8xbf16>
    %59 = vector.extract_strided_slice %52 {offsets = [3, 0, 0], sizes = [1, 8, 8], strides = [1, 1, 1]} : vector<4x8x8xbf16> to vector<1x8x8xbf16>
    %60 = vector.shape_cast %59 : vector<1x8x8xbf16> to vector<8x8xbf16>
    %61 = tpu.concatenate %54, %56, %58, %60 in 1 : vector<8x8xbf16>, vector<8x8xbf16>, vector<8x8xbf16>, vector<8x8xbf16> -> vector<8x32xbf16>
    %c0_15 = arith.constant 0 : index
    %c0_16 = arith.constant 0 : index
    %62 = vector.load %arg7[%c0_15, %c0_16] : memref<32x32xbf16, #tpu.memory_space<vmem>>, vector<32x32xbf16>
    %cst_17 = arith.constant dense<0.000000e+00> : vector<8x32xf32>
    %63 = tpu.matmul %61, %62, %cst_17 {dimension_numbers = #tpu.dot_dimension_numbers<[1], [0], [0], [1], [0, 0, 1, 1], [], []>} : vector<8x32xbf16>, vector<32x32xbf16>, vector<8x32xf32> -> vector<8x32xf32>
    %c0_18 = arith.constant 0 : index
    %c0_19 = arith.constant 0 : index
    %64 = vector.load %arg8[%c0_18, %c0_19] : memref<1x32xf32, #tpu.memory_space<vmem>>, vector<1x32xf32>
    %65 = vector.shape_cast %64 : vector<1x32xf32> to vector<32xf32>
    %66 = vector.shape_cast %65 : vector<32xf32> to vector<1x32xf32>
    %67 = vector.broadcast %66 : vector<1x32xf32> to vector<8x32xf32>
    %68 = arith.addf %63, %67 : vector<8x32xf32>
    %c0_20 = arith.constant 0 : index
    %69 = arith.index_cast %4 : i32 to index
    %c0_21 = arith.constant 0 : index
    %70 = vector.load %arg2[%c0_20, %69, %c0_21] : memref<1x8x32xf32, #tpu.memory_space<vmem>>, vector<1x8x32xf32>
    %71 = vector.shape_cast %70 : vector<1x8x32xf32> to vector<8x32xf32>
    %72 = arith.addf %71, %68 : vector<8x32xf32>
    %c0_22 = arith.constant 0 : index
    %c0_23 = arith.constant 0 : index
    %73 = vector.load %arg9[%c0_22, %c0_23] : memref<1x32xf32, #tpu.memory_space<vmem>>, vector<1x32xf32>
    %74 = vector.shape_cast %73 : vector<1x32xf32> to vector<32xf32>
    %c0_24 = arith.constant 0 : index
    %c0_25 = arith.constant 0 : index
    %75 = vector.load %arg10[%c0_24, %c0_25] : memref<1x32xf32, #tpu.memory_space<vmem>>, vector<1x32xf32>
    %76 = vector.shape_cast %75 : vector<1x32xf32> to vector<32xf32>
    %cst_26 = arith.constant dense<0.000000e+00> : vector<8xf32>
    %77 = vector.multi_reduction <add>, %72, %cst_26 [1] : vector<8x32xf32> to vector<8xf32>
    %78 = vector.shape_cast %77 : vector<8xf32> to vector<8x1xf32>
    %cst_27 = arith.constant 3.200000e+01 : f32
    %79 = vector.broadcast %cst_27 : f32 to vector<8x1xf32>
    %80 = arith.divf %78, %79 : vector<8x1xf32>
    %81 = vector.broadcast %80 : vector<8x1xf32> to vector<8x32xf32>
    %82 = arith.subf %72, %81 : vector<8x32xf32>
    %83 = arith.mulf %82, %82 : vector<8x32xf32>
    %cst_28 = arith.constant dense<0.000000e+00> : vector<8xf32>
    %84 = vector.multi_reduction <add>, %83, %cst_28 [1] : vector<8x32xf32> to vector<8xf32>
    %85 = vector.shape_cast %84 : vector<8xf32> to vector<8x1xf32>
    %cst_29 = arith.constant 3.200000e+01 : f32
    %86 = vector.broadcast %cst_29 : f32 to vector<8x1xf32>
    %87 = arith.divf %85, %86 : vector<8x1xf32>
    %88 = vector.broadcast %80 : vector<8x1xf32> to vector<8x32xf32>
    %89 = arith.subf %72, %88 : vector<8x32xf32>
    %cst_30 = arith.constant 9.99999974E-6 : f32
    %90 = vector.broadcast %cst_30 : f32 to vector<8x1xf32>
    %91 = arith.addf %87, %90 : vector<8x1xf32>
    %92 = math.rsqrt %91 : vector<8x1xf32>
    %93 = vector.broadcast %92 : vector<8x1xf32> to vector<8x32xf32>
    %94 = arith.mulf %89, %93 : vector<8x32xf32>
    %95 = vector.shape_cast %74 : vector<32xf32> to vector<1x32xf32>
    %96 = vector.broadcast %95 : vector<1x32xf32> to vector<8x32xf32>
    %97 = arith.mulf %94, %96 : vector<8x32xf32>
    %98 = vector.shape_cast %76 : vector<32xf32> to vector<1x32xf32>
    %99 = vector.broadcast %98 : vector<1x32xf32> to vector<8x32xf32>
    %100 = arith.addf %97, %99 : vector<8x32xf32>
    %101 = arith.truncf %100 : vector<8x32xf32> to vector<8x32xbf16>
    %c0_31 = arith.constant 0 : index
    %c0_32 = arith.constant 0 : index
    %102 = vector.load %arg11[%c0_31, %c0_32] : memref<32x128xbf16, #tpu.memory_space<vmem>>, vector<32x128xbf16>
    %cst_33 = arith.constant dense<0.000000e+00> : vector<8x128xf32>
    %103 = tpu.matmul %101, %102, %cst_33 {dimension_numbers = #tpu.dot_dimension_numbers<[1], [0], [0], [1], [0, 0, 1, 1], [], []>} : vector<8x32xbf16>, vector<32x128xbf16>, vector<8x128xf32> -> vector<8x128xf32>
    %c0_34 = arith.constant 0 : index
    %c0_35 = arith.constant 0 : index
    %104 = vector.load %arg12[%c0_34, %c0_35] : memref<1x128xf32, #tpu.memory_space<vmem>>, vector<1x128xf32>
    %105 = vector.shape_cast %104 : vector<1x128xf32> to vector<128xf32>
    %106 = vector.shape_cast %105 : vector<128xf32> to vector<1x128xf32>
    %107 = vector.broadcast %106 : vector<1x128xf32> to vector<8x128xf32>
    %108 = arith.addf %103, %107 : vector<8x128xf32>
    %109 = arith.mulf %108, %108 : vector<8x128xf32>
    %110 = arith.mulf %108, %109 : vector<8x128xf32>
    %cst_36 = arith.constant 4.471500e-02 : f32
    %111 = vector.broadcast %cst_36 : f32 to vector<8x128xf32>
    %112 = arith.mulf %111, %110 : vector<8x128xf32>
    %113 = arith.addf %108, %112 : vector<8x128xf32>
    %cst_37 = arith.constant 0.797884583 : f32
    %114 = vector.broadcast %cst_37 : f32 to vector<8x128xf32>
    %115 = arith.mulf %114, %113 : vector<8x128xf32>
    %116 = math.tanh %115 : vector<8x128xf32>
    %cst_38 = arith.constant 1.000000e+00 : f32
    %117 = vector.broadcast %cst_38 : f32 to vector<8x128xf32>
    %118 = arith.addf %117, %116 : vector<8x128xf32>
    %cst_39 = arith.constant 5.000000e-01 : f32
    %119 = vector.broadcast %cst_39 : f32 to vector<8x128xf32>
    %120 = arith.mulf %119, %118 : vector<8x128xf32>
    %121 = arith.mulf %108, %120 : vector<8x128xf32>
    %122 = arith.truncf %121 : vector<8x128xf32> to vector<8x128xbf16>
    %c0_40 = arith.constant 0 : index
    %c0_41 = arith.constant 0 : index
    %123 = vector.load %arg13[%c0_40, %c0_41] : memref<128x32xbf16, #tpu.memory_space<vmem>>, vector<128x32xbf16>
    %cst_42 = arith.constant dense<0.000000e+00> : vector<8x32xf32>
    %124 = tpu.matmul %122, %123, %cst_42 {dimension_numbers = #tpu.dot_dimension_numbers<[1], [0], [0], [1], [0, 0, 1, 1], [], []>} : vector<8x128xbf16>, vector<128x32xbf16>, vector<8x32xf32> -> vector<8x32xf32>
    %c0_43 = arith.constant 0 : index
    %c0_44 = arith.constant 0 : index
    %125 = vector.load %arg14[%c0_43, %c0_44] : memref<1x32xf32, #tpu.memory_space<vmem>>, vector<1x32xf32>
    %126 = vector.shape_cast %125 : vector<1x32xf32> to vector<32xf32>
    %127 = vector.shape_cast %126 : vector<32xf32> to vector<1x32xf32>
    %128 = vector.broadcast %127 : vector<1x32xf32> to vector<8x32xf32>
    %129 = arith.addf %124, %128 : vector<8x32xf32>
    %130 = arith.addf %72, %129 : vector<8x32xf32>
    %c0_45 = arith.constant 0 : index
    %c0_46 = arith.constant 0 : index
    %c0_47 = arith.constant 0 : index
    %131 = vector.load %arg15[%c0_45, %c0_46, %c0_47] : memref<1x8x32xf32, #tpu.memory_space<vmem>>, vector<1x8x32xf32>
    %132 = vector.shape_cast %131 : vector<1x8x32xf32> to vector<8x32xf32>
    %133 = vector.shape_cast %130 : vector<8x32xf32> to vector<1x8x32xf32>
    tpu.vector_store %arg15[%c0_45, %c0_46, %c0_47], %133 {strides = array<i32>} : memref<1x8x32xf32, #tpu.memory_space<vmem>>, vector<1x8x32xf32>,
    return
  }
  func.func @transform_0(%arg0: i32, %arg1: i32) -> (i32, i32, i32) {
    %c0_i32 = arith.constant 0 : i32
    %c0_i32_0 = arith.constant 0 : i32
    %c0_i32_1 = arith.constant 0 : i32
    return %arg0, %c0_i32, %c0_i32_0 : i32, i32, i32
  }
  func.func @transform_1(%arg0: i32, %arg1: i32) -> (i32, i32) {
    %c0_i32 = arith.constant 0 : i32
    %c0_i32_0 = arith.constant 0 : i32
    %c0_i32_1 = arith.constant 0 : i32
    return %c0_i32, %c0_i32_0 : i32, i32
  }
  func.func @transform_2(%arg0: i32, %arg1: i32) -> (i32, i32) {
    %c0_i32 = arith.constant 0 : i32
    %c0_i32_0 = arith.constant 0 : i32
    %c0_i32_1 = arith.constant 0 : i32
    return %c0_i32, %c0_i32_0 : i32, i32
  }
  func.func @transform_3(%arg0: i32, %arg1: i32) -> (i32, i32) {
    %c0_i32 = arith.constant 0 : i32
    %c0_i32_0 = arith.constant 0 : i32
    %c0_i32_1 = arith.constant 0 : i32
    return %c0_i32, %c0_i32_0 : i32, i32
  }
  func.func @transform_4(%arg0: i32, %arg1: i32) -> (i32, i32) {
    %c0_i32 = arith.constant 0 : i32
    %c0_i32_0 = arith.constant 0 : i32
    %c0_i32_1 = arith.constant 0 : i32
    return %c0_i32, %c0_i32_0 : i32, i32
  }
  func.func @transform_5(%arg0: i32, %arg1: i32) -> (i32, i32) {
    %c0_i32 = arith.constant 0 : i32
    %c0_i32_0 = arith.constant 0 : i32
    %c0_i32_1 = arith.constant 0 : i32
    return %c0_i32, %c0_i32_0 : i32, i32
  }
  func.func @transform_6(%arg0: i32, %arg1: i32) -> (i32, i32) {
    %c0_i32 = arith.constant 0 : i32
    %c0_i32_0 = arith.constant 0 : i32
    %c0_i32_1 = arith.constant 0 : i32
    return %c0_i32, %c0_i32_0 : i32, i32
  }
  func.func @transform_7(%arg0: i32, %arg1: i32) -> (i32, i32) {
    %c0_i32 = arith.constant 0 : i32
    %c0_i32_0 = arith.constant 0 : i32
    %c0_i32_1 = arith.constant 0 : i32
    return %c0_i32, %c0_i32_0 : i32, i32
  }
  func.func @transform_8(%arg0: i32, %arg1: i32) -> (i32, i32) {
    %c0_i32 = arith.constant 0 : i32
    %c0_i32_0 = arith.constant 0 : i32
    %c0_i32_1 = arith.constant 0 : i32
    return %c0_i32, %c0_i32_0 : i32, i32
  }
  func.func @transform_9(%arg0: i32, %arg1: i32) -> (i32, i32) {
    %c0_i32 = arith.constant 0 : i32
    %c0_i32_0 = arith.constant 0 : i32
    %c0_i32_1 = arith.constant 0 : i32
    return %c0_i32, %c0_i32_0 : i32, i32
  }
  func.func @transform_10(%arg0: i32, %arg1: i32) -> (i32, i32) {
    %c0_i32 = arith.constant 0 : i32
    %c0_i32_0 = arith.constant 0 : i32
    %c0_i32_1 = arith.constant 0 : i32
    return %c0_i32, %c0_i32_0 : i32, i32
  }
  func.func @transform_11(%arg0: i32, %arg1: i32) -> (i32, i32) {
    %c0_i32 = arith.constant 0 : i32
    %c0_i32_0 = arith.constant 0 : i32
    %c0_i32_1 = arith.constant 0 : i32
    return %c0_i32, %c0_i32_0 : i32, i32
  }
  func.func @transform_12(%arg0: i32, %arg1: i32) -> (i32, i32) {
    %c0_i32 = arith.constant 0 : i32
    %c0_i32_0 = arith.constant 0 : i32
    %c0_i32_1 = arith.constant 0 : i32
    return %c0_i32, %c0_i32_0 : i32, i32
  }
  func.func @transform_13(%arg0: i32, %arg1: i32) -> (i32, i32, i32) {
    %c0_i32 = arith.constant 0 : i32
    %c0_i32_0 = arith.constant 0 : i32
    return %arg0, %arg1, %c0_i32 : i32, i32, i32
  }
}

</mosaic_0001>

<llo_original>
// kernel: tpu_custom_call.1
$region0: #{tpu_custom_call.1}
  #allocation0 [shape = 'u32[]', space=smem, size = 0x4, offset = 0x4, fixed_abs, tag = 'smem constant byte address 0x4 - core index']
  #allocation1 [shape = 'u32[144,128]{1,0:T(1,128)}', space=vmem, size = 0x12000, scoped, tag = 'internal scratch']
  #allocation2 [shape = 'bf16[4,8,8]{2,1,0:T(8,128)(2,1)}', space=vmem, size = 0x2000, scoped, tag = 'scratch operand']
  #allocation3 [shape = 'bf16[4,8,8]{2,1,0:T(8,128)(2,1)}', space=vmem, size = 0x2000, scoped, tag = 'scratch operand']
  #allocation4 [shape = 'bf16[4,8,8]{2,1,0:T(8,128)(2,1)}', space=vmem, size = 0x2000, scoped, tag = 'scratch operand']
  %s0 = inlined_call_operand.vmem [shape: f32[2,8,32], index: 0, kind: input, shape index: {}]
  %s1 = inlined_call_operand.vmem [shape: f32[1,32], index: 1, kind: input, shape index: {}]
  %s2 = inlined_call_operand.vmem [shape: f32[1,32], index: 2, kind: input, shape index: {}]
  %s3 = inlined_call_operand.vmem [shape: bf16[32,96], index: 3, kind: input, shape index: {}]
  %s4 = inlined_call_operand.vmem [shape: f32[1,96], index: 4, kind: input, shape index: {}]
  %s5 = inlined_call_operand.vmem [shape: bf16[32,32], index: 5, kind: input, shape index: {}]
  %s6 = inlined_call_operand.vmem [shape: f32[1,32], index: 6, kind: input, shape index: {}]
  %s7 = inlined_call_operand.vmem [shape: f32[1,32], index: 7, kind: input, shape index: {}]
  %s8 = inlined_call_operand.vmem [shape: f32[1,32], index: 8, kind: input, shape index: {}]
  %s9 = inlined_call_operand.vmem [shape: bf16[32,128], index: 9, kind: input, shape index: {}]
  %s10 = inlined_call_operand.vmem [shape: f32[1,128], index: 10, kind: input, shape index: {}]
  %s11 = inlined_call_operand.vmem [shape: bf16[128,32], index: 11, kind: input, shape index: {}]
  %s12 = inlined_call_operand.vmem [shape: f32[1,32], index: 12, kind: input, shape index: {}]
  %s13 = inlined_call_operand.hbm [shape: f32[2,8,32], index: 13, kind: output, shape index: {}]
  %s14 = sld [smem:[#allocation0]]
  $region96: #{tpu_custom_call.1} parent=0
    _
  %s16 = ssub.s32 1, %s14
  %s17 = scalar_select 0, %s16, %s14
  $region1: #{tpu_custom_call.1} parent=0
    #allocation5 [shape = 'u8[8192]{0}', space=vmem, size = 0x2000, scoped, tag = 'output window, operand 0']
    #allocation6 [shape = 's32[2]{0}', space=sflag, size = 0x8, scoped, tag = 'scoped memory for tpu_custom_call.1']
    %18 = vsyncpa [#allocation6], 0
    %s19 = scalar_lea.sflag [#allocation6], 1
    %20 = vsyncpa %s19, 0
    loop: start=0, step=1, limit=4
    $region2: #{tpu_custom_call.1} parent=1 // loop_pre_header
      _
    $region3: #{tpu_custom_call.1} parent=1 // loop_header
      %s22 = sphi 0, %s26
      %p23 = scmp.ge.s32.totalorder %s22, 4
      %s29 = sphi 0, %s41
      %s30 = sphi 0, %s37
      %s31 = sphi 0, %s29
      %s32 = sphi 0, %s30
      %s33 = sphi 0, %s31
      %s34 = sphi 0, %s32
      %s44 = sphi 0, %s46
      %s47 = sphi 0, %s44
      %s48 = sphi 0, %s47
      %s64 = sphi 0, %s48
      %s68 = sphi 0, %s68
      %s70 = sphi 0, %s68
      %s71 = sphi 0, %s70
      %s85 = sphi 0, %s71
      %s89 = sphi 0, %s89
      %s91 = sphi 0, %s89
      %s92 = sphi 0, %s91
      %s106 = sphi 0, %s92
      %s110 = sphi 0, %s110
      %s112 = sphi 0, %s110
      %s113 = sphi 0, %s112
      %s127 = sphi 0, %s113
      %s131 = sphi 0, %s131
      %s133 = sphi 0, %s131
      %s134 = sphi 0, %s133
      %s148 = sphi 0, %s134
      %s152 = sphi 0, %s152
      %s154 = sphi 0, %s152
      %s155 = sphi 0, %s154
      %s169 = sphi 0, %s155
      %s173 = sphi 0, %s173
      %s175 = sphi 0, %s173
      %s176 = sphi 0, %s175
      %s190 = sphi 0, %s176
      %s194 = sphi 0, %s194
      %s196 = sphi 0, %s194
      %s197 = sphi 0, %s196
      %s211 = sphi 0, %s197
      %s215 = sphi 0, %s215
      %s217 = sphi 0, %s215
      %s218 = sphi 0, %s217
      %s232 = sphi 0, %s218
      %s236 = sphi 0, %s236
      %s238 = sphi 0, %s236
      %s239 = sphi 0, %s238
      %s253 = sphi 0, %s239
      %s257 = sphi 0, %s257
      %s259 = sphi 0, %s257
      %s260 = sphi 0, %s259
      %s274 = sphi 0, %s260
      %s278 = sphi 0, %s278
      %s280 = sphi 0, %s278
      %s281 = sphi 0, %s280
      %s295 = sphi 0, %s281
      %s299 = sphi 0, %s299
      %s301 = sphi 0, %s299
      %s302 = sphi 0, %s301
      %s316 = sphi 0, %s302
      %s324 = sphi 0, %s326
      %s327 = sphi 0, %s324
      %s328 = sphi 0, %s327
      %s344 = sphi 0, %s328
    $region4: #{tpu_custom_call.1} parent=1 // loop_header_branch
      %25 = sbr.rel (%p23) target = $region8
    $region5: #{tpu_custom_call.1} parent=1 // loop_body
      %s27 = ssub.s32 %s22, 1
      %s28 = ssub.s32 %s22, 2
      %s35 = sadd.s32 1, %s30
      %p36 = scmp.ge.s32.totalorder %s35, 1
      %s37 = scalar_select %p36, 0, %s35
      %s38 = sadd.s32 1, %s29
      %s39 = scalar_select %p36, %s38, %s29
      %p40 = scmp.ge.s32.totalorder %s39, 2
      %s41 = scalar_select %p40, 0, %s39
      %s42 = ssub.s32 %s29, %s41
      %p43 = scmp.eq.s32.totalorder %s42, 0
      %s45 = sadd.s32 %s44, 1
      %s46 = scalar_select %p43, %s44, %s45
      %p49 = pneg %p43
      %p50 = scmp.eq.s32.totalorder %s22, 1
      %p51 = por %p49, %p50
      %p52 = scmp.ne.s32.totalorder %s44, %s47
      %p53 = scmp.eq.s32.totalorder %s22, 0
      %p54 = por %p52, %p53
      %p55 = scmp.ne.s32.totalorder %s44, %s47
      %p56 = scmp.eq.s32.totalorder %s27, 1
      %p57 = por %p55, %p56
      %p58 = scmp.ne.s32.totalorder %s47, %s48
      %p59 = scmp.eq.s32.totalorder %s27, 0
      %p60 = por %p58, %p59
      %p61 = scmp.ne.s32.totalorder %s47, %s48
      %p62 = scmp.eq.s32.totalorder %s28, 1
      %p63 = por %p61, %p62
      %p65 = scmp.ne.s32.totalorder %s48, %s64
      %p66 = scmp.eq.s32.totalorder %s28, 0
      %p67 = por %p65, %p66
      %s69 = sadd.s32 %s68, 1
      %p72 = scmp.eq.s32.totalorder %s22, 1
      %p73 = scmp.ne.s32.totalorder %s68, %s70
      %p74 = scmp.eq.s32.totalorder %s22, 0
      %p75 = por %p73, %p74
      %p76 = scmp.ne.s32.totalorder %s68, %s70
      %p77 = scmp.eq.s32.totalorder %s27, 1
      %p78 = por %p76, %p77
      %p79 = scmp.ne.s32.totalorder %s70, %s71
      %p80 = scmp.eq.s32.totalorder %s27, 0
      %p81 = por %p79, %p80
      %p82 = scmp.ne.s32.totalorder %s70, %s71
      %p83 = scmp.eq.s32.totalorder %s28, 1
      %p84 = por %p82, %p83
      %p86 = scmp.ne.s32.totalorder %s71, %s85
      %p87 = scmp.eq.s32.totalorder %s28, 0
      %p88 = por %p86, %p87
      %s90 = sadd.s32 %s89, 1
      %p93 = scmp.eq.s32.totalorder %s22, 1
      %p94 = scmp.ne.s32.totalorder %s89, %s91
      %p95 = scmp.eq.s32.totalorder %s22, 0
      %p96 = por %p94, %p95
      %p97 = scmp.ne.s32.totalorder %s89, %s91
      %p98 = scmp.eq.s32.totalorder %s27, 1
      %p99 = por %p97, %p98
      %p100 = scmp.ne.s32.totalorder %s91, %s92
      %p101 = scmp.eq.s32.totalorder %s27, 0
      %p102 = por %p100, %p101
      %p103 = scmp.ne.s32.totalorder %s91, %s92
      %p104 = scmp.eq.s32.totalorder %s28, 1
      %p105 = por %p103, %p104
      %p107 = scmp.ne.s32.totalorder %s92, %s106
      %p108 = scmp.eq.s32.totalorder %s28, 0
      %p109 = por %p107, %p108
      %s111 = sadd.s32 %s110, 1
      %p114 = scmp.eq.s32.totalorder %s22, 1
      %p115 = scmp.ne.s32.totalorder %s110, %s112
      %p116 = scmp.eq.s32.totalorder %s22, 0
      %p117 = por %p115, %p116
      %p118 = scmp.ne.s32.totalorder %s110, %s112
      %p119 = scmp.eq.s32.totalorder %s27, 1
      %p120 = por %p118, %p119
      %p121 = scmp.ne.s32.totalorder %s112, %s113
      %p122 = scmp.eq.s32.totalorder %s27, 0
      %p123 = por %p121, %p122
      %p124 = scmp.ne.s32.totalorder %s112, %s113
      %p125 = scmp.eq.s32.totalorder %s28, 1
      %p126 = por %p124, %p125
      %p128 = scmp.ne.s32.totalorder %s113, %s127
      %p129 = scmp.eq.s32.totalorder %s28, 0
      %p130 = por %p128, %p129
      %s132 = sadd.s32 %s131, 1
      %p135 = scmp.eq.s32.totalorder %s22, 1
      %p136 = scmp.ne.s32.totalorder %s131, %s133
      %p137 = scmp.eq.s32.totalorder %s22, 0
      %p138 = por %p136, %p137
      %p139 = scmp.ne.s32.totalorder %s131, %s133
      %p140 = scmp.eq.s32.totalorder %s27, 1
      %p141 = por %p139, %p140
      %p142 = scmp.ne.s32.totalorder %s133, %s134
      %p143 = scmp.eq.s32.totalorder %s27, 0
      %p144 = por %p142, %p143
      %p145 = scmp.ne.s32.totalorder %s133, %s134
      %p146 = scmp.eq.s32.totalorder %s28, 1
      %p147 = por %p145, %p146
      %p149 = scmp.ne.s32.totalorder %s134, %s148
      %p150 = scmp.eq.s32.totalorder %s28, 0
      %p151 = por %p149, %p150
      %s153 = sadd.s32 %s152, 1
      %p156 = scmp.eq.s32.totalorder %s22, 1
      %p157 = scmp.ne.s32.totalorder %s152, %s154
      %p158 = scmp.eq.s32.totalorder %s22, 0
      %p159 = por %p157, %p158
      %p160 = scmp.ne.s32.totalorder %s152, %s154
      %p161 = scmp.eq.s32.totalorder %s27, 1
      %p162 = por %p160, %p161
      %p163 = scmp.ne.s32.totalorder %s154, %s155
      %p164 = scmp.eq.s32.totalorder %s27, 0
      %p165 = por %p163, %p164
      %p166 = scmp.ne.s32.totalorder %s154, %s155
      %p167 = scmp.eq.s32.totalorder %s28, 1
      %p168 = por %p166, %p167
      %p170 = scmp.ne.s32.totalorder %s155, %s169
      %p171 = scmp.eq.s32.totalorder %s28, 0
      %p172 = por %p170, %p171
      %s174 = sadd.s32 %s173, 1
      %p177 = scmp.eq.s32.totalorder %s22, 1
      %p178 = scmp.ne.s32.totalorder %s173, %s175
      %p179 = scmp.eq.s32.totalorder %s22, 0
      %p180 = por %p178, %p179
      %p181 = scmp.ne.s32.totalorder %s173, %s175
      %p182 = scmp.eq.s32.totalorder %s27, 1
      %p183 = por %p181, %p182
      %p184 = scmp.ne.s32.totalorder %s175, %s176
      %p185 = scmp.eq.s32.totalorder %s27, 0
      %p186 = por %p184, %p185
      %p187 = scmp.ne.s32.totalorder %s175, %s176
      %p188 = scmp.eq.s32.totalorder %s28, 1
      %p189 = por %p187, %p188
      %p191 = scmp.ne.s32.totalorder %s176, %s190
      %p192 = scmp.eq.s32.totalorder %s28, 0
      %p193 = por %p191, %p192
      %s195 = sadd.s32 %s194, 1
      %p198 = scmp.eq.s32.totalorder %s22, 1
      %p199 = scmp.ne.s32.totalorder %s194, %s196
      %p200 = scmp.eq.s32.totalorder %s22, 0
      %p201 = por %p199, %p200
      %p202 = scmp.ne.s32.totalorder %s194, %s196
      %p203 = scmp.eq.s32.totalorder %s27, 1
      %p204 = por %p202, %p203
      %p205 = scmp.ne.s32.totalorder %s196, %s197
      %p206 = scmp.eq.s32.totalorder %s27, 0
      %p207 = por %p205, %p206
      %p208 = scmp.ne.s32.totalorder %s196, %s197
      %p209 = scmp.eq.s32.totalorder %s28, 1
      %p210 = por %p208, %p209
      %p212 = scmp.ne.s32.totalorder %s197, %s211
      %p213 = scmp.eq.s32.totalorder %s28, 0
      %p214 = por %p212, %p213
      %s216 = sadd.s32 %s215, 1
      %p219 = scmp.eq.s32.totalorder %s22, 1
      %p220 = scmp.ne.s32.totalorder %s215, %s217
      %p221 = scmp.eq.s32.totalorder %s22, 0
      %p222 = por %p220, %p221
      %p223 = scmp.ne.s32.totalorder %s215, %s217
      %p224 = scmp.eq.s32.totalorder %s27, 1
      %p225 = por %p223, %p224
      %p226 = scmp.ne.s32.totalorder %s217, %s218
      %p227 = scmp.eq.s32.totalorder %s27, 0
      %p228 = por %p226, %p227
      %p229 = scmp.ne.s32.totalorder %s217, %s218
      %p230 = scmp.eq.s32.totalorder %s28, 1
      %p231 = por %p229, %p230
      %p233 = scmp.ne.s32.totalorder %s218, %s232
      %p234 = scmp.eq.s32.totalorder %s28, 0
      %p235 = por %p233, %p234
      %s237 = sadd.s32 %s236, 1
      %p240 = scmp.eq.s32.totalorder %s22, 1
      %p241 = scmp.ne.s32.totalorder %s236, %s238
      %p242 = scmp.eq.s32.totalorder %s22, 0
      %p243 = por %p241, %p242
      %p244 = scmp.ne.s32.totalorder %s236, %s238
      %p245 = scmp.eq.s32.totalorder %s27, 1
      %p246 = por %p244, %p245
      %p247 = scmp.ne.s32.totalorder %s238, %s239
      %p248 = scmp.eq.s32.totalorder %s27, 0
      %p249 = por %p247, %p248
      %p250 = scmp.ne.s32.totalorder %s238, %s239
      %p251 = scmp.eq.s32.totalorder %s28, 1
      %p252 = por %p250, %p251
      %p254 = scmp.ne.s32.totalorder %s239, %s253
      %p255 = scmp.eq.s32.totalorder %s28, 0
      %p256 = por %p254, %p255
      %s258 = sadd.s32 %s257, 1
      %p261 = scmp.eq.s32.totalorder %s22, 1
      %p262 = scmp.ne.s32.totalorder %s257, %s259
      %p263 = scmp.eq.s32.totalorder %s22, 0
      %p264 = por %p262, %p263
      %p265 = scmp.ne.s32.totalorder %s257, %s259
      %p266 = scmp.eq.s32.totalorder %s27, 1
      %p267 = por %p265, %p266
      %p268 = scmp.ne.s32.totalorder %s259, %s260
      %p269 = scmp.eq.s32.totalorder %s27, 0
      %p270 = por %p268, %p269
      %p271 = scmp.ne.s32.totalorder %s259, %s260
      %p272 = scmp.eq.s32.totalorder %s28, 1
      %p273 = por %p271, %p272
      %p275 = scmp.ne.s32.totalorder %s260, %s274
      %p276 = scmp.eq.s32.totalorder %s28, 0
      %p277 = por %p275, %p276
      %s279 = sadd.s32 %s278, 1
      %p282 = scmp.eq.s32.totalorder %s22, 1
      %p283 = scmp.ne.s32.totalorder %s278, %s280
      %p284 = scmp.eq.s32.totalorder %s22, 0
      %p285 = por %p283, %p284
      %p286 = scmp.ne.s32.totalorder %s278, %s280
      %p287 = scmp.eq.s32.totalorder %s27, 1
      %p288 = por %p286, %p287
      %p289 = scmp.ne.s32.totalorder %s280, %s281
      %p290 = scmp.eq.s32.totalorder %s27, 0
      %p291 = por %p289, %p290
      %p292 = scmp.ne.s32.totalorder %s280, %s281
      %p293 = scmp.eq.s32.totalorder %s28, 1
      %p294 = por %p292, %p293
      %p296 = scmp.ne.s32.totalorder %s281, %s295
      %p297 = scmp.eq.s32.totalorder %s28, 0
      %p298 = por %p296, %p297
      %s300 = sadd.s32 %s299, 1
      %p303 = scmp.eq.s32.totalorder %s22, 1
      %p304 = scmp.ne.s32.totalorder %s299, %s301
      %p305 = scmp.eq.s32.totalorder %s22, 0
      %p306 = por %p304, %p305
      %p307 = scmp.ne.s32.totalorder %s299, %s301
      %p308 = scmp.eq.s32.totalorder %s27, 1
      %p309 = por %p307, %p308
      %p310 = scmp.ne.s32.totalorder %s301, %s302
      %p311 = scmp.eq.s32.totalorder %s27, 0
      %p312 = por %p310, %p311
      %p313 = scmp.ne.s32.totalorder %s301, %s302
      %p314 = scmp.eq.s32.totalorder %s28, 1
      %p315 = por %p313, %p314
      %p317 = scmp.ne.s32.totalorder %s302, %s316
      %p318 = scmp.eq.s32.totalorder %s28, 0
      %p319 = por %p317, %p318
      %s320 = ssub.s32 %s29, %s41
      %s321 = ssub.s32 %s30, %s37
      %s322 = sor.u32 %s320, %s321
      %p323 = scmp.eq.s32.totalorder %s322, 0
      %s325 = sadd.s32 %s324, 1
      %s326 = scalar_select %p323, %s324, %s325
      %p329 = pneg %p323
      %p330 = scmp.eq.s32.totalorder %s22, 1
      %p331 = por %p329, %p330
      %p332 = scmp.ne.s32.totalorder %s324, %s327
      %p333 = scmp.eq.s32.totalorder %s22, 0
      %p334 = por %p332, %p333
      %p335 = scmp.ne.s32.totalorder %s324, %s327
      %p336 = scmp.eq.s32.totalorder %s27, 1
      %p337 = por %p335, %p336
      %p338 = scmp.ne.s32.totalorder %s327, %s328
      %p339 = scmp.eq.s32.totalorder %s27, 0
      %p340 = por %p338, %p339
      %p341 = scmp.ne.s32.totalorder %s327, %s328
      %p342 = scmp.eq.s32.totalorder %s28, 1
      %p343 = por %p341, %p342
      %p345 = scmp.ne.s32.totalorder %s328, %s344
      %p346 = scmp.eq.s32.totalorder %s28, 0
      %p347 = por %p345, %p346
      %p348 = scmp.le.s32.totalorder 1, %s22
      %p349 = scmp.lt.s32.totalorder %s22, 3
      %p350 = pnand %p348, %p349
      %p351 = pneg %p350
      // Predicated region
      $region9: #{tpu_custom_call.1} parent=5 // pred_check
        _
      $region10: #{tpu_custom_call.1} parent=5 // pred_check_branch
        %353 = sbr.rel (%p350) target = $region12
      $region11: #{tpu_custom_call.1} parent=5 // pred_region
        %s354 = ssub.s32 %s22, 1
        // Predicated region
        $region13: #{tpu_custom_call.1} parent=11 // pred_check
          %p355 = pneg %p81
        $region14: #{tpu_custom_call.1} parent=11 // pred_check_branch
          %357 = sbr.rel (%p355) target = $region16
        $region15: #{tpu_custom_call.1} parent=11 // pred_region
          _
        $region16: #{tpu_custom_call.1} parent=11 // pred_fallthru
          _
        // Predicated region
        $region17: #{tpu_custom_call.1} parent=11 // pred_check
          %p358 = pneg %p102
        $region18: #{tpu_custom_call.1} parent=11 // pred_check_branch
          %360 = sbr.rel (%p358) target = $region20
        $region19: #{tpu_custom_call.1} parent=11 // pred_region
          _
        $region20: #{tpu_custom_call.1} parent=11 // pred_fallthru
          _
        // Predicated region
        $region21: #{tpu_custom_call.1} parent=11 // pred_check
          %p361 = pneg %p123
        $region22: #{tpu_custom_call.1} parent=11 // pred_check_branch
          %363 = sbr.rel (%p361) target = $region24
        $region23: #{tpu_custom_call.1} parent=11 // pred_region
          _
        $region24: #{tpu_custom_call.1} parent=11 // pred_fallthru
          _
        // Predicated region
        $region25: #{tpu_custom_call.1} parent=11 // pred_check
          %p364 = pneg %p144
        $region26: #{tpu_custom_call.1} parent=11 // pred_check_branch
          %366 = sbr.rel (%p364) target = $region28
        $region27: #{tpu_custom_call.1} parent=11 // pred_region
          _
        $region28: #{tpu_custom_call.1} parent=11 // pred_fallthru
          _
        // Predicated region
        $region29: #{tpu_custom_call.1} parent=11 // pred_check
          %p367 = pneg %p165
        $region30: #{tpu_custom_call.1} parent=11 // pred_check_branch
          %369 = sbr.rel (%p367) target = $region32
        $region31: #{tpu_custom_call.1} parent=11 // pred_region
          _
        $region32: #{tpu_custom_call.1} parent=11 // pred_fallthru
          _
        // Predicated region
        $region33: #{tpu_custom_call.1} parent=11 // pred_check
          %p370 = pneg %p186
        $region34: #{tpu_custom_call.1} parent=11 // pred_check_branch
          %372 = sbr.rel (%p370) target = $region36
        $region35: #{tpu_custom_call.1} parent=11 // pred_region
          _
        $region36: #{tpu_custom_call.1} parent=11 // pred_fallthru
          _
        // Predicated region
        $region37: #{tpu_custom_call.1} parent=11 // pred_check
          %p373 = pneg %p207
        $region38: #{tpu_custom_call.1} parent=11 // pred_check_branch
          %375 = sbr.rel (%p373) target = $region40
        $region39: #{tpu_custom_call.1} parent=11 // pred_region
          _
        $region40: #{tpu_custom_call.1} parent=11 // pred_fallthru
          _
        // Predicated region
        $region41: #{tpu_custom_call.1} parent=11 // pred_check
          %p376 = pneg %p228
        $region42: #{tpu_custom_call.1} parent=11 // pred_check_branch
          %378 = sbr.rel (%p376) target = $region44
        $region43: #{tpu_custom_call.1} parent=11 // pred_region
          _
        $region44: #{tpu_custom_call.1} parent=11 // pred_fallthru
          _
        // Predicated region
        $region45: #{tpu_custom_call.1} parent=11 // pred_check
          %p379 = pneg %p249
        $region46: #{tpu_custom_call.1} parent=11 // pred_check_branch
          %381 = sbr.rel (%p379) target = $region48
        $region47: #{tpu_custom_call.1} parent=11 // pred_region
          _
        $region48: #{tpu_custom_call.1} parent=11 // pred_fallthru
          _
        // Predicated region
        $region49: #{tpu_custom_call.1} parent=11 // pred_check
          %p382 = pneg %p270
        $region50: #{tpu_custom_call.1} parent=11 // pred_check_branch
          %384 = sbr.rel (%p382) target = $region52
        $region51: #{tpu_custom_call.1} parent=11 // pred_region
          _
        $region52: #{tpu_custom_call.1} parent=11 // pred_fallthru
          _
        // Predicated region
        $region53: #{tpu_custom_call.1} parent=11 // pred_check
          %p385 = pneg %p291
        $region54: #{tpu_custom_call.1} parent=11 // pred_check_branch
          %387 = sbr.rel (%p385) target = $region56
        $region55: #{tpu_custom_call.1} parent=11 // pred_region
          _
        $region56: #{tpu_custom_call.1} parent=11 // pred_fallthru
          _
        // Predicated region
        $region57: #{tpu_custom_call.1} parent=11 // pred_check
          %p388 = pneg %p312
        $region58: #{tpu_custom_call.1} parent=11 // pred_check_branch
          %390 = sbr.rel (%p388) target = $region60
        $region59: #{tpu_custom_call.1} parent=11 // pred_region
          _
        $region60: #{tpu_custom_call.1} parent=11 // pred_fallthru
          _
      $region12: #{tpu_custom_call.1} parent=5 // pred_fallthru
        _
      %p391 = scmp.lt.s32.totalorder %s22, 2
      // Predicated region
      $region61: #{tpu_custom_call.1} parent=5 // pred_check
        %p392 = pneg %p391
      $region62: #{tpu_custom_call.1} parent=5 // pred_check_branch
        %394 = sbr.rel (%p392) target = $region64
      $region63: #{tpu_custom_call.1} parent=5 // pred_region
        // Predicated region
        $region65: #{tpu_custom_call.1} parent=63 // pred_check
          %p395 = pneg %p54
        $region66: #{tpu_custom_call.1} parent=63 // pred_check_branch
          %397 = sbr.rel (%p395) target = $region68
        $region67: #{tpu_custom_call.1} parent=63 // pred_region
          %p398 = scmp.lt.s32.totalorder %s29, 1
          %s399 = scalar_select %p398, %s29, 1
          %s400 = smul.addr %s399, 8
          %s401 = scalar_lea.vmem %s0, %s400
        $region68: #{tpu_custom_call.1} parent=63 // pred_fallthru
          _
      $region64: #{tpu_custom_call.1} parent=5 // pred_fallthru
        _
      %p402 = scmp.le.s32.totalorder 1, %s22
      %p403 = scmp.lt.s32.totalorder %s22, 3
      %p404 = pnand %p402, %p403
      %p405 = pneg %p404
      // Predicated region
      $region69: #{tpu_custom_call.1} parent=5 // pred_check
        _
      $region70: #{tpu_custom_call.1} parent=5 // pred_check_branch
        %407 = sbr.rel (%p404) target = $region72
      $region71: #{tpu_custom_call.1} parent=5 // pred_region
        %s408 = ssub.s32 %s22, 1
        %p409 = scmp.lt.s32.totalorder %s31, 1
        %s410 = scalar_select %p409, %s31, 1
        %s411 = smul.addr %s410, 8
        %s412 = scalar_lea.vmem %s0, %s411
        %p413 = pneg %p60
        %p414 = pneg %p57
        %p415 = pneg %p81
        %p416 = pneg %p78
        %p417 = pneg %p102
        %p418 = pneg %p99
        %p419 = pneg %p123
        %p420 = pneg %p120
        %p421 = pneg %p144
        %p422 = pneg %p141
        %p423 = pneg %p165
        %p424 = pneg %p162
        %p425 = pneg %p186
        %p426 = pneg %p183
        %p427 = pneg %p207
        %p428 = pneg %p204
        %p429 = pneg %p228
        %p430 = pneg %p225
        %p431 = pneg %p249
        %p432 = pneg %p246
        %p433 = pneg %p270
        %p434 = pneg %p267
        %p435 = pneg %p291
        %p436 = pneg %p288
        %p437 = pneg %p312
        %p438 = pneg %p309
        %p439 = pneg %p340
        %p440 = pneg %p337
        %s441 = sand.u32 %s327, 1
        %s442 = scalar_lea.sflag [#allocation6], %s441
        %s443 = sand.u32 %s327, 1
        %s444 = smul.addr %s443, 8
        %s445 = scalar_lea.vmem [#allocation5], %s444
        %p446 = scmp.lt.s32.totalorder %s31, 1
        %s447 = scalar_select %p446, %s31, 1
        %s448 = smul.addr %s447, 8
        %s449 = scalar_lea.vmem %s0, %s448
        %p451 = scmp.eq.s32.totalorder %s32, 0
        // Predicated region
        $region73: #{tpu_custom_call.1} parent=71 // pred_check
          %p452 = pneg %p451
        $region74: #{tpu_custom_call.1} parent=71 // pred_check_branch
          %454 = sbr.rel (%p452) target = $region76
        $region75: #{tpu_custom_call.1} parent=71 // pred_region
          %v455 = vld [vmem:[%s449] sm:$0xff]
          %v456 = vld [vmem:[%s1] sm:$0x1]
          %v457 = vld [vmem:[%s2] sm:$0x1]
          %vm458 = vcmask 261120
          %v459 = vsel %vm458, %v455, 0.0
          %460 = vadd.xlane.f32.xlu0 %v459
          %v461 = vpop.xlane.xlu0 %460
          %v462 = vrcp.pop 32.0
          %v463 = vmul.f32 %v461, %v462
          %v464 = vsub.f32 %v455, %v463
          %v465 = vmul.f32 %v464, %v464
          %v466 = vsel %vm458, %v465, 0.0
          %467 = vadd.xlane.f32.xlu0 %v466
          %v468 = vpop.xlane.xlu0 %467
          %v469 = vmul.f32 %v468, %v462
          %v470 = vadd.f32 %v469, 1e-05
          %v471 = vrsqrt.pop %v470
          %v472 = vmul.f32 %v464, %v471
          %v474 = vlaneseq
          %v475 = vshrl.u32 %v474, 7
          %v476 = vsub.s32 0, %v475
          %v477 = vrot.slane %v456, %v476
          %v479 = vmul.f32 %v472, %v477
          %v481 = vlaneseq
          %v482 = vshrl.u32 %v481, 7
          %v483 = vsub.s32 0, %v482
          %v484 = vrot.slane %v457, %v483
          %v486 = vadd.f32 %v479, %v484
          %v487 = vpack.c.bf16 %v486, %v486
          %v488 = vld [vmem:[%s3] sm:$0xf]
          %v489 = vld [vmem:[%s3 + $0x4] sm:$0xf]
          %v490 = vld [vmem:[%s3 + $0x8] sm:$0xf]
          %v491 = vld [vmem:[%s3 + $0xc] sm:$0xf]
          %v492 = vld [vmem:[%s4] sm:$0x1]
          %v494 = vlaneseq
          %v495 = vshrl.u32 %v494, 7
          %v496 = vsub.s32 0, %v495
          %v497 = vrot.slane %v492, %v496
          %v503 = vunpack.c.l.b16 %v488
          %v504 = vunpack.c.l.b16 %v489
          %v505 = vunpack.c.l.b16 %v490
          %v506 = vunpack.c.l.b16 %v491
          %v507 = vpack.c.b16 %v504, %v503
          %v508 = vpack.c.b16 %v506, %v505
          %v512 = vsel %vm458, %v487, 0
          %514 = vmatprep.subr.bf16.mxu0 0
          %515 = vmatpush1.bf16.msra.mxu0 0
          %516 = vmatprep.subr.bf16.mxu0 0
          %517 = vmatpush1.bf16.msra.mxu0 0
          %518 = vmatprep.subr.bf16.mxu0 0
          %519 = vmatpush1.bf16.msra.mxu0 0
          %520 = vmatprep.subr.bf16.mxu0 0
          %521 = vmatpush1.bf16.msra.mxu0 0
          %522 = vmatprep.subr.bf16.mxu0 0
          %523 = vmatpush1.bf16.msra.mxu0 0
          %524 = vmatprep.subr.bf16.mxu0 0
          %525 = vmatpush1.bf16.msra.mxu0 0
          %526 = vmatprep.subr.bf16.mxu0 0
          %527 = vmatpush1.bf16.msra.mxu0 %v508
          %528 = vmatprep.subr.bf16.mxu0 0
          %529 = vmatpush1.bf16.msra.mxu0 %v507
          %530 = vmatprep.subr.bf16.mxu0 0
          %531 = vmatpush2.bf16.msra.mxu0 0
          %532 = vmatprep.subr.bf16.mxu0 0
          %533 = vmatpush2.bf16.msra.mxu0 0
          %534 = vmatprep.subr.bf16.mxu0 0
          %535 = vmatpush2.bf16.msra.mxu0 0
          %536 = vmatprep.subr.bf16.mxu0 0
          %537 = vmatpush2.bf16.msra.mxu0 0
          %538 = vmatprep.subr.bf16.mxu0 0
          %539 = vmatpush2.bf16.msra.mxu0 0
          %540 = vmatprep.subr.bf16.mxu0 0
          %541 = vmatpush2.bf16.msra.mxu0 0
          %542 = vmatprep.subr.bf16.mxu0 0
          %543 = vmatpush2.bf16.msra.mxu0 0
          %544 = vmatprep.subr.bf16.mxu0 0
          %545 = vmatpush2.bf16.msra.mxu0 0
          %546 = vmatprep.mubr.bf16.mxu0 0
          %547 = vmatmul.mubr.bf16.gmra.mxu0 %v512
          %v548 = vpop.f32.mrf.mxu0
          %v549 = vadd.f32 %v497, %v548
          %v550 = vpop.f32.mrf.mxu0
          %v551 = vpop.f32.mrf.mxu0
          %v552 = vpop.f32.mrf.mxu0
          %553 = vdwg.mxu0
          %v554 = vpack.c.bf16 %v549, %v549
          %vm555 = vcmask 60416
          %556 = vst.msk [vmem:[#allocation2] sm:$0xf] %vm555, %v554
          %v558 = vunpack.c.l.b16 %v554
          %v559 = vpack.c.b16 %v558, %v558
          %560 = vrot.lane.b32.xlu0 %v559, 96
          %v561 = vpop.permute.xlu0 %560
          %563 = vst.msk [vmem:[#allocation3] sm:$0xf] %vm555, %v561
          %564 = vrot.lane.b32.xlu0 %v559, 64
          %v565 = vpop.permute.xlu0 %564
          %567 = vst.msk [vmem:[#allocation4] sm:$0xf] %vm555, %v565
          %568 = vrot.lane.b32.xlu0 %v559, 120
          %v569 = vpop.permute.xlu0 %568
          %s571 = scalar_lea.vmem [#allocation2], 4
          %572 = vst.msk [vmem:[%s571] sm:$0xf] %vm555, %v569
          %573 = vrot.lane.b32.xlu0 %v559, 88
          %v574 = vpop.permute.xlu0 %573
          %s576 = scalar_lea.vmem [#allocation3], 4
          %577 = vst.msk [vmem:[%s576] sm:$0xf] %vm555, %v574
          %578 = vrot.lane.b32.xlu0 %v559, 56
          %v579 = vpop.permute.xlu0 %578
          %s581 = scalar_lea.vmem [#allocation4], 4
          %582 = vst.msk [vmem:[%s581] sm:$0xf] %vm555, %v579
          %583 = vrot.lane.b32.xlu0 %v559, 112
          %v584 = vpop.permute.xlu0 %583
          %s586 = scalar_lea.vmem [#allocation2], 8
          %587 = vst.msk [vmem:[%s586] sm:$0xf] %vm555, %v584
          %588 = vrot.lane.b32.xlu0 %v559, 80
          %v589 = vpop.permute.xlu0 %588
          %s591 = scalar_lea.vmem [#allocation3], 8
          %592 = vst.msk [vmem:[%s591] sm:$0xf] %vm555, %v589
          %593 = vrot.lane.b32.xlu0 %v559, 48
          %v594 = vpop.permute.xlu0 %593
          %s596 = scalar_lea.vmem [#allocation4], 8
          %597 = vst.msk [vmem:[%s596] sm:$0xf] %vm555, %v594
          %598 = vrot.lane.b32.xlu0 %v559, 104
          %v599 = vpop.permute.xlu0 %598
          %s601 = scalar_lea.vmem [#allocation2], 12
          %602 = vst.msk [vmem:[%s601] sm:$0xf] %vm555, %v599
          %603 = vrot.lane.b32.xlu0 %v559, 72
          %v604 = vpop.permute.xlu0 %603
          %s606 = scalar_lea.vmem [#allocation3], 12
          %607 = vst.msk [vmem:[%s606] sm:$0xf] %vm555, %v604
          %608 = vrot.lane.b32.xlu0 %v559, 40
          %v609 = vpop.permute.xlu0 %608
          %s611 = scalar_lea.vmem [#allocation4], 12
          %612 = vst.msk [vmem:[%s611] sm:$0xf] %vm555, %v609
        $region76: #{tpu_custom_call.1} parent=71 // pred_fallthru
          _
        %s613 = smul.u32 %s32, 8
        %s614 = sshra.s32 %s613, 3
        %s615 = sand.u32 %s613, 7
        %s616 = smul.addr %s614, 4
        %s617 = scalar_lea.vmem [#allocation2], %s616
        %v618 = vld [vmem:[%s617] sm:$0xf]
        %v619 = vld [vmem:[%s617 + $0x4] sm:$0xf]
        %v620 = vld [vmem:[%s617 + $0x8] sm:$0xf]
        %v621 = vld [vmem:[%s617 + $0xc] sm:$0xf]
        // While loop
        $region77: #{tpu_custom_call.1} parent=71 // loop_pre_header
          _
        $region78: #{tpu_custom_call.1} parent=71 // loop_header
          %s623 = sphi 0, %s625
          %p624 = scmp.ge.s32.totalorder %s623, %s32
          %v628 = vphi -inf, %v856
          %v629 = vphi -inf, %v857
          %v630 = vphi -inf, %v858
          %v631 = vphi -inf, %v859
          %v632 = vphi 0.0, %v900
          %v633 = vphi 0.0, %v901
          %v634 = vphi 0.0, %v902
          %v635 = vphi 0.0, %v903
          %v636 = vphi 0.0, %v1097
          %v637 = vphi 0.0, %v1098
          %v638 = vphi 0.0, %v1099
          %v639 = vphi 0.0, %v1100
        $region79: #{tpu_custom_call.1} parent=71 // loop_header_branch
          %627 = sbr.rel (%p624) target = $region83
        $region80: #{tpu_custom_call.1} parent=71 // loop_body
          %s640 = smul.u32 %s623, 8
          %s641 = sshra.s32 %s640, 3
          %s642 = sand.u32 %s640, 7
          %s643 = smul.addr %s641, 4
          %s644 = scalar_lea.vmem [#allocation3], %s643
          %v645 = vld [vmem:[%s644] sm:$0xf]
          %v646 = vld [vmem:[%s644 + $0x4] sm:$0xf]
          %v647 = vld [vmem:[%s644 + $0x8] sm:$0xf]
          %v648 = vld [vmem:[%s644 + $0xc] sm:$0xf]
          %s649 = smul.addr %s641, 4
          %s650 = scalar_lea.vmem [#allocation4], %s649
          %v651 = vld [vmem:[%s650] sm:$0xf]
          %v652 = vld [vmem:[%s650 + $0x4] sm:$0xf]
          %v653 = vld [vmem:[%s650 + $0x8] sm:$0xf]
          %v654 = vld [vmem:[%s650 + $0xc] sm:$0xf]
          %vm655 = vcmask 64512
          %v657 = vsel %vm655, %v618, 0
          %v660 = vsel %vm655, %v645, 0
          %662 = vmatprep.subr.bf16.mxu0 0
          %663 = vmatpush1.bf16.xpose.msra.mxu0 0
          %664 = vmatprep.subr.bf16.mxu0 0
          %665 = vmatpush1.bf16.xpose.msra.mxu0 0
          %666 = vmatprep.subr.bf16.mxu0 0
          %667 = vmatpush1.bf16.xpose.msra.mxu0 0
          %668 = vmatprep.subr.bf16.mxu0 0
          %669 = vmatpush1.bf16.xpose.msra.mxu0 0
          %670 = vmatprep.subr.bf16.mxu0 0
          %671 = vmatpush1.bf16.xpose.msra.mxu0 0
          %672 = vmatprep.subr.bf16.mxu0 0
          %673 = vmatpush1.bf16.xpose.msra.mxu0 0
          %674 = vmatprep.subr.bf16.mxu0 0
          %675 = vmatpush1.bf16.xpose.msra.mxu0 0
          %676 = vmatprep.subr.bf16.mxu0 0
          %677 = vmatpush1.bf16.xpose.msra.mxu0 %v660
          %678 = vmatprep.subr.bf16.mxu0 0
          %679 = vmatpush2.bf16.xpose.msra.mxu0 0
          %680 = vmatprep.subr.bf16.mxu0 0
          %681 = vmatpush2.bf16.xpose.msra.mxu0 0
          %682 = vmatprep.subr.bf16.mxu0 0
          %683 = vmatpush2.bf16.xpose.msra.mxu0 0
          %684 = vmatprep.subr.bf16.mxu0 0
          %685 = vmatpush2.bf16.xpose.msra.mxu0 0
          %686 = vmatprep.subr.bf16.mxu0 0
          %687 = vmatpush2.bf16.xpose.msra.mxu0 0
          %688 = vmatprep.subr.bf16.mxu0 0
          %689 = vmatpush2.bf16.xpose.msra.mxu0 0
          %690 = vmatprep.subr.bf16.mxu0 0
          %691 = vmatpush2.bf16.xpose.msra.mxu0 0
          %692 = vmatprep.subr.bf16.mxu0 0
          %693 = vmatpush2.bf16.xpose.msra.mxu0 0
          %694 = vmatprep.mubr.bf16.mxu0 0
          %695 = vmatmul.mubr.bf16.gmra.mxu0 %v657
          %v696 = vpop.f32.mrf.mxu0
          %v697 = vadd.f32 0.0, %v696
          %v698 = vpop.f32.mrf.mxu0
          %v699 = vpop.f32.mrf.mxu0
          %v700 = vpop.f32.mrf.mxu0
          %701 = vdwg.mxu0
          %v703 = vsel %vm655, %v619, 0
          %v706 = vsel %vm655, %v646, 0
          %708 = vmatprep.subr.bf16.mxu0 0
          %709 = vmatpush1.bf16.xpose.msra.mxu0 0
          %710 = vmatprep.subr.bf16.mxu0 0
          %711 = vmatpush1.bf16.xpose.msra.mxu0 0
          %712 = vmatprep.subr.bf16.mxu0 0
          %713 = vmatpush1.bf16.xpose.msra.mxu0 0
          %714 = vmatprep.subr.bf16.mxu0 0
          %715 = vmatpush1.bf16.xpose.msra.mxu0 0
          %716 = vmatprep.subr.bf16.mxu0 0
          %717 = vmatpush1.bf16.xpose.msra.mxu0 0
          %718 = vmatprep.subr.bf16.mxu0 0
          %719 = vmatpush1.bf16.xpose.msra.mxu0 0
          %720 = vmatprep.subr.bf16.mxu0 0
          %721 = vmatpush1.bf16.xpose.msra.mxu0 0
          %722 = vmatprep.subr.bf16.mxu0 0
          %723 = vmatpush1.bf16.xpose.msra.mxu0 %v706
          %724 = vmatprep.subr.bf16.mxu0 0
          %725 = vmatpush2.bf16.xpose.msra.mxu0 0
          %726 = vmatprep.subr.bf16.mxu0 0
          %727 = vmatpush2.bf16.xpose.msra.mxu0 0
          %728 = vmatprep.subr.bf16.mxu0 0
          %729 = vmatpush2.bf16.xpose.msra.mxu0 0
          %730 = vmatprep.subr.bf16.mxu0 0
          %731 = vmatpush2.bf16.xpose.msra.mxu0 0
          %732 = vmatprep.subr.bf16.mxu0 0
          %733 = vmatpush2.bf16.xpose.msra.mxu0 0
          %734 = vmatprep.subr.bf16.mxu0 0
          %735 = vmatpush2.bf16.xpose.msra.mxu0 0
          %736 = vmatprep.subr.bf16.mxu0 0
          %737 = vmatpush2.bf16.xpose.msra.mxu0 0
          %738 = vmatprep.subr.bf16.mxu0 0
          %739 = vmatpush2.bf16.xpose.msra.mxu0 0
          %740 = vmatprep.mubr.bf16.mxu0 0
          %741 = vmatmul.mubr.bf16.gmra.mxu0 %v703
          %v742 = vpop.f32.mrf.mxu0
          %v743 = vadd.f32 0.0, %v742
          %v744 = vpop.f32.mrf.mxu0
          %v745 = vpop.f32.mrf.mxu0
          %v746 = vpop.f32.mrf.mxu0
          %747 = vdwg.mxu0
          %v749 = vsel %vm655, %v620, 0
          %v752 = vsel %vm655, %v647, 0
          %754 = vmatprep.subr.bf16.mxu0 0
          %755 = vmatpush1.bf16.xpose.msra.mxu0 0
          %756 = vmatprep.subr.bf16.mxu0 0
          %757 = vmatpush1.bf16.xpose.msra.mxu0 0
          %758 = vmatprep.subr.bf16.mxu0 0
          %759 = vmatpush1.bf16.xpose.msra.mxu0 0
          %760 = vmatprep.subr.bf16.mxu0 0
          %761 = vmatpush1.bf16.xpose.msra.mxu0 0
          %762 = vmatprep.subr.bf16.mxu0 0
          %763 = vmatpush1.bf16.xpose.msra.mxu0 0
          %764 = vmatprep.subr.bf16.mxu0 0
          %765 = vmatpush1.bf16.xpose.msra.mxu0 0
          %766 = vmatprep.subr.bf16.mxu0 0
          %767 = vmatpush1.bf16.xpose.msra.mxu0 0
          %768 = vmatprep.subr.bf16.mxu0 0
          %769 = vmatpush1.bf16.xpose.msra.mxu0 %v752
          %770 = vmatprep.subr.bf16.mxu0 0
          %771 = vmatpush2.bf16.xpose.msra.mxu0 0
          %772 = vmatprep.subr.bf16.mxu0 0
          %773 = vmatpush2.bf16.xpose.msra.mxu0 0
          %774 = vmatprep.subr.bf16.mxu0 0
          %775 = vmatpush2.bf16.xpose.msra.mxu0 0
          %776 = vmatprep.subr.bf16.mxu0 0
          %777 = vmatpush2.bf16.xpose.msra.mxu0 0
          %778 = vmatprep.subr.bf16.mxu0 0
          %779 = vmatpush2.bf16.xpose.msra.mxu0 0
          %780 = vmatprep.subr.bf16.mxu0 0
          %781 = vmatpush2.bf16.xpose.msra.mxu0 0
          %782 = vmatprep.subr.bf16.mxu0 0
          %783 = vmatpush2.bf16.xpose.msra.mxu0 0
          %784 = vmatprep.subr.bf16.mxu0 0
          %785 = vmatpush2.bf16.xpose.msra.mxu0 0
          %786 = vmatprep.mubr.bf16.mxu0 0
          %787 = vmatmul.mubr.bf16.gmra.mxu0 %v749
          %v788 = vpop.f32.mrf.mxu0
          %v789 = vadd.f32 0.0, %v788
          %v790 = vpop.f32.mrf.mxu0
          %v791 = vpop.f32.mrf.mxu0
          %v792 = vpop.f32.mrf.mxu0
          %793 = vdwg.mxu0
          %v795 = vsel %vm655, %v621, 0
          %v798 = vsel %vm655, %v648, 0
          %800 = vmatprep.subr.bf16.mxu0 0
          %801 = vmatpush1.bf16.xpose.msra.mxu0 0
          %802 = vmatprep.subr.bf16.mxu0 0
          %803 = vmatpush1.bf16.xpose.msra.mxu0 0
          %804 = vmatprep.subr.bf16.mxu0 0
          %805 = vmatpush1.bf16.xpose.msra.mxu0 0
          %806 = vmatprep.subr.bf16.mxu0 0
          %807 = vmatpush1.bf16.xpose.msra.mxu0 0
          %808 = vmatprep.subr.bf16.mxu0 0
          %809 = vmatpush1.bf16.xpose.msra.mxu0 0
          %810 = vmatprep.subr.bf16.mxu0 0
          %811 = vmatpush1.bf16.xpose.msra.mxu0 0
          %812 = vmatprep.subr.bf16.mxu0 0
          %813 = vmatpush1.bf16.xpose.msra.mxu0 0
          %814 = vmatprep.subr.bf16.mxu0 0
          %815 = vmatpush1.bf16.xpose.msra.mxu0 %v798
          %816 = vmatprep.subr.bf16.mxu0 0
          %817 = vmatpush2.bf16.xpose.msra.mxu0 0
          %818 = vmatprep.subr.bf16.mxu0 0
          %819 = vmatpush2.bf16.xpose.msra.mxu0 0
          %820 = vmatprep.subr.bf16.mxu0 0
          %821 = vmatpush2.bf16.xpose.msra.mxu0 0
          %822 = vmatprep.subr.bf16.mxu0 0
          %823 = vmatpush2.bf16.xpose.msra.mxu0 0
          %824 = vmatprep.subr.bf16.mxu0 0
          %825 = vmatpush2.bf16.xpose.msra.mxu0 0
          %826 = vmatprep.subr.bf16.mxu0 0
          %827 = vmatpush2.bf16.xpose.msra.mxu0 0
          %828 = vmatprep.subr.bf16.mxu0 0
          %829 = vmatpush2.bf16.xpose.msra.mxu0 0
          %830 = vmatprep.subr.bf16.mxu0 0
          %831 = vmatpush2.bf16.xpose.msra.mxu0 0
          %832 = vmatprep.mubr.bf16.mxu0 0
          %833 = vmatmul.mubr.bf16.gmra.mxu0 %v795
          %v834 = vpop.f32.mrf.mxu0
          %v835 = vadd.f32 0.0, %v834
          %v836 = vpop.f32.mrf.mxu0
          %v837 = vpop.f32.mrf.mxu0
          %v838 = vpop.f32.mrf.mxu0
          %839 = vdwg.mxu0
          %v840 = vmul.f32 %v697, 0.35355338
          %v841 = vmul.f32 %v743, 0.35355338
          %v842 = vmul.f32 %v789, 0.35355338
          %v843 = vmul.f32 %v835, 0.35355338
          %v844 = vsel %vm655, %v840, -inf
          %845 = vmax.xlane.f32.xlu0 %v844
          %v846 = vpop.xlane.xlu0 %845
          %v847 = vsel %vm655, %v841, -inf
          %848 = vmax.xlane.f32.xlu0 %v847
          %v849 = vpop.xlane.xlu0 %848
          %v850 = vsel %vm655, %v842, -inf
          %851 = vmax.xlane.f32.xlu0 %v850
          %v852 = vpop.xlane.xlu0 %851
          %v853 = vsel %vm655, %v843, -inf
          %854 = vmax.xlane.f32.xlu0 %v853
          %v855 = vpop.xlane.xlu0 %854
          %v856 = vmax.f32 %v628, %v846
          %v857 = vmax.f32 %v629, %v849
          %v858 = vmax.f32 %v630, %v852
          %v859 = vmax.f32 %v631, %v855
          %v860 = vsub.f32 %v628, %v856
          %v861 = vsub.f32 %v629, %v857
          %v862 = vsub.f32 %v630, %v858
          %v863 = vsub.f32 %v631, %v859
          %v864 = vmul.f32 %v860, 1.442695
          %v865 = vpow.pop %v864
          %v866 = vmul.f32 %v861, 1.442695
          %v867 = vpow.pop %v866
          %v868 = vmul.f32 %v862, 1.442695
          %v869 = vpow.pop %v868
          %v870 = vmul.f32 %v863, 1.442695
          %v871 = vpow.pop %v870
          %v872 = vsub.f32 %v840, %v856
          %v873 = vsub.f32 %v841, %v857
          %v874 = vsub.f32 %v842, %v858
          %v875 = vsub.f32 %v843, %v859
          %v876 = vmul.f32 %v872, 1.442695
          %v877 = vpow.pop %v876
          %v878 = vmul.f32 %v873, 1.442695
          %v879 = vpow.pop %v878
          %v880 = vmul.f32 %v874, 1.442695
          %v881 = vpow.pop %v880
          %v882 = vmul.f32 %v875, 1.442695
          %v883 = vpow.pop %v882
          %v884 = vmul.f32 %v865, %v632
          %v885 = vmul.f32 %v867, %v633
          %v886 = vmul.f32 %v869, %v634
          %v887 = vmul.f32 %v871, %v635
          %v888 = vsel %vm655, %v877, 0.0
          %889 = vadd.xlane.f32.xlu0 %v888
          %v890 = vpop.xlane.xlu0 %889
          %v891 = vsel %vm655, %v879, 0.0
          %892 = vadd.xlane.f32.xlu0 %v891
          %v893 = vpop.xlane.xlu0 %892
          %v894 = vsel %vm655, %v881, 0.0
          %895 = vadd.xlane.f32.xlu0 %v894
          %v896 = vpop.xlane.xlu0 %895
          %v897 = vsel %vm655, %v883, 0.0
          %898 = vadd.xlane.f32.xlu0 %v897
          %v899 = vpop.xlane.xlu0 %898
          %v900 = vadd.f32 %v884, %v890
          %v901 = vadd.f32 %v885, %v893
          %v902 = vadd.f32 %v886, %v896
          %v903 = vadd.f32 %v887, %v899
          %v904 = vmul.f32 %v865, %v636
          %v905 = vmul.f32 %v867, %v637
          %v906 = vmul.f32 %v869, %v638
          %v907 = vmul.f32 %v871, %v639
          %v908 = vpack.c.bf16 %v877, %v877
          %v909 = vpack.c.bf16 %v879, %v879
          %v910 = vpack.c.bf16 %v881, %v881
          %v911 = vpack.c.bf16 %v883, %v883
          %v913 = vsel %vm655, %v908, 0
          %vm915 = vcmask 1043456
          %v917 = vsel %vm915, %v651, 0
          %919 = vmatprep.subr.bf16.mxu0 0
          %920 = vmatpush1.bf16.msra.mxu0 0
          %921 = vmatprep.subr.bf16.mxu0 0
          %922 = vmatpush1.bf16.msra.mxu0 0
          %923 = vmatprep.subr.bf16.mxu0 0
          %924 = vmatpush1.bf16.msra.mxu0 0
          %925 = vmatprep.subr.bf16.mxu0 0
          %926 = vmatpush1.bf16.msra.mxu0 0
          %927 = vmatprep.subr.bf16.mxu0 0
          %928 = vmatpush1.bf16.msra.mxu0 0
          %929 = vmatprep.subr.bf16.mxu0 0
          %930 = vmatpush1.bf16.msra.mxu0 0
          %931 = vmatprep.subr.bf16.mxu0 0
          %932 = vmatpush1.bf16.msra.mxu0 0
          %933 = vmatprep.subr.bf16.mxu0 0
          %934 = vmatpush1.bf16.msra.mxu0 %v917
          %935 = vmatprep.subr.bf16.mxu0 0
          %936 = vmatpush2.bf16.msra.mxu0 0
          %937 = vmatprep.subr.bf16.mxu0 0
          %938 = vmatpush2.bf16.msra.mxu0 0
          %939 = vmatprep.subr.bf16.mxu0 0
          %940 = vmatpush2.bf16.msra.mxu0 0
          %941 = vmatprep.subr.bf16.mxu0 0
          %942 = vmatpush2.bf16.msra.mxu0 0
          %943 = vmatprep.subr.bf16.mxu0 0
          %944 = vmatpush2.bf16.msra.mxu0 0
          %945 = vmatprep.subr.bf16.mxu0 0
          %946 = vmatpush2.bf16.msra.mxu0 0
          %947 = vmatprep.subr.bf16.mxu0 0
          %948 = vmatpush2.bf16.msra.mxu0 0
          %949 = vmatprep.subr.bf16.mxu0 0
          %950 = vmatpush2.bf16.msra.mxu0 0
          %951 = vmatprep.mubr.bf16.mxu0 0
          %952 = vmatmul.mubr.bf16.gmra.mxu0 %v913
          %v953 = vpop.f32.mrf.mxu0
          %v954 = vadd.f32 0.0, %v953
          %v955 = vpop.f32.mrf.mxu0
          %v956 = vpop.f32.mrf.mxu0
          %v957 = vpop.f32.mrf.mxu0
          %958 = vdwg.mxu0
          %v960 = vsel %vm655, %v909, 0
          %v963 = vsel %vm915, %v652, 0
          %965 = vmatprep.subr.bf16.mxu0 0
          %966 = vmatpush1.bf16.msra.mxu0 0
          %967 = vmatprep.subr.bf16.mxu0 0
          %968 = vmatpush1.bf16.msra.mxu0 0
          %969 = vmatprep.subr.bf16.mxu0 0
          %970 = vmatpush1.bf16.msra.mxu0 0
          %971 = vmatprep.subr.bf16.mxu0 0
          %972 = vmatpush1.bf16.msra.mxu0 0
          %973 = vmatprep.subr.bf16.mxu0 0
          %974 = vmatpush1.bf16.msra.mxu0 0
          %975 = vmatprep.subr.bf16.mxu0 0
          %976 = vmatpush1.bf16.msra.mxu0 0
          %977 = vmatprep.subr.bf16.mxu0 0
          %978 = vmatpush1.bf16.msra.mxu0 0
          %979 = vmatprep.subr.bf16.mxu0 0
          %980 = vmatpush1.bf16.msra.mxu0 %v963
          %981 = vmatprep.subr.bf16.mxu0 0
          %982 = vmatpush2.bf16.msra.mxu0 0
          %983 = vmatprep.subr.bf16.mxu0 0
          %984 = vmatpush2.bf16.msra.mxu0 0
          %985 = vmatprep.subr.bf16.mxu0 0
          %986 = vmatpush2.bf16.msra.mxu0 0
          %987 = vmatprep.subr.bf16.mxu0 0
          %988 = vmatpush2.bf16.msra.mxu0 0
          %989 = vmatprep.subr.bf16.mxu0 0
          %990 = vmatpush2.bf16.msra.mxu0 0
          %991 = vmatprep.subr.bf16.mxu0 0
          %992 = vmatpush2.bf16.msra.mxu0 0
          %993 = vmatprep.subr.bf16.mxu0 0
          %994 = vmatpush2.bf16.msra.mxu0 0
          %995 = vmatprep.subr.bf16.mxu0 0
          %996 = vmatpush2.bf16.msra.mxu0 0
          %997 = vmatprep.mubr.bf16.mxu0 0
          %998 = vmatmul.mubr.bf16.gmra.mxu0 %v960
          %v999 = vpop.f32.mrf.mxu0
          %v1000 = vadd.f32 0.0, %v999
          %v1001 = vpop.f32.mrf.mxu0
          %v1002 = vpop.f32.mrf.mxu0
          %v1003 = vpop.f32.mrf.mxu0
          %1004 = vdwg.mxu0
          %v1006 = vsel %vm655, %v910, 0
          %v1009 = vsel %vm915, %v653, 0
          %1011 = vmatprep.subr.bf16.mxu0 0
          %1012 = vmatpush1.bf16.msra.mxu0 0
          %1013 = vmatprep.subr.bf16.mxu0 0
          %1014 = vmatpush1.bf16.msra.mxu0 0
          %1015 = vmatprep.subr.bf16.mxu0 0
          %1016 = vmatpush1.bf16.msra.mxu0 0
          %1017 = vmatprep.subr.bf16.mxu0 0
          %1018 = vmatpush1.bf16.msra.mxu0 0
          %1019 = vmatprep.subr.bf16.mxu0 0
          %1020 = vmatpush1.bf16.msra.mxu0 0
          %1021 = vmatprep.subr.bf16.mxu0 0
          %1022 = vmatpush1.bf16.msra.mxu0 0
          %1023 = vmatprep.subr.bf16.mxu0 0
          %1024 = vmatpush1.bf16.msra.mxu0 0
          %1025 = vmatprep.subr.bf16.mxu0 0
          %1026 = vmatpush1.bf16.msra.mxu0 %v1009
          %1027 = vmatprep.subr.bf16.mxu0 0
          %1028 = vmatpush2.bf16.msra.mxu0 0
          %1029 = vmatprep.subr.bf16.mxu0 0
          %1030 = vmatpush2.bf16.msra.mxu0 0
          %1031 = vmatprep.subr.bf16.mxu0 0
          %1032 = vmatpush2.bf16.msra.mxu0 0
          %1033 = vmatprep.subr.bf16.mxu0 0
          %1034 = vmatpush2.bf16.msra.mxu0 0
          %1035 = vmatprep.subr.bf16.mxu0 0
          %1036 = vmatpush2.bf16.msra.mxu0 0
          %1037 = vmatprep.subr.bf16.mxu0 0
          %1038 = vmatpush2.bf16.msra.mxu0 0
          %1039 = vmatprep.subr.bf16.mxu0 0
          %1040 = vmatpush2.bf16.msra.mxu0 0
          %1041 = vmatprep.subr.bf16.mxu0 0
          %1042 = vmatpush2.bf16.msra.mxu0 0
          %1043 = vmatprep.mubr.bf16.mxu0 0
          %1044 = vmatmul.mubr.bf16.gmra.mxu0 %v1006
          %v1045 = vpop.f32.mrf.mxu0
          %v1046 = vadd.f32 0.0, %v1045
          %v1047 = vpop.f32.mrf.mxu0
          %v1048 = vpop.f32.mrf.mxu0
          %v1049 = vpop.f32.mrf.mxu0
          %1050 = vdwg.mxu0
          %v1052 = vsel %vm655, %v911, 0
          %v1055 = vsel %vm915, %v654, 0
          %1057 = vmatprep.subr.bf16.mxu0 0
          %1058 = vmatpush1.bf16.msra.mxu0 0
          %1059 = vmatprep.subr.bf16.mxu0 0
          %1060 = vmatpush1.bf16.msra.mxu0 0
          %1061 = vmatprep.subr.bf16.mxu0 0
          %1062 = vmatpush1.bf16.msra.mxu0 0
          %1063 = vmatprep.subr.bf16.mxu0 0
          %1064 = vmatpush1.bf16.msra.mxu0 0
          %1065 = vmatprep.subr.bf16.mxu0 0
          %1066 = vmatpush1.bf16.msra.mxu0 0
          %1067 = vmatprep.subr.bf16.mxu0 0
          %1068 = vmatpush1.bf16.msra.mxu0 0
          %1069 = vmatprep.subr.bf16.mxu0 0
          %1070 = vmatpush1.bf16.msra.mxu0 0
          %1071 = vmatprep.subr.bf16.mxu0 0
          %1072 = vmatpush1.bf16.msra.mxu0 %v1055
          %1073 = vmatprep.subr.bf16.mxu0 0
          %1074 = vmatpush2.bf16.msra.mxu0 0
          %1075 = vmatprep.subr.bf16.mxu0 0
          %1076 = vmatpush2.bf16.msra.mxu0 0
          %1077 = vmatprep.subr.bf16.mxu0 0
          %1078 = vmatpush2.bf16.msra.mxu0 0
          %1079 = vmatprep.subr.bf16.mxu0 0
          %1080 = vmatpush2.bf16.msra.mxu0 0
          %1081 = vmatprep.subr.bf16.mxu0 0
          %1082 = vmatpush2.bf16.msra.mxu0 0
          %1083 = vmatprep.subr.bf16.mxu0 0
          %1084 = vmatpush2.bf16.msra.mxu0 0
          %1085 = vmatprep.subr.bf16.mxu0 0
          %1086 = vmatpush2.bf16.msra.mxu0 0
          %1087 = vmatprep.subr.bf16.mxu0 0
          %1088 = vmatpush2.bf16.msra.mxu0 0
          %1089 = vmatprep.mubr.bf16.mxu0 0
          %1090 = vmatmul.mubr.bf16.gmra.mxu0 %v1052
          %v1091 = vpop.f32.mrf.mxu0
          %v1092 = vadd.f32 0.0, %v1091
          %v1093 = vpop.f32.mrf.mxu0
          %v1094 = vpop.f32.mrf.mxu0
          %v1095 = vpop.f32.mrf.mxu0
          %1096 = vdwg.mxu0
          %v1097 = vadd.f32 %v904, %v954
          %v1098 = vadd.f32 %v905, %v1000
          %v1099 = vadd.f32 %v906, %v1046
          %v1100 = vadd.f32 %v907, %v1092
        $region81: #{tpu_custom_call.1} parent=71 // loop_footer
          %s625 = sadd.s32 %s623, 1
        $region82: #{tpu_custom_call.1} parent=71 // loop_footer_branch
          %622 = sbr.rel target = $region78
        $region83: #{tpu_custom_call.1} parent=71 // loop_exit
          _
        %s1101 = smul.addr %s614, 4
        %s1102 = scalar_lea.vmem [#allocation3], %s1101
        %v1103 = vld [vmem:[%s1102] sm:$0xf]
        %v1104 = vld [vmem:[%s1102 + $0x4] sm:$0xf]
        %v1105 = vld [vmem:[%s1102 + $0x8] sm:$0xf]
        %v1106 = vld [vmem:[%s1102 + $0xc] sm:$0xf]
        %s1107 = smul.addr %s614, 4
        %s1108 = scalar_lea.vmem [#allocation4], %s1107
        %v1109 = vld [vmem:[%s1108] sm:$0xf]
        %v1110 = vld [vmem:[%s1108 + $0x4] sm:$0xf]
        %v1111 = vld [vmem:[%s1108 + $0x8] sm:$0xf]
        %v1112 = vld [vmem:[%s1108 + $0xc] sm:$0xf]
        %vm1113 = vcmask 64512
        %v1115 = vsel %vm1113, %v618, 0
        %v1118 = vsel %vm1113, %v1103, 0
        %1120 = vmatprep.subr.bf16.mxu0 0
        %1121 = vmatpush1.bf16.xpose.msra.mxu0 0
        %1122 = vmatprep.subr.bf16.mxu0 0
        %1123 = vmatpush1.bf16.xpose.msra.mxu0 0
        %1124 = vmatprep.subr.bf16.mxu0 0
        %1125 = vmatpush1.bf16.xpose.msra.mxu0 0
        %1126 = vmatprep.subr.bf16.mxu0 0
        %1127 = vmatpush1.bf16.xpose.msra.mxu0 0
        %1128 = vmatprep.subr.bf16.mxu0 0
        %1129 = vmatpush1.bf16.xpose.msra.mxu0 0
        %1130 = vmatprep.subr.bf16.mxu0 0
        %1131 = vmatpush1.bf16.xpose.msra.mxu0 0
        %1132 = vmatprep.subr.bf16.mxu0 0
        %1133 = vmatpush1.bf16.xpose.msra.mxu0 0
        %1134 = vmatprep.subr.bf16.mxu0 0
        %1135 = vmatpush1.bf16.xpose.msra.mxu0 %v1118
        %1136 = vmatprep.subr.bf16.mxu0 0
        %1137 = vmatpush2.bf16.xpose.msra.mxu0 0
        %1138 = vmatprep.subr.bf16.mxu0 0
        %1139 = vmatpush2.bf16.xpose.msra.mxu0 0
        %1140 = vmatprep.subr.bf16.mxu0 0
        %1141 = vmatpush2.bf16.xpose.msra.mxu0 0
        %1142 = vmatprep.subr.bf16.mxu0 0
        %1143 = vmatpush2.bf16.xpose.msra.mxu0 0
        %1144 = vmatprep.subr.bf16.mxu0 0
        %1145 = vmatpush2.bf16.xpose.msra.mxu0 0
        %1146 = vmatprep.subr.bf16.mxu0 0
        %1147 = vmatpush2.bf16.xpose.msra.mxu0 0
        %1148 = vmatprep.subr.bf16.mxu0 0
        %1149 = vmatpush2.bf16.xpose.msra.mxu0 0
        %1150 = vmatprep.subr.bf16.mxu0 0
        %1151 = vmatpush2.bf16.xpose.msra.mxu0 0
        %1152 = vmatprep.mubr.bf16.mxu0 0
        %1153 = vmatmul.mubr.bf16.gmra.mxu0 %v1115
        %v1154 = vpop.f32.mrf.mxu0
        %v1155 = vadd.f32 0.0, %v1154
        %v1156 = vpop.f32.mrf.mxu0
        %v1157 = vpop.f32.mrf.mxu0
        %v1158 = vpop.f32.mrf.mxu0
        %1159 = vdwg.mxu0
        %v1161 = vsel %vm1113, %v619, 0
        %v1164 = vsel %vm1113, %v1104, 0
        %1166 = vmatprep.subr.bf16.mxu0 0
        %1167 = vmatpush1.bf16.xpose.msra.mxu0 0
        %1168 = vmatprep.subr.bf16.mxu0 0
        %1169 = vmatpush1.bf16.xpose.msra.mxu0 0
        %1170 = vmatprep.subr.bf16.mxu0 0
        %1171 = vmatpush1.bf16.xpose.msra.mxu0 0
        %1172 = vmatprep.subr.bf16.mxu0 0
        %1173 = vmatpush1.bf16.xpose.msra.mxu0 0
        %1174 = vmatprep.subr.bf16.mxu0 0
        %1175 = vmatpush1.bf16.xpose.msra.mxu0 0
        %1176 = vmatprep.subr.bf16.mxu0 0
        %1177 = vmatpush1.bf16.xpose.msra.mxu0 0
        %1178 = vmatprep.subr.bf16.mxu0 0
        %1179 = vmatpush1.bf16.xpose.msra.mxu0 0
        %1180 = vmatprep.subr.bf16.mxu0 0
        %1181 = vmatpush1.bf16.xpose.msra.mxu0 %v1164
        %1182 = vmatprep.subr.bf16.mxu0 0
        %1183 = vmatpush2.bf16.xpose.msra.mxu0 0
        %1184 = vmatprep.subr.bf16.mxu0 0
        %1185 = vmatpush2.bf16.xpose.msra.mxu0 0
        %1186 = vmatprep.subr.bf16.mxu0 0
        %1187 = vmatpush2.bf16.xpose.msra.mxu0 0
        %1188 = vmatprep.subr.bf16.mxu0 0
        %1189 = vmatpush2.bf16.xpose.msra.mxu0 0
        %1190 = vmatprep.subr.bf16.mxu0 0
        %1191 = vmatpush2.bf16.xpose.msra.mxu0 0
        %1192 = vmatprep.subr.bf16.mxu0 0
        %1193 = vmatpush2.bf16.xpose.msra.mxu0 0
        %1194 = vmatprep.subr.bf16.mxu0 0
        %1195 = vmatpush2.bf16.xpose.msra.mxu0 0
        %1196 = vmatprep.subr.bf16.mxu0 0
        %1197 = vmatpush2.bf16.xpose.msra.mxu0 0
        %1198 = vmatprep.mubr.bf16.mxu0 0
        %1199 = vmatmul.mubr.bf16.gmra.mxu0 %v1161
        %v1200 = vpop.f32.mrf.mxu0
        %v1201 = vadd.f32 0.0, %v1200
        %v1202 = vpop.f32.mrf.mxu0
        %v1203 = vpop.f32.mrf.mxu0
        %v1204 = vpop.f32.mrf.mxu0
        %1205 = vdwg.mxu0
        %v1207 = vsel %vm1113, %v620, 0
        %v1210 = vsel %vm1113, %v1105, 0
        %1212 = vmatprep.subr.bf16.mxu0 0
        %1213 = vmatpush1.bf16.xpose.msra.mxu0 0
        %1214 = vmatprep.subr.bf16.mxu0 0
        %1215 = vmatpush1.bf16.xpose.msra.mxu0 0
        %1216 = vmatprep.subr.bf16.mxu0 0
        %1217 = vmatpush1.bf16.xpose.msra.mxu0 0
        %1218 = vmatprep.subr.bf16.mxu0 0
        %1219 = vmatpush1.bf16.xpose.msra.mxu0 0
        %1220 = vmatprep.subr.bf16.mxu0 0
        %1221 = vmatpush1.bf16.xpose.msra.mxu0 0
        %1222 = vmatprep.subr.bf16.mxu0 0
        %1223 = vmatpush1.bf16.xpose.msra.mxu0 0
        %1224 = vmatprep.subr.bf16.mxu0 0
        %1225 = vmatpush1.bf16.xpose.msra.mxu0 0
        %1226 = vmatprep.subr.bf16.mxu0 0
        %1227 = vmatpush1.bf16.xpose.msra.mxu0 %v1210
        %1228 = vmatprep.subr.bf16.mxu0 0
        %1229 = vmatpush2.bf16.xpose.msra.mxu0 0
        %1230 = vmatprep.subr.bf16.mxu0 0
        %1231 = vmatpush2.bf16.xpose.msra.mxu0 0
        %1232 = vmatprep.subr.bf16.mxu0 0
        %1233 = vmatpush2.bf16.xpose.msra.mxu0 0
        %1234 = vmatprep.subr.bf16.mxu0 0
        %1235 = vmatpush2.bf16.xpose.msra.mxu0 0
        %1236 = vmatprep.subr.bf16.mxu0 0
        %1237 = vmatpush2.bf16.xpose.msra.mxu0 0
        %1238 = vmatprep.subr.bf16.mxu0 0
        %1239 = vmatpush2.bf16.xpose.msra.mxu0 0
        %1240 = vmatprep.subr.bf16.mxu0 0
        %1241 = vmatpush2.bf16.xpose.msra.mxu0 0
        %1242 = vmatprep.subr.bf16.mxu0 0
        %1243 = vmatpush2.bf16.xpose.msra.mxu0 0
        %1244 = vmatprep.mubr.bf16.mxu0 0
        %1245 = vmatmul.mubr.bf16.gmra.mxu0 %v1207
        %v1246 = vpop.f32.mrf.mxu0
        %v1247 = vadd.f32 0.0, %v1246
        %v1248 = vpop.f32.mrf.mxu0
        %v1249 = vpop.f32.mrf.mxu0
        %v1250 = vpop.f32.mrf.mxu0
        %1251 = vdwg.mxu0
        %v1253 = vsel %vm1113, %v621, 0
        %v1256 = vsel %vm1113, %v1106, 0
        %1258 = vmatprep.subr.bf16.mxu0 0
        %1259 = vmatpush1.bf16.xpose.msra.mxu0 0
        %1260 = vmatprep.subr.bf16.mxu0 0
        %1261 = vmatpush1.bf16.xpose.msra.mxu0 0
        %1262 = vmatprep.subr.bf16.mxu0 0
        %1263 = vmatpush1.bf16.xpose.msra.mxu0 0
        %1264 = vmatprep.subr.bf16.mxu0 0
        %1265 = vmatpush1.bf16.xpose.msra.mxu0 0
        %1266 = vmatprep.subr.bf16.mxu0 0
        %1267 = vmatpush1.bf16.xpose.msra.mxu0 0
        %1268 = vmatprep.subr.bf16.mxu0 0
        %1269 = vmatpush1.bf16.xpose.msra.mxu0 0
        %1270 = vmatprep.subr.bf16.mxu0 0
        %1271 = vmatpush1.bf16.xpose.msra.mxu0 0
        %1272 = vmatprep.subr.bf16.mxu0 0
        %1273 = vmatpush1.bf16.xpose.msra.mxu0 %v1256
        %1274 = vmatprep.subr.bf16.mxu0 0
        %1275 = vmatpush2.bf16.xpose.msra.mxu0 0
        %1276 = vmatprep.subr.bf16.mxu0 0
        %1277 = vmatpush2.bf16.xpose.msra.mxu0 0
        %1278 = vmatprep.subr.bf16.mxu0 0
        %1279 = vmatpush2.bf16.xpose.msra.mxu0 0
        %1280 = vmatprep.subr.bf16.mxu0 0
        %1281 = vmatpush2.bf16.xpose.msra.mxu0 0
        %1282 = vmatprep.subr.bf16.mxu0 0
        %1283 = vmatpush2.bf16.xpose.msra.mxu0 0
        %1284 = vmatprep.subr.bf16.mxu0 0
        %1285 = vmatpush2.bf16.xpose.msra.mxu0 0
        %1286 = vmatprep.subr.bf16.mxu0 0
        %1287 = vmatpush2.bf16.xpose.msra.mxu0 0
        %1288 = vmatprep.subr.bf16.mxu0 0
        %1289 = vmatpush2.bf16.xpose.msra.mxu0 0
        %1290 = vmatprep.mubr.bf16.mxu0 0
        %1291 = vmatmul.mubr.bf16.gmra.mxu0 %v1253
        %v1292 = vpop.f32.mrf.mxu0
        %v1293 = vadd.f32 0.0, %v1292
        %v1294 = vpop.f32.mrf.mxu0
        %v1295 = vpop.f32.mrf.mxu0
        %v1296 = vpop.f32.mrf.mxu0
        %1297 = vdwg.mxu0
        %v1298 = vmul.f32 %v1155, 0.35355338
        %v1299 = vmul.f32 %v1201, 0.35355338
        %v1300 = vmul.f32 %v1247, 0.35355338
        %v1301 = vmul.f32 %v1293, 0.35355338
        %v1302 = vlaneseq
        %v1303 = vshrl.u32 %v1302, 7
        %v1304 = vstv %s613
        %v1305 = vadd.s32 %v1304, %v1303
        %v1306 = vlaneseq
        %v1307 = vand.u32 %v1306, 127
        %v1308 = vadd.s32 %v1304, %v1307
        %vm1309 = vcmp.le.s32.totalorder %v1308, %v1305
        %v1310 = vsel %vm1309, 1, 0
        %vm1311 = vcmp.eq.s32.totalorder %v1310, 1
        %v1312 = vsel %vm1311, %v1298, -1e+30
        %v1313 = vsel %vm1311, %v1299, -1e+30
        %v1314 = vsel %vm1311, %v1300, -1e+30
        %v1315 = vsel %vm1311, %v1301, -1e+30
        %v1316 = vsel %vm1113, %v1312, -inf
        %1317 = vmax.xlane.f32.xlu0 %v1316
        %v1318 = vpop.xlane.xlu0 %1317
        %v1319 = vsel %vm1113, %v1313, -inf
        %1320 = vmax.xlane.f32.xlu0 %v1319
        %v1321 = vpop.xlane.xlu0 %1320
        %v1322 = vsel %vm1113, %v1314, -inf
        %1323 = vmax.xlane.f32.xlu0 %v1322
        %v1324 = vpop.xlane.xlu0 %1323
        %v1325 = vsel %vm1113, %v1315, -inf
        %1326 = vmax.xlane.f32.xlu0 %v1325
        %v1327 = vpop.xlane.xlu0 %1326
        %v1328 = vmax.f32 %v628, %v1318
        %v1329 = vmax.f32 %v629, %v1321
        %v1330 = vmax.f32 %v630, %v1324
        %v1331 = vmax.f32 %v631, %v1327
        %v1332 = vsub.f32 %v628, %v1328
        %v1333 = vsub.f32 %v629, %v1329
        %v1334 = vsub.f32 %v630, %v1330
        %v1335 = vsub.f32 %v631, %v1331
        %v1336 = vmul.f32 %v1332, 1.442695
        %v1337 = vpow.pop %v1336
        %v1338 = vmul.f32 %v1333, 1.442695
        %v1339 = vpow.pop %v1338
        %v1340 = vmul.f32 %v1334, 1.442695
        %v1341 = vpow.pop %v1340
        %v1342 = vmul.f32 %v1335, 1.442695
        %v1343 = vpow.pop %v1342
        %v1344 = vsub.f32 %v1312, %v1328
        %v1345 = vsub.f32 %v1313, %v1329
        %v1346 = vsub.f32 %v1314, %v1330
        %v1347 = vsub.f32 %v1315, %v1331
        %v1348 = vmul.f32 %v1344, 1.442695
        %v1349 = vpow.pop %v1348
        %v1350 = vmul.f32 %v1345, 1.442695
        %v1351 = vpow.pop %v1350
        %v1352 = vmul.f32 %v1346, 1.442695
        %v1353 = vpow.pop %v1352
        %v1354 = vmul.f32 %v1347, 1.442695
        %v1355 = vpow.pop %v1354
        %v1356 = vmul.f32 %v1337, %v632
        %v1357 = vmul.f32 %v1339, %v633
        %v1358 = vmul.f32 %v1341, %v634
        %v1359 = vmul.f32 %v1343, %v635
        %v1360 = vsel %vm1113, %v1349, 0.0
        %1361 = vadd.xlane.f32.xlu0 %v1360
        %v1362 = vpop.xlane.xlu0 %1361
        %v1363 = vsel %vm1113, %v1351, 0.0
        %1364 = vadd.xlane.f32.xlu0 %v1363
        %v1365 = vpop.xlane.xlu0 %1364
        %v1366 = vsel %vm1113, %v1353, 0.0
        %1367 = vadd.xlane.f32.xlu0 %v1366
        %v1368 = vpop.xlane.xlu0 %1367
        %v1369 = vsel %vm1113, %v1355, 0.0
        %1370 = vadd.xlane.f32.xlu0 %v1369
        %v1371 = vpop.xlane.xlu0 %1370
        %v1372 = vadd.f32 %v1356, %v1362
        %v1373 = vadd.f32 %v1357, %v1365
        %v1374 = vadd.f32 %v1358, %v1368
        %v1375 = vadd.f32 %v1359, %v1371
        %v1376 = vmul.f32 %v1337, %v636
        %v1377 = vmul.f32 %v1339, %v637
        %v1378 = vmul.f32 %v1341, %v638
        %v1379 = vmul.f32 %v1343, %v639
        %v1380 = vpack.c.bf16 %v1349, %v1349
        %v1381 = vpack.c.bf16 %v1351, %v1351
        %v1382 = vpack.c.bf16 %v1353, %v1353
        %v1383 = vpack.c.bf16 %v1355, %v1355
        %v1385 = vsel %vm1113, %v1380, 0
        %vm1387 = vcmask 1043456
        %v1389 = vsel %vm1387, %v1109, 0
        %1391 = vmatprep.subr.bf16.mxu0 0
        %1392 = vmatpush1.bf16.msra.mxu0 0
        %1393 = vmatprep.subr.bf16.mxu0 0
        %1394 = vmatpush1.bf16.msra.mxu0 0
        %1395 = vmatprep.subr.bf16.mxu0 0
        %1396 = vmatpush1.bf16.msra.mxu0 0
        %1397 = vmatprep.subr.bf16.mxu0 0
        %1398 = vmatpush1.bf16.msra.mxu0 0
        %1399 = vmatprep.subr.bf16.mxu0 0
        %1400 = vmatpush1.bf16.msra.mxu0 0
        %1401 = vmatprep.subr.bf16.mxu0 0
        %1402 = vmatpush1.bf16.msra.mxu0 0
        %1403 = vmatprep.subr.bf16.mxu0 0
        %1404 = vmatpush1.bf16.msra.mxu0 0
        %1405 = vmatprep.subr.bf16.mxu0 0
        %1406 = vmatpush1.bf16.msra.mxu0 %v1389
        %1407 = vmatprep.subr.bf16.mxu0 0
        %1408 = vmatpush2.bf16.msra.mxu0 0
        %1409 = vmatprep.subr.bf16.mxu0 0
        %1410 = vmatpush2.bf16.msra.mxu0 0
        %1411 = vmatprep.subr.bf16.mxu0 0
        %1412 = vmatpush2.bf16.msra.mxu0 0
        %1413 = vmatprep.subr.bf16.mxu0 0
        %1414 = vmatpush2.bf16.msra.mxu0 0
        %1415 = vmatprep.subr.bf16.mxu0 0
        %1416 = vmatpush2.bf16.msra.mxu0 0
        %1417 = vmatprep.subr.bf16.mxu0 0
        %1418 = vmatpush2.bf16.msra.mxu0 0
        %1419 = vmatprep.subr.bf16.mxu0 0
        %1420 = vmatpush2.bf16.msra.mxu0 0
        %1421 = vmatprep.subr.bf16.mxu0 0
        %1422 = vmatpush2.bf16.msra.mxu0 0
        %1423 = vmatprep.mubr.bf16.mxu0 0
        %1424 = vmatmul.mubr.bf16.gmra.mxu0 %v1385
        %v1425 = vpop.f32.mrf.mxu0
        %v1426 = vadd.f32 0.0, %v1425
        %v1427 = vpop.f32.mrf.mxu0
        %v1428 = vpop.f32.mrf.mxu0
        %v1429 = vpop.f32.mrf.mxu0
        %1430 = vdwg.mxu0
        %v1432 = vsel %vm1113, %v1381, 0
        %v1435 = vsel %vm1387, %v1110, 0
        %1437 = vmatprep.subr.bf16.mxu0 0
        %1438 = vmatpush1.bf16.msra.mxu0 0
        %1439 = vmatprep.subr.bf16.mxu0 0
        %1440 = vmatpush1.bf16.msra.mxu0 0
        %1441 = vmatprep.subr.bf16.mxu0 0
        %1442 = vmatpush1.bf16.msra.mxu0 0
        %1443 = vmatprep.subr.bf16.mxu0 0
        %1444 = vmatpush1.bf16.msra.mxu0 0
        %1445 = vmatprep.subr.bf16.mxu0 0
        %1446 = vmatpush1.bf16.msra.mxu0 0
        %1447 = vmatprep.subr.bf16.mxu0 0
        %1448 = vmatpush1.bf16.msra.mxu0 0
        %1449 = vmatprep.subr.bf16.mxu0 0
        %1450 = vmatpush1.bf16.msra.mxu0 0
        %1451 = vmatprep.subr.bf16.mxu0 0
        %1452 = vmatpush1.bf16.msra.mxu0 %v1435
        %1453 = vmatprep.subr.bf16.mxu0 0
        %1454 = vmatpush2.bf16.msra.mxu0 0
        %1455 = vmatprep.subr.bf16.mxu0 0
        %1456 = vmatpush2.bf16.msra.mxu0 0
        %1457 = vmatprep.subr.bf16.mxu0 0
        %1458 = vmatpush2.bf16.msra.mxu0 0
        %1459 = vmatprep.subr.bf16.mxu0 0
        %1460 = vmatpush2.bf16.msra.mxu0 0
        %1461 = vmatprep.subr.bf16.mxu0 0
        %1462 = vmatpush2.bf16.msra.mxu0 0
        %1463 = vmatprep.subr.bf16.mxu0 0
        %1464 = vmatpush2.bf16.msra.mxu0 0
        %1465 = vmatprep.subr.bf16.mxu0 0
        %1466 = vmatpush2.bf16.msra.mxu0 0
        %1467 = vmatprep.subr.bf16.mxu0 0
        %1468 = vmatpush2.bf16.msra.mxu0 0
        %1469 = vmatprep.mubr.bf16.mxu0 0
        %1470 = vmatmul.mubr.bf16.gmra.mxu0 %v1432
        %v1471 = vpop.f32.mrf.mxu0
        %v1472 = vadd.f32 0.0, %v1471
        %v1473 = vpop.f32.mrf.mxu0
        %v1474 = vpop.f32.mrf.mxu0
        %v1475 = vpop.f32.mrf.mxu0
        %1476 = vdwg.mxu0
        %v1478 = vsel %vm1113, %v1382, 0
        %v1481 = vsel %vm1387, %v1111, 0
        %1483 = vmatprep.subr.bf16.mxu0 0
        %1484 = vmatpush1.bf16.msra.mxu0 0
        %1485 = vmatprep.subr.bf16.mxu0 0
        %1486 = vmatpush1.bf16.msra.mxu0 0
        %1487 = vmatprep.subr.bf16.mxu0 0
        %1488 = vmatpush1.bf16.msra.mxu0 0
        %1489 = vmatprep.subr.bf16.mxu0 0
        %1490 = vmatpush1.bf16.msra.mxu0 0
        %1491 = vmatprep.subr.bf16.mxu0 0
        %1492 = vmatpush1.bf16.msra.mxu0 0
        %1493 = vmatprep.subr.bf16.mxu0 0
        %1494 = vmatpush1.bf16.msra.mxu0 0
        %1495 = vmatprep.subr.bf16.mxu0 0
        %1496 = vmatpush1.bf16.msra.mxu0 0
        %1497 = vmatprep.subr.bf16.mxu0 0
        %1498 = vmatpush1.bf16.msra.mxu0 %v1481
        %1499 = vmatprep.subr.bf16.mxu0 0
        %1500 = vmatpush2.bf16.msra.mxu0 0
        %1501 = vmatprep.subr.bf16.mxu0 0
        %1502 = vmatpush2.bf16.msra.mxu0 0
        %1503 = vmatprep.subr.bf16.mxu0 0
        %1504 = vmatpush2.bf16.msra.mxu0 0
        %1505 = vmatprep.subr.bf16.mxu0 0
        %1506 = vmatpush2.bf16.msra.mxu0 0
        %1507 = vmatprep.subr.bf16.mxu0 0
        %1508 = vmatpush2.bf16.msra.mxu0 0
        %1509 = vmatprep.subr.bf16.mxu0 0
        %1510 = vmatpush2.bf16.msra.mxu0 0
        %1511 = vmatprep.subr.bf16.mxu0 0
        %1512 = vmatpush2.bf16.msra.mxu0 0
        %1513 = vmatprep.subr.bf16.mxu0 0
        %1514 = vmatpush2.bf16.msra.mxu0 0
        %1515 = vmatprep.mubr.bf16.mxu0 0
        %1516 = vmatmul.mubr.bf16.gmra.mxu0 %v1478
        %v1517 = vpop.f32.mrf.mxu0
        %v1518 = vadd.f32 0.0, %v1517
        %v1519 = vpop.f32.mrf.mxu0
        %v1520 = vpop.f32.mrf.mxu0
        %v1521 = vpop.f32.mrf.mxu0
        %1522 = vdwg.mxu0
        %v1524 = vsel %vm1113, %v1383, 0
        %v1527 = vsel %vm1387, %v1112, 0
        %1529 = vmatprep.subr.bf16.mxu0 0
        %1530 = vmatpush1.bf16.msra.mxu0 0
        %1531 = vmatprep.subr.bf16.mxu0 0
        %1532 = vmatpush1.bf16.msra.mxu0 0
        %1533 = vmatprep.subr.bf16.mxu0 0
        %1534 = vmatpush1.bf16.msra.mxu0 0
        %1535 = vmatprep.subr.bf16.mxu0 0
        %1536 = vmatpush1.bf16.msra.mxu0 0
        %1537 = vmatprep.subr.bf16.mxu0 0
        %1538 = vmatpush1.bf16.msra.mxu0 0
        %1539 = vmatprep.subr.bf16.mxu0 0
        %1540 = vmatpush1.bf16.msra.mxu0 0
        %1541 = vmatprep.subr.bf16.mxu0 0
        %1542 = vmatpush1.bf16.msra.mxu0 0
        %1543 = vmatprep.subr.bf16.mxu0 0
        %1544 = vmatpush1.bf16.msra.mxu0 %v1527
        %1545 = vmatprep.subr.bf16.mxu0 0
        %1546 = vmatpush2.bf16.msra.mxu0 0
        %1547 = vmatprep.subr.bf16.mxu0 0
        %1548 = vmatpush2.bf16.msra.mxu0 0
        %1549 = vmatprep.subr.bf16.mxu0 0
        %1550 = vmatpush2.bf16.msra.mxu0 0
        %1551 = vmatprep.subr.bf16.mxu0 0
        %1552 = vmatpush2.bf16.msra.mxu0 0
        %1553 = vmatprep.subr.bf16.mxu0 0
        %1554 = vmatpush2.bf16.msra.mxu0 0
        %1555 = vmatprep.subr.bf16.mxu0 0
        %1556 = vmatpush2.bf16.msra.mxu0 0
        %1557 = vmatprep.subr.bf16.mxu0 0
        %1558 = vmatpush2.bf16.msra.mxu0 0
        %1559 = vmatprep.subr.bf16.mxu0 0
        %1560 = vmatpush2.bf16.msra.mxu0 0
        %1561 = vmatprep.mubr.bf16.mxu0 0
        %1562 = vmatmul.mubr.bf16.gmra.mxu0 %v1524
        %v1563 = vpop.f32.mrf.mxu0
        %v1564 = vadd.f32 0.0, %v1563
        %v1565 = vpop.f32.mrf.mxu0
        %v1566 = vpop.f32.mrf.mxu0
        %v1567 = vpop.f32.mrf.mxu0
        %1568 = vdwg.mxu0
        %v1569 = vadd.f32 %v1376, %v1426
        %v1570 = vadd.f32 %v1377, %v1472
        %v1571 = vadd.f32 %v1378, %v1518
        %v1572 = vadd.f32 %v1379, %v1564
        %v1573 = vrcp.pop %v1372
        %v1574 = vrcp.pop %v1373
        %v1575 = vrcp.pop %v1374
        %v1576 = vrcp.pop %v1375
        %v1577 = vmul.f32 %v1569, %v1573
        %v1578 = vmul.f32 %v1570, %v1574
        %v1579 = vmul.f32 %v1571, %v1575
        %v1580 = vmul.f32 %v1572, %v1576
        %v1581 = vpack.c.bf16 %v1577, %v1577
        %v1582 = vpack.c.bf16 %v1578, %v1578
        %v1583 = vpack.c.bf16 %v1579, %v1579
        %v1584 = vpack.c.bf16 %v1580, %v1580
        %1586 = vrot.lane.b32.xlu0 %v1582, 8
        %v1587 = vpop.permute.xlu0 %1586
        %1589 = vrot.lane.b32.xlu0 %v1583, 16
        %v1590 = vpop.permute.xlu0 %1589
        %1592 = vrot.lane.b32.xlu0 %v1584, 24
        %v1593 = vpop.permute.xlu0 %1592
        %v1596 = vsel %vm1113, %v1581, %v1587
        %vm1597 = vcmask 130048
        %v1599 = vsel %vm1597, %v1596, %v1590
        %vm1600 = vcmask 195584
        %v1602 = vsel %vm1600, %v1599, %v1593
        %v1603 = vld [vmem:[%s5] sm:$0xf]
        %v1604 = vld [vmem:[%s5 + $0x4] sm:$0xf]
        %v1605 = vld [vmem:[%s5 + $0x8] sm:$0xf]
        %v1606 = vld [vmem:[%s5 + $0xc] sm:$0xf]
        %v1607 = vld [vmem:[%s6] sm:$0x1]
        %v1609 = vlaneseq
        %v1610 = vshrl.u32 %v1609, 7
        %v1611 = vsub.s32 0, %v1610
        %v1612 = vrot.slane %v1607, %v1611
        %v1618 = vunpack.c.l.b16 %v1603
        %v1619 = vunpack.c.l.b16 %v1604
        %v1620 = vunpack.c.l.b16 %v1605
        %v1621 = vunpack.c.l.b16 %v1606
        %v1622 = vpack.c.b16 %v1619, %v1618
        %v1623 = vpack.c.b16 %v1621, %v1620
        %vm1626 = vcmask 261120
        %v1627 = vsel %vm1626, %v1602, 0
        %1629 = vmatprep.subr.bf16.mxu0 0
        %1630 = vmatpush1.bf16.msra.mxu0 0
        %1631 = vmatprep.subr.bf16.mxu0 0
        %1632 = vmatpush1.bf16.msra.mxu0 0
        %1633 = vmatprep.subr.bf16.mxu0 0
        %1634 = vmatpush1.bf16.msra.mxu0 0
        %1635 = vmatprep.subr.bf16.mxu0 0
        %1636 = vmatpush1.bf16.msra.mxu0 0
        %1637 = vmatprep.subr.bf16.mxu0 0
        %1638 = vmatpush1.bf16.msra.mxu0 0
        %1639 = vmatprep.subr.bf16.mxu0 0
        %1640 = vmatpush1.bf16.msra.mxu0 0
        %1641 = vmatprep.subr.bf16.mxu0 0
        %1642 = vmatpush1.bf16.msra.mxu0 %v1623
        %1643 = vmatprep.subr.bf16.mxu0 0
        %1644 = vmatpush1.bf16.msra.mxu0 %v1622
        %1645 = vmatprep.subr.bf16.mxu0 0
        %1646 = vmatpush2.bf16.msra.mxu0 0
        %1647 = vmatprep.subr.bf16.mxu0 0
        %1648 = vmatpush2.bf16.msra.mxu0 0
        %1649 = vmatprep.subr.bf16.mxu0 0
        %1650 = vmatpush2.bf16.msra.mxu0 0
        %1651 = vmatprep.subr.bf16.mxu0 0
        %1652 = vmatpush2.bf16.msra.mxu0 0
        %1653 = vmatprep.subr.bf16.mxu0 0
        %1654 = vmatpush2.bf16.msra.mxu0 0
        %1655 = vmatprep.subr.bf16.mxu0 0
        %1656 = vmatpush2.bf16.msra.mxu0 0
        %1657 = vmatprep.subr.bf16.mxu0 0
        %1658 = vmatpush2.bf16.msra.mxu0 0
        %1659 = vmatprep.subr.bf16.mxu0 0
        %1660 = vmatpush2.bf16.msra.mxu0 0
        %1661 = vmatprep.mubr.bf16.mxu0 0
        %1662 = vmatmul.mubr.bf16.gmra.mxu0 %v1627
        %v1663 = vpop.f32.mrf.mxu0
        %v1664 = vadd.f32 %v1612, %v1663
        %v1665 = vpop.f32.mrf.mxu0
        %v1666 = vpop.f32.mrf.mxu0
        %v1667 = vpop.f32.mrf.mxu0
        %1668 = vdwg.mxu0
        %s1669 = scalar_lea.vmem %s449, %s613
        %v1670 = vld [vmem:[%s1669] sm:$0xff]
        %v1671 = vadd.f32 %v1670, %v1664
        %v1672 = vld [vmem:[%s7] sm:$0x1]
        %v1673 = vld [vmem:[%s8] sm:$0x1]
        %v1674 = vsel %vm1626, %v1671, 0.0
        %1675 = vadd.xlane.f32.xlu0 %v1674
        %v1676 = vpop.xlane.xlu0 %1675
        %v1677 = vrcp.pop 32.0
        %v1678 = vmul.f32 %v1676, %v1677
        %v1679 = vsub.f32 %v1671, %v1678
        %v1680 = vmul.f32 %v1679, %v1679
        %v1681 = vsel %vm1626, %v1680, 0.0
        %1682 = vadd.xlane.f32.xlu0 %v1681
        %v1683 = vpop.xlane.xlu0 %1682
        %v1684 = vmul.f32 %v1683, %v1677
        %v1685 = vadd.f32 %v1684, 1e-05
        %v1686 = vrsqrt.pop %v1685
        %v1687 = vmul.f32 %v1679, %v1686
        %v1689 = vlaneseq
        %v1690 = vshrl.u32 %v1689, 7
        %v1691 = vsub.s32 0, %v1690
        %v1692 = vrot.slane %v1672, %v1691
        %v1694 = vmul.f32 %v1687, %v1692
        %v1696 = vlaneseq
        %v1697 = vshrl.u32 %v1696, 7
        %v1698 = vsub.s32 0, %v1697
        %v1699 = vrot.slane %v1673, %v1698
        %v1701 = vadd.f32 %v1694, %v1699
        %v1702 = vpack.c.bf16 %v1701, %v1701
        %v1703 = vld [vmem:[%s9] sm:$0xf]
        %v1704 = vld [vmem:[%s9 + $0x4] sm:$0xf]
        %v1705 = vld [vmem:[%s9 + $0x8] sm:$0xf]
        %v1706 = vld [vmem:[%s9 + $0xc] sm:$0xf]
        %v1707 = vld [vmem:[%s10] sm:$0x1]
        %v1709 = vlaneseq
        %v1710 = vshrl.u32 %v1709, 7
        %v1711 = vsub.s32 0, %v1710
        %v1712 = vrot.slane %v1707, %v1711
        %v1718 = vunpack.c.l.b16 %v1703
        %v1719 = vunpack.c.l.b16 %v1704
        %v1720 = vunpack.c.l.b16 %v1705
        %v1721 = vunpack.c.l.b16 %v1706
        %v1722 = vpack.c.b16 %v1719, %v1718
        %v1723 = vpack.c.b16 %v1721, %v1720
        %v1727 = vsel %vm1626, %v1702, 0
        %1729 = vmatprep.subr.bf16.mxu0 0
        %1730 = vmatpush1.bf16.msra.mxu0 0
        %1731 = vmatprep.subr.bf16.mxu0 0
        %1732 = vmatpush1.bf16.msra.mxu0 0
        %1733 = vmatprep.subr.bf16.mxu0 0
        %1734 = vmatpush1.bf16.msra.mxu0 0
        %1735 = vmatprep.subr.bf16.mxu0 0
        %1736 = vmatpush1.bf16.msra.mxu0 0
        %1737 = vmatprep.subr.bf16.mxu0 0
        %1738 = vmatpush1.bf16.msra.mxu0 0
        %1739 = vmatprep.subr.bf16.mxu0 0
        %1740 = vmatpush1.bf16.msra.mxu0 0
        %1741 = vmatprep.subr.bf16.mxu0 0
        %1742 = vmatpush1.bf16.msra.mxu0 %v1723
        %1743 = vmatprep.subr.bf16.mxu0 0
        %1744 = vmatpush1.bf16.msra.mxu0 %v1722
        %1745 = vmatprep.subr.bf16.mxu0 0
        %1746 = vmatpush2.bf16.msra.mxu0 0
        %1747 = vmatprep.subr.bf16.mxu0 0
        %1748 = vmatpush2.bf16.msra.mxu0 0
        %1749 = vmatprep.subr.bf16.mxu0 0
        %1750 = vmatpush2.bf16.msra.mxu0 0
        %1751 = vmatprep.subr.bf16.mxu0 0
        %1752 = vmatpush2.bf16.msra.mxu0 0
        %1753 = vmatprep.subr.bf16.mxu0 0
        %1754 = vmatpush2.bf16.msra.mxu0 0
        %1755 = vmatprep.subr.bf16.mxu0 0
        %1756 = vmatpush2.bf16.msra.mxu0 0
        %1757 = vmatprep.subr.bf16.mxu0 0
        %1758 = vmatpush2.bf16.msra.mxu0 0
        %1759 = vmatprep.subr.bf16.mxu0 0
        %1760 = vmatpush2.bf16.msra.mxu0 0
        %1761 = vmatprep.mubr.bf16.mxu0 0
        %1762 = vmatmul.mubr.bf16.gmra.mxu0 %v1727
        %v1763 = vpop.f32.mrf.mxu0
        %v1764 = vadd.f32 %v1712, %v1763
        %v1765 = vpop.f32.mrf.mxu0
        %v1766 = vpop.f32.mrf.mxu0
        %v1767 = vpop.f32.mrf.mxu0
        %1768 = vdwg.mxu0
        %v1769 = vmul.f32 %v1764, %v1764
        %v1770 = vmul.f32 %v1764, %v1769
        %v1771 = vmul.f32 %v1770, 0.044715
        %v1772 = vadd.f32 %v1764, %v1771
        %v1773 = vmul.f32 %v1772, 0.7978846
        %v1774 = vtanh.pop %v1773
        %v1775 = vadd.f32 %v1774, 1.0
        %v1776 = vmul.f32 %v1775, 0.5
        %v1777 = vmul.f32 %v1764, %v1776
        %v1778 = vpack.c.bf16 %v1777, %v1777
        %v1779 = vld [vmem:[%s11] sm:$0xf]
        %v1780 = vld [vmem:[%s11 + $0x4] sm:$0xf]
        %v1781 = vld [vmem:[%s11 + $0x8] sm:$0xf]
        %v1782 = vld [vmem:[%s11 + $0xc] sm:$0xf]
        %v1783 = vld [vmem:[%s11 + $0x10] sm:$0xf]
        %v1784 = vld [vmem:[%s11 + $0x14] sm:$0xf]
        %v1785 = vld [vmem:[%s11 + $0x18] sm:$0xf]
        %v1786 = vld [vmem:[%s11 + $0x1c] sm:$0xf]
        %v1787 = vld [vmem:[%s11 + $0x20] sm:$0xf]
        %v1788 = vld [vmem:[%s11 + $0x24] sm:$0xf]
        %v1789 = vld [vmem:[%s11 + $0x28] sm:$0xf]
        %v1790 = vld [vmem:[%s11 + $0x2c] sm:$0xf]
        %v1791 = vld [vmem:[%s11 + $0x30] sm:$0xf]
        %v1792 = vld [vmem:[%s11 + $0x34] sm:$0xf]
        %v1793 = vld [vmem:[%s11 + $0x38] sm:$0xf]
        %v1794 = vld [vmem:[%s11 + $0x3c] sm:$0xf]
        %v1795 = vld [vmem:[%s12] sm:$0x1]
        %v1797 = vlaneseq
        %v1798 = vshrl.u32 %v1797, 7
        %v1799 = vsub.s32 0, %v1798
        %v1800 = vrot.slane %v1795, %v1799
        %v1818 = vunpack.c.l.b16 %v1779
        %v1819 = vunpack.c.l.b16 %v1780
        %v1820 = vunpack.c.l.b16 %v1781
        %v1821 = vunpack.c.l.b16 %v1782
        %v1822 = vunpack.c.l.b16 %v1783
        %v1823 = vunpack.c.l.b16 %v1784
        %v1824 = vunpack.c.l.b16 %v1785
        %v1825 = vunpack.c.l.b16 %v1786
        %v1826 = vunpack.c.l.b16 %v1787
        %v1827 = vunpack.c.l.b16 %v1788
        %v1828 = vunpack.c.l.b16 %v1789
        %v1829 = vunpack.c.l.b16 %v1790
        %v1830 = vunpack.c.l.b16 %v1791
        %v1831 = vunpack.c.l.b16 %v1792
        %v1832 = vunpack.c.l.b16 %v1793
        %v1833 = vunpack.c.l.b16 %v1794
        %v1834 = vpack.c.b16 %v1819, %v1818
        %v1835 = vpack.c.b16 %v1821, %v1820
        %v1836 = vpack.c.b16 %v1823, %v1822
        %v1837 = vpack.c.b16 %v1825, %v1824
        %v1838 = vpack.c.b16 %v1827, %v1826
        %v1839 = vpack.c.b16 %v1829, %v1828
        %v1840 = vpack.c.b16 %v1831, %v1830
        %v1841 = vpack.c.b16 %v1833, %v1832
        %1850 = vmatprep.subr.bf16.mxu0 0
        %1851 = vmatpush1.bf16.msra.mxu0 %v1841
        %1852 = vmatprep.subr.bf16.mxu0 0
        %1853 = vmatpush1.bf16.msra.mxu0 %v1840
        %1854 = vmatprep.subr.bf16.mxu0 0
        %1855 = vmatpush1.bf16.msra.mxu0 %v1839
        %1856 = vmatprep.subr.bf16.mxu0 0
        %1857 = vmatpush1.bf16.msra.mxu0 %v1838
        %1858 = vmatprep.subr.bf16.mxu0 0
        %1859 = vmatpush1.bf16.msra.mxu0 %v1837
        %1860 = vmatprep.subr.bf16.mxu0 0
        %1861 = vmatpush1.bf16.msra.mxu0 %v1836
        %1862 = vmatprep.subr.bf16.mxu0 0
        %1863 = vmatpush1.bf16.msra.mxu0 %v1835
        %1864 = vmatprep.subr.bf16.mxu0 0
        %1865 = vmatpush1.bf16.msra.mxu0 %v1834
        %1866 = vmatprep.subr.bf16.mxu0 0
        %1867 = vmatpush2.bf16.msra.mxu0 0
        %1868 = vmatprep.subr.bf16.mxu0 0
        %1869 = vmatpush2.bf16.msra.mxu0 0
        %1870 = vmatprep.subr.bf16.mxu0 0
        %1871 = vmatpush2.bf16.msra.mxu0 0
        %1872 = vmatprep.subr.bf16.mxu0 0
        %1873 = vmatpush2.bf16.msra.mxu0 0
        %1874 = vmatprep.subr.bf16.mxu0 0
        %1875 = vmatpush2.bf16.msra.mxu0 0
        %1876 = vmatprep.subr.bf16.mxu0 0
        %1877 = vmatpush2.bf16.msra.mxu0 0
        %1878 = vmatprep.subr.bf16.mxu0 0
        %1879 = vmatpush2.bf16.msra.mxu0 0
        %1880 = vmatprep.subr.bf16.mxu0 0
        %1881 = vmatpush2.bf16.msra.mxu0 0
        %1882 = vmatprep.mubr.bf16.mxu0 0
        %1883 = vmatmul.mubr.bf16.gmra.mxu0 %v1778
        %v1884 = vpop.f32.mrf.mxu0
        %v1885 = vadd.f32 %v1800, %v1884
        %v1886 = vpop.f32.mrf.mxu0
        %v1887 = vpop.f32.mrf.mxu0
        %v1888 = vpop.f32.mrf.mxu0
        %1889 = vdwg.mxu0
        %v1890 = vadd.f32 %v1671, %v1885
        %1891 = vst.msk [vmem:[%s445] sm:$0xff] %vm1626, %v1890
        %s1892 = sand.u32 %s327, 1
        %s1893 = scalar_lea.sflag [#allocation6], %s1892
        %s1894 = sand.u32 %s327, 1
        %s1895 = smul.addr %s1894, 8
        %s1896 = scalar_lea.vmem [#allocation5], %s1895
        // Predicated region
        $region84: #{tpu_custom_call.1} parent=71 // pred_check
          %p1897 = pneg %p337
        $region85: #{tpu_custom_call.1} parent=71 // pred_check_branch
          %1899 = sbr.rel (%p1897) target = $region87
        $region86: #{tpu_custom_call.1} parent=71 // pred_region
          %s1901 = ssub.s32 128, 128
          %1902 = vsyncadd %s1893, %s1901
          %s1903 = sadd.s32 %s32, %s31
          %s1904 = smul.addr %s1903, 128
          %s1905 = scalar_lea.hbm %s13, %s1904
          %s1907 = sshll.u32 %s1896, 4
          %s1908 = int_to_ptr.vmem [resolvable:$true] %s1907
          %1910 = dma.vmem_to_hbm [thread:$0]  %s1908, 128, %s1905, %s1893
        $region87: #{tpu_custom_call.1} parent=71 // pred_fallthru
          _
      $region72: #{tpu_custom_call.1} parent=5 // pred_fallthru
        _
      %p1911 = scmp.le.s32.totalorder 2, %s22
      // Predicated region
      $region88: #{tpu_custom_call.1} parent=5 // pred_check
        %p1912 = pneg %p1911
      $region89: #{tpu_custom_call.1} parent=5 // pred_check_branch
        %1914 = sbr.rel (%p1912) target = $region91
      $region90: #{tpu_custom_call.1} parent=5 // pred_region
        %s1915 = ssub.s32 %s22, 2
        // Predicated region
        $region92: #{tpu_custom_call.1} parent=90 // pred_check
          %p1916 = pneg %p343
        $region93: #{tpu_custom_call.1} parent=90 // pred_check_branch
          %1918 = sbr.rel (%p1916) target = $region95
        $region94: #{tpu_custom_call.1} parent=90 // pred_region
          %s1919 = sand.u32 %s328, 1
          %s1920 = scalar_lea.sflag [#allocation6], %s1919
          %s1921 = sand.u32 %s328, 1
          %s1922 = smul.addr %s1921, 8
          %s1923 = scalar_lea.vmem [#allocation5], %s1922
          %1924 = dma.done %s1920, 128
        $region95: #{tpu_custom_call.1} parent=90 // pred_fallthru
          _
      $region91: #{tpu_custom_call.1} parent=5 // pred_fallthru
        _
    $region6: #{tpu_custom_call.1} parent=1 // loop_footer
      %s26 = sadd.s32 1, %s22
    $region7: #{tpu_custom_call.1} parent=1 // loop_footer_branch
      %21 = sbr.rel target = $region3
    $region8: #{tpu_custom_call.1} parent=1 // loop_exit
      _
    %1925 = vsyncpa [#allocation6], 1
    %s1926 = scalar_lea.sflag [#allocation6], 1
    %1927 = vsyncpa %s1926, 1

// kernel: tpu_custom_call.1
$region0: #{tpu_custom_call.1}
  #allocation0 [shape = 'u32[]', space=smem, size = 0x4, offset = 0x4, fixed_abs, tag = 'smem constant byte address 0x4 - core index']
  #allocation1 [shape = 'u32[144,128]{1,0:T(1,128)}', space=vmem, size = 0x12000, scoped, tag = 'internal scratch']
  #allocation2 [shape = 'bf16[4,8,8]{2,1,0:T(8,128)(2,1)}', space=vmem, size = 0x2000, scoped, tag = 'scratch operand']
  #allocation3 [shape = 'bf16[4,8,8]{2,1,0:T(8,128)(2,1)}', space=vmem, size = 0x2000, scoped, tag = 'scratch operand']
  #allocation4 [shape = 'bf16[4,8,8]{2,1,0:T(8,128)(2,1)}', space=vmem, size = 0x2000, scoped, tag = 'scratch operand']
  %s0 = inlined_call_operand.vmem [shape: f32[2,8,32], index: 0, kind: input, shape index: {}]
  %s1 = inlined_call_operand.vmem [shape: f32[1,32], index: 1, kind: input, shape index: {}]
  %s2 = inlined_call_operand.vmem [shape: f32[1,32], index: 2, kind: input, shape index: {}]
  %s3 = inlined_call_operand.vmem [shape: bf16[32,96], index: 3, kind: input, shape index: {}]
  %s4 = inlined_call_operand.vmem [shape: f32[1,96], index: 4, kind: input, shape index: {}]
  %s5 = inlined_call_operand.vmem [shape: bf16[32,32], index: 5, kind: input, shape index: {}]
  %s6 = inlined_call_operand.vmem [shape: f32[1,32], index: 6, kind: input, shape index: {}]
  %s7 = inlined_call_operand.vmem [shape: f32[1,32], index: 7, kind: input, shape index: {}]
  %s8 = inlined_call_operand.vmem [shape: f32[1,32], index: 8, kind: input, shape index: {}]
  %s9 = inlined_call_operand.vmem [shape: bf16[32,128], index: 9, kind: input, shape index: {}]
  %s10 = inlined_call_operand.vmem [shape: f32[1,128], index: 10, kind: input, shape index: {}]
  %s11 = inlined_call_operand.vmem [shape: bf16[128,32], index: 11, kind: input, shape index: {}]
  %s12 = inlined_call_operand.vmem [shape: f32[1,32], index: 12, kind: input, shape index: {}]
  %s13 = inlined_call_operand.hbm [shape: f32[2,8,32], index: 13, kind: output, shape index: {}]
  %s14 = sld [smem:[#allocation0]]
  $region96: #{tpu_custom_call.1} parent=0
    _
  %s16 = ssub.s32 1, %s14
  %s17 = scalar_select 0, %s16, %s14
  $region1: #{tpu_custom_call.1} parent=0
    #allocation5 [shape = 'u8[8192]{0}', space=vmem, size = 0x2000, scoped, tag = 'output window, operand 0']
    #allocation6 [shape = 's32[2]{0}', space=sflag, size = 0x8, scoped, tag = 'scoped memory for tpu_custom_call.1']
    %18 = vsyncpa [#allocation6], 0
    %s19 = scalar_lea.sflag [#allocation6], 1
    %20 = vsyncpa %s19, 0
    loop: start=0, step=1, limit=4
    $region2: #{tpu_custom_call.1} parent=1 // loop_pre_header
      _
    $region3: #{tpu_custom_call.1} parent=1 // loop_header
      %s22 = sphi 0, %s26
      %p23 = scmp.ge.s32.totalorder %s22, 4
      %s29 = sphi 0, %s41
      %s30 = sphi 0, %s37
      %s31 = sphi 0, %s29
      %s32 = sphi 0, %s30
      %s33 = sphi 0, %s31
      %s34 = sphi 0, %s32
      %s44 = sphi 0, %s46
      %s47 = sphi 0, %s44
      %s48 = sphi 0, %s47
      %s64 = sphi 0, %s48
      %s68 = sphi 0, %s68
      %s70 = sphi 0, %s68
      %s71 = sphi 0, %s70
      %s85 = sphi 0, %s71
      %s89 = sphi 0, %s89
      %s91 = sphi 0, %s89
      %s92 = sphi 0, %s91
      %s106 = sphi 0, %s92
      %s110 = sphi 0, %s110
      %s112 = sphi 0, %s110
      %s113 = sphi 0, %s112
      %s127 = sphi 0, %s113
      %s131 = sphi 0, %s131
      %s133 = sphi 0, %s131
      %s134 = sphi 0, %s133
      %s148 = sphi 0, %s134
      %s152 = sphi 0, %s152
      %s154 = sphi 0, %s152
      %s155 = sphi 0, %s154
      %s169 = sphi 0, %s155
      %s173 = sphi 0, %s173
      %s175 = sphi 0, %s173
      %s176 = sphi 0, %s175
      %s190 = sphi 0, %s176
      %s194 = sphi 0, %s194
      %s196 = sphi 0, %s194
      %s197 = sphi 0, %s196
      %s211 = sphi 0, %s197
      %s215 = sphi 0, %s215
      %s217 = sphi 0, %s215
      %s218 = sphi 0, %s217
      %s232 = sphi 0, %s218
      %s236 = sphi 0, %s236
      %s238 = sphi 0, %s236
      %s239 = sphi 0, %s238
      %s253 = sphi 0, %s239
      %s257 = sphi 0, %s257
      %s259 = sphi 0, %s257
      %s260 = sphi 0, %s259
      %s274 = sphi 0, %s260
      %s278 = sphi 0, %s278
      %s280 = sphi 0, %s278
      %s281 = sphi 0, %s280
      %s295 = sphi 0, %s281
      %s299 = sphi 0, %s299
      %s301 = sphi 0, %s299
      %s302 = sphi 0, %s301
      %s316 = sphi 0, %s302
      %s324 = sphi 0, %s326
      %s327 = sphi 0, %s324
      %s328 = sphi 0, %s327
      %s344 = sphi 0, %s328
    $region4: #{tpu_custom_call.1} parent=1 // loop_header_branch
      %25 = sbr.rel (%p23) target = $region8
    $region5: #{tpu_custom_call.1} parent=1 // loop_body
      %s27 = ssub.s32 %s22, 1
      %s28 = ssub.s32 %s22, 2
      %s35 = sadd.s32 1, %s30
      %p36 = scmp.ge.s32.totalorder %s35, 1
      %s37 = scalar_select %p36, 0, %s35
      %s38 = sadd.s32 1, %s29
      %s39 = scalar_select %p36, %s38, %s29
      %p40 = scmp.ge.s32.totalorder %s39, 2
      %s41 = scalar_select %p40, 0, %s39
      %s42 = ssub.s32 %s29, %s41
      %p43 = scmp.eq.s32.totalorder %s42, 0
      %s45 = sadd.s32 %s44, 1
      %s46 = scalar_select %p43, %s44, %s45
      %p49 = pneg %p43
      %p50 = scmp.eq.s32.totalorder %s22, 1
      %p51 = por %p49, %p50
      %p52 = scmp.ne.s32.totalorder %s44, %s47
      %p53 = scmp.eq.s32.totalorder %s22, 0
      %p54 = por %p52, %p53
      %p55 = scmp.ne.s32.totalorder %s44, %s47
      %p56 = scmp.eq.s32.totalorder %s27, 1
      %p57 = por %p55, %p56
      %p58 = scmp.ne.s32.totalorder %s47, %s48
      %p59 = scmp.eq.s32.totalorder %s27, 0
      %p60 = por %p58, %p59
      %p61 = scmp.ne.s32.totalorder %s47, %s48
      %p62 = scmp.eq.s32.totalorder %s28, 1
      %p63 = por %p61, %p62
      %p65 = scmp.ne.s32.totalorder %s48, %s64
      %p66 = scmp.eq.s32.totalorder %s28, 0
      %p67 = por %p65, %p66
      %s69 = sadd.s32 %s68, 1
      %p72 = scmp.eq.s32.totalorder %s22, 1
      %p73 = scmp.ne.s32.totalorder %s68, %s70
      %p74 = scmp.eq.s32.totalorder %s22, 0
      %p75 = por %p73, %p74
      %p76 = scmp.ne.s32.totalorder %s68, %s70
      %p77 = scmp.eq.s32.totalorder %s27, 1
      %p78 = por %p76, %p77
      %p79 = scmp.ne.s32.totalorder %s70, %s71
      %p80 = scmp.eq.s32.totalorder %s27, 0
      %p81 = por %p79, %p80
      %p82 = scmp.ne.s32.totalorder %s70, %s71
      %p83 = scmp.eq.s32.totalorder %s28, 1
      %p84 = por %p82, %p83
      %p86 = scmp.ne.s32.totalorder %s71, %s85
      %p87 = scmp.eq.s32.totalorder %s28, 0
      %p88 = por %p86, %p87
      %s90 = sadd.s32 %s89, 1
      %p93 = scmp.eq.s32.totalorder %s22, 1
      %p94 = scmp.ne.s32.totalorder %s89, %s91
      %p95 = scmp.eq.s32.totalorder %s22, 0
      %p96 = por %p94, %p95
      %p97 = scmp.ne.s32.totalorder %s89, %s91
      %p98 = scmp.eq.s32.totalorder %s27, 1
      %p99 = por %p97, %p98
      %p100 = scmp.ne.s32.totalorder %s91, %s92
      %p101 = scmp.eq.s32.totalorder %s27, 0
      %p102 = por %p100, %p101
      %p103 = scmp.ne.s32.totalorder %s91, %s92
      %p104 = scmp.eq.s32.totalorder %s28, 1
      %p105 = por %p103, %p104
      %p107 = scmp.ne.s32.totalorder %s92, %s106
      %p108 = scmp.eq.s32.totalorder %s28, 0
      %p109 = por %p107, %p108
      %s111 = sadd.s32 %s110, 1
      %p114 = scmp.eq.s32.totalorder %s22, 1
      %p115 = scmp.ne.s32.totalorder %s110, %s112
      %p116 = scmp.eq.s32.totalorder %s22, 0
      %p117 = por %p115, %p116
      %p118 = scmp.ne.s32.totalorder %s110, %s112
      %p119 = scmp.eq.s32.totalorder %s27, 1
      %p120 = por %p118, %p119
      %p121 = scmp.ne.s32.totalorder %s112, %s113
      %p122 = scmp.eq.s32.totalorder %s27, 0
      %p123 = por %p121, %p122
      %p124 = scmp.ne.s32.totalorder %s112, %s113
      %p125 = scmp.eq.s32.totalorder %s28, 1
      %p126 = por %p124, %p125
      %p128 = scmp.ne.s32.totalorder %s113, %s127
      %p129 = scmp.eq.s32.totalorder %s28, 0
      %p130 = por %p128, %p129
      %s132 = sadd.s32 %s131, 1
      %p135 = scmp.eq.s32.totalorder %s22, 1
      %p136 = scmp.ne.s32.totalorder %s131, %s133
      %p137 = scmp.eq.s32.totalorder %s22, 0
      %p138 = por %p136, %p137
      %p139 = scmp.ne.s32.totalorder %s131, %s133
      %p140 = scmp.eq.s32.totalorder %s27, 1
      %p141 = por %p139, %p140
      %p142 = scmp.ne.s32.totalorder %s133, %s134
      %p143 = scmp.eq.s32.totalorder %s27, 0
      %p144 = por %p142, %p143
      %p145 = scmp.ne.s32.totalorder %s133, %s134
      %p146 = scmp.eq.s32.totalorder %s28, 1
      %p147 = por %p145, %p146
      %p149 = scmp.ne.s32.totalorder %s134, %s148
      %p150 = scmp.eq.s32.totalorder %s28, 0
      %p151 = por %p149, %p150
      %s153 = sadd.s32 %s152, 1
      %p156 = scmp.eq.s32.totalorder %s22, 1
      %p157 = scmp.ne.s32.totalorder %s152, %s154
      %p158 = scmp.eq.s32.totalorder %s22, 0
      %p159 = por %p157, %p158
      %p160 = scmp.ne.s32.totalorder %s152, %s154
      %p161 = scmp.eq.s32.totalorder %s27, 1
      %p162 = por %p160, %p161
      %p163 = scmp.ne.s32.totalorder %s154, %s155
      %p164 = scmp.eq.s32.totalorder %s27, 0
      %p165 = por %p163, %p164
      %p166 = scmp.ne.s32.totalorder %s154, %s155
      %p167 = scmp.eq.s32.totalorder %s28, 1
      %p168 = por %p166, %p167
      %p170 = scmp.ne.s32.totalorder %s155, %s169
      %p171 = scmp.eq.s32.totalorder %s28, 0
      %p172 = por %p170, %p171
      %s174 = sadd.s32 %s173, 1
      %p177 = scmp.eq.s32.totalorder %s22, 1
      %p178 = scmp.ne.s32.totalorder %s173, %s175
      %p179 = scmp.eq.s32.totalorder %s22, 0
      %p180 = por %p178, %p179
      %p181 = scmp.ne.s32.totalorder %s173, %s175
      %p182 = scmp.eq.s32.totalorder %s27, 1
      %p183 = por %p181, %p182
      %p184 = scmp.ne.s32.totalorder %s175, %s176
      %p185 = scmp.eq.s32.totalorder %s27, 0
      %p186 = por %p184, %p185
      %p187 = scmp.ne.s32.totalorder %s175, %s176
      %p188 = scmp.eq.s32.totalorder %s28, 1
      %p189 = por %p187, %p188
      %p191 = scmp.ne.s32.totalorder %s176, %s190
      %p192 = scmp.eq.s32.totalorder %s28, 0
      %p193 = por %p191, %p192
      %s195 = sadd.s32 %s194, 1
      %p198 = scmp.eq.s32.totalorder %s22, 1
      %p199 = scmp.ne.s32.totalorder %s194, %s196
      %p200 = scmp.eq.s32.totalorder %s22, 0
      %p201 = por %p199, %p200
      %p202 = scmp.ne.s32.totalorder %s194, %s196
      %p203 = scmp.eq.s32.totalorder %s27, 1
      %p204 = por %p202, %p203
      %p205 = scmp.ne.s32.totalorder %s196, %s197
      %p206 = scmp.eq.s32.totalorder %s27, 0
      %p207 = por %p205, %p206
      %p208 = scmp.ne.s32.totalorder %s196, %s197
      %p209 = scmp.eq.s32.totalorder %s28, 1
      %p210 = por %p208, %p209
      %p212 = scmp.ne.s32.totalorder %s197, %s211
      %p213 = scmp.eq.s32.totalorder %s28, 0
      %p214 = por %p212, %p213
      %s216 = sadd.s32 %s215, 1
      %p219 = scmp.eq.s32.totalorder %s22, 1
      %p220 = scmp.ne.s32.totalorder %s215, %s217
      %p221 = scmp.eq.s32.totalorder %s22, 0
      %p222 = por %p220, %p221
      %p223 = scmp.ne.s32.totalorder %s215, %s217
      %p224 = scmp.eq.s32.totalorder %s27, 1
      %p225 = por %p223, %p224
      %p226 = scmp.ne.s32.totalorder %s217, %s218
      %p227 = scmp.eq.s32.totalorder %s27, 0
      %p228 = por %p226, %p227
      %p229 = scmp.ne.s32.totalorder %s217, %s218
      %p230 = scmp.eq.s32.totalorder %s28, 1
      %p231 = por %p229, %p230
      %p233 = scmp.ne.s32.totalorder %s218, %s232
      %p234 = scmp.eq.s32.totalorder %s28, 0
      %p235 = por %p233, %p234
      %s237 = sadd.s32 %s236, 1
      %p240 = scmp.eq.s32.totalorder %s22, 1
      %p241 = scmp.ne.s32.totalorder %s236, %s238
      %p242 = scmp.eq.s32.totalorder %s22, 0
      %p243 = por %p241, %p242
      %p244 = scmp.ne.s32.totalorder %s236, %s238
      %p245 = scmp.eq.s32.totalorder %s27, 1
      %p246 = por %p244, %p245
      %p247 = scmp.ne.s32.totalorder %s238, %s239
      %p248 = scmp.eq.s32.totalorder %s27, 0
      %p249 = por %p247, %p248
      %p250 = scmp.ne.s32.totalorder %s238, %s239
      %p251 = scmp.eq.s32.totalorder %s28, 1
      %p252 = por %p250, %p251
      %p254 = scmp.ne.s32.totalorder %s239, %s253
      %p255 = scmp.eq.s32.totalorder %s28, 0
      %p256 = por %p254, %p255
      %s258 = sadd.s32 %s257, 1
      %p261 = scmp.eq.s32.totalorder %s22, 1
      %p262 = scmp.ne.s32.totalorder %s257, %s259
      %p263 = scmp.eq.s32.totalorder %s22, 0
      %p264 = por %p262, %p263
      %p265 = scmp.ne.s32.totalorder %s257, %s259
      %p266 = scmp.eq.s32.totalorder %s27, 1
      %p267 = por %p265, %p266
      %p268 = scmp.ne.s32.totalorder %s259, %s260
      %p269 = scmp.eq.s32.totalorder %s27, 0
      %p270 = por %p268, %p269
      %p271 = scmp.ne.s32.totalorder %s259, %s260
      %p272 = scmp.eq.s32.totalorder %s28, 1
      %p273 = por %p271, %p272
      %p275 = scmp.ne.s32.totalorder %s260, %s274
      %p276 = scmp.eq.s32.totalorder %s28, 0
      %p277 = por %p275, %p276
      %s279 = sadd.s32 %s278, 1
      %p282 = scmp.eq.s32.totalorder %s22, 1
      %p283 = scmp.ne.s32.totalorder %s278, %s280
      %p284 = scmp.eq.s32.totalorder %s22, 0
      %p285 = por %p283, %p284
      %p286 = scmp.ne.s32.totalorder %s278, %s280
      %p287 = scmp.eq.s32.totalorder %s27, 1
      %p288 = por %p286, %p287
      %p289 = scmp.ne.s32.totalorder %s280, %s281
      %p290 = scmp.eq.s32.totalorder %s27, 0
      %p291 = por %p289, %p290
      %p292 = scmp.ne.s32.totalorder %s280, %s281
      %p293 = scmp.eq.s32.totalorder %s28, 1
      %p294 = por %p292, %p293
      %p296 = scmp.ne.s32.totalorder %s281, %s295
      %p297 = scmp.eq.s32.totalorder %s28, 0
      %p298 = por %p296, %p297
      %s300 = sadd.s32 %s299, 1
      %p303 = scmp.eq.s32.totalorder %s22, 1
      %p304 = scmp.ne.s32.totalorder %s299, %s301
      %p305 = scmp.eq.s32.totalorder %s22, 0
      %p306 = por %p304, %p305
      %p307 = scmp.ne.s32.totalorder %s299, %s301
      %p308 = scmp.eq.s32.totalorder %s27, 1
      %p309 = por %p307, %p308
      %p310 = scmp.ne.s32.totalorder %s301, %s302
      %p311 = scmp.eq.s32.totalorder %s27, 0
      %p312 = por %p310, %p311
      %p313 = scmp.ne.s32.totalorder %s301, %s302
      %p314 = scmp.eq.s32.totalorder %s28, 1
      %p315 = por %p313, %p314
      %p317 = scmp.ne.s32.totalorder %s302, %s316
      %p318 = scmp.eq.s32.totalorder %s28, 0
      %p319 = por %p317, %p318
      %s320 = ssub.s32 %s29, %s41
      %s321 = ssub.s32 %s30, %s37
      %s322 = sor.u32 %s320, %s321
      %p323 = scmp.eq.s32.totalorder %s322, 0
      %s325 = sadd.s32 %s324, 1
      %s326 = scalar_select %p323, %s324, %s325
      %p329 = pneg %p323
      %p330 = scmp.eq.s32.totalorder %s22, 1
      %p331 = por %p329, %p330
      %p332 = scmp.ne.s32.totalorder %s324, %s327
      %p333 = scmp.eq.s32.totalorder %s22, 0
      %p334 = por %p332, %p333
      %p335 = scmp.ne.s32.totalorder %s324, %s327
      %p336 = scmp.eq.s32.totalorder %s27, 1
      %p337 = por %p335, %p336
      %p338 = scmp.ne.s32.totalorder %s327, %s328
      %p339 = scmp.eq.s32.totalorder %s27, 0
      %p340 = por %p338, %p339
      %p341 = scmp.ne.s32.totalorder %s327, %s328
      %p342 = scmp.eq.s32.totalorder %s28, 1
      %p343 = por %p341, %p342
      %p345 = scmp.ne.s32.totalorder %s328, %s344
      %p346 = scmp.eq.s32.totalorder %s28, 0
      %p347 = por %p345, %p346
      %p348 = scmp.le.s32.totalorder 1, %s22
      %p349 = scmp.lt.s32.totalorder %s22, 3
      %p350 = pnand %p348, %p349
      %p351 = pneg %p350
      // Predicated region
      $region9: #{tpu_custom_call.1} parent=5 // pred_check
        _
      $region10: #{tpu_custom_call.1} parent=5 // pred_check_branch
        %353 = sbr.rel (%p350) target = $region12
      $region11: #{tpu_custom_call.1} parent=5 // pred_region
        %s354 = ssub.s32 %s22, 1
        // Predicated region
        $region13: #{tpu_custom_call.1} parent=11 // pred_check
          %p355 = pneg %p81
        $region14: #{tpu_custom_call.1} parent=11 // pred_check_branch
          %357 = sbr.rel (%p355) target = $region16
        $region15: #{tpu_custom_call.1} parent=11 // pred_region
          _
        $region16: #{tpu_custom_call.1} parent=11 // pred_fallthru
          _
        // Predicated region
        $region17: #{tpu_custom_call.1} parent=11 // pred_check
          %p358 = pneg %p102
        $region18: #{tpu_custom_call.1} parent=11 // pred_check_branch
          %360 = sbr.rel (%p358) target = $region20
        $region19: #{tpu_custom_call.1} parent=11 // pred_region
          _
        $region20: #{tpu_custom_call.1} parent=11 // pred_fallthru
          _
        // Predicated region
        $region21: #{tpu_custom_call.1} parent=11 // pred_check
          %p361 = pneg %p123
        $region22: #{tpu_custom_call.1} parent=11 // pred_check_branch
          %363 = sbr.rel (%p361) target = $region24
        $region23: #{tpu_custom_call.1} parent=11 // pred_region
          _
        $region24: #{tpu_custom_call.1} parent=11 // pred_fallthru
          _
        // Predicated region
        $region25: #{tpu_custom_call.1} parent=11 // pred_check
          %p364 = pneg %p144
        $region26: #{tpu_custom_call.1} parent=11 // pred_check_branch
          %366 = sbr.rel (%p364) target = $region28
        $region27: #{tpu_custom_call.1} parent=11 // pred_region
          _
        $region28: #{tpu_custom_call.1} parent=11 // pred_fallthru
          _
        // Predicated region
        $region29: #{tpu_custom_call.1} parent=11 // pred_check
          %p367 = pneg %p165
        $region30: #{tpu_custom_call.1} parent=11 // pred_check_branch
          %369 = sbr.rel (%p367) target = $region32
        $region31: #{tpu_custom_call.1} parent=11 // pred_region
          _
        $region32: #{tpu_custom_call.1} parent=11 // pred_fallthru
          _
        // Predicated region
        $region33: #{tpu_custom_call.1} parent=11 // pred_check
          %p370 = pneg %p186
        $region34: #{tpu_custom_call.1} parent=11 // pred_check_branch
          %372 = sbr.rel (%p370) target = $region36
        $region35: #{tpu_custom_call.1} parent=11 // pred_region
          _
        $region36: #{tpu_custom_call.1} parent=11 // pred_fallthru
          _
        // Predicated region
        $region37: #{tpu_custom_call.1} parent=11 // pred_check
          %p373 = pneg %p207
        $region38: #{tpu_custom_call.1} parent=11 // pred_check_branch
          %375 = sbr.rel (%p373) target = $region40
        $region39: #{tpu_custom_call.1} parent=11 // pred_region
          _
        $region40: #{tpu_custom_call.1} parent=11 // pred_fallthru
          _
        // Predicated region
        $region41: #{tpu_custom_call.1} parent=11 // pred_check
          %p376 = pneg %p228
        $region42: #{tpu_custom_call.1} parent=11 // pred_check_branch
          %378 = sbr.rel (%p376) target = $region44
        $region43: #{tpu_custom_call.1} parent=11 // pred_region
          _
        $region44: #{tpu_custom_call.1} parent=11 // pred_fallthru
          _
        // Predicated region
        $region45: #{tpu_custom_call.1} parent=11 // pred_check
          %p379 = pneg %p249
        $region46: #{tpu_custom_call.1} parent=11 // pred_check_branch
          %381 = sbr.rel (%p379) target = $region48
        $region47: #{tpu_custom_call.1} parent=11 // pred_region
          _
        $region48: #{tpu_custom_call.1} parent=11 // pred_fallthru
          _
        // Predicated region
        $region49: #{tpu_custom_call.1} parent=11 // pred_check
          %p382 = pneg %p270
        $region50: #{tpu_custom_call.1} parent=11 // pred_check_branch
          %384 = sbr.rel (%p382) target = $region52
        $region51: #{tpu_custom_call.1} parent=11 // pred_region
          _
        $region52: #{tpu_custom_call.1} parent=11 // pred_fallthru
          _
        // Predicated region
        $region53: #{tpu_custom_call.1} parent=11 // pred_check
          %p385 = pneg %p291
        $region54: #{tpu_custom_call.1} parent=11 // pred_check_branch
          %387 = sbr.rel (%p385) target = $region56
        $region55: #{tpu_custom_call.1} parent=11 // pred_region
          _
        $region56: #{tpu_custom_call.1} parent=11 // pred_fallthru
          _
        // Predicated region
        $region57: #{tpu_custom_call.1} parent=11 // pred_check
          %p388 = pneg %p312
        $region58: #{tpu_custom_call.1} parent=11 // pred_check_branch
          %390 = sbr.rel (%p388) target = $region60
        $region59: #{tpu_custom_call.1} parent=11 // pred_region
          _
        $region60: #{tpu_custom_call.1} parent=11 // pred_fallthru
          _
      $region12: #{tpu_custom_call.1} parent=5 // pred_fallthru
        _
      %p391 = scmp.lt.s32.totalorder %s22, 2
      // Predicated region
      $region61: #{tpu_custom_call.1} parent=5 // pred_check
        %p392 = pneg %p391
      $region62: #{tpu_custom_call.1} parent=5 // pred_check_branch
        %394 = sbr.rel (%p392) target = $region64
      $region63: #{tpu_custom_call.1} parent=5 // pred_region
        // Predicated region
        $region65: #{tpu_custom_call.1} parent=63 // pred_check
          %p395 = pneg %p54
        $region66: #{tpu_custom_call.1} parent=63 // pred_check_branch
          %397 = sbr.rel (%p395) target = $region68
        $region67: #{tpu_custom_call.1} parent=63 // pred_region
          %p398 = scmp.lt.s32.totalorder %s29, 1
          %s399 = scalar_select %p398, %s29, 1
          %s400 = smul.addr %s399, 8
          %s401 = scalar_lea.vmem %s0, %s400
        $region68: #{tpu_custom_call.1} parent=63 // pred_fallthru
          _
      $region64: #{tpu_custom_call.1} parent=5 // pred_fallthru
        _
      %p402 = scmp.le.s32.totalorder 1, %s22
      %p403 = scmp.lt.s32.totalorder %s22, 3
      %p404 = pnand %p402, %p403
      %p405 = pneg %p404
      // Predicated region
      $region69: #{tpu_custom_call.1} parent=5 // pred_check
        _
      $region70: #{tpu_custom_call.1} parent=5 // pred_check_branch
        %407 = sbr.rel (%p404) target = $region72
      $region71: #{tpu_custom_call.1} parent=5 // pred_region
        %s408 = ssub.s32 %s22, 1
        %p409 = scmp.lt.s32.totalorder %s31, 1
        %s410 = scalar_select %p409, %s31, 1
        %s411 = smul.addr %s410, 8
        %s412 = scalar_lea.vmem %s0, %s411
        %p413 = pneg %p60
        %p414 = pneg %p57
        %p415 = pneg %p81
        %p416 = pneg %p78
        %p417 = pneg %p102
        %p418 = pneg %p99
        %p419 = pneg %p123
        %p420 = pneg %p120
        %p421 = pneg %p144
        %p422 = pneg %p141
        %p423 = pneg %p165
        %p424 = pneg %p162
        %p425 = pneg %p186
        %p426 = pneg %p183
        %p427 = pneg %p207
        %p428 = pneg %p204
        %p429 = pneg %p228
        %p430 = pneg %p225
        %p431 = pneg %p249
        %p432 = pneg %p246
        %p433 = pneg %p270
        %p434 = pneg %p267
        %p435 = pneg %p291
        %p436 = pneg %p288
        %p437 = pneg %p312
        %p438 = pneg %p309
        %p439 = pneg %p340
        %p440 = pneg %p337
        %s441 = sand.u32 %s327, 1
        %s442 = scalar_lea.sflag [#allocation6], %s441
        %s443 = sand.u32 %s327, 1
        %s444 = smul.addr %s443, 8
        %s445 = scalar_lea.vmem [#allocation5], %s444
        %p446 = scmp.lt.s32.totalorder %s31, 1
        %s447 = scalar_select %p446, %s31, 1
        %s448 = smul.addr %s447, 8
        %s449 = scalar_lea.vmem %s0, %s448
        %p451 = scmp.eq.s32.totalorder %s32, 0
        // Predicated region
        $region73: #{tpu_custom_call.1} parent=71 // pred_check
          %p452 = pneg %p451
        $region74: #{tpu_custom_call.1} parent=71 // pred_check_branch
          %454 = sbr.rel (%p452) target = $region76
        $region75: #{tpu_custom_call.1} parent=71 // pred_region
          %v455 = vld [vmem:[%s449] sm:$0xff]
          %v456 = vld [vmem:[%s1] sm:$0x1]
          %v457 = vld [vmem:[%s2] sm:$0x1]
          %vm458 = vcmask 261120
          %v459 = vsel %vm458, %v455, 0.0
          %460 = vadd.xlane.f32.xlu0 %v459
          %v461 = vpop.xlane.xlu0 %460
          %v462 = vrcp.pop 32.0
          %v463 = vmul.f32 %v461, %v462
          %v464 = vsub.f32 %v455, %v463
          %v465 = vmul.f32 %v464, %v464
          %v466 = vsel %vm458, %v465, 0.0
          %467 = vadd.xlane.f32.xlu0 %v466
          %v468 = vpop.xlane.xlu0 %467
          %v469 = vmul.f32 %v468, %v462
          %v470 = vadd.f32 %v469, 1e-05
          %v471 = vrsqrt.pop %v470
          %v472 = vmul.f32 %v464, %v471
          %v474 = vlaneseq
          %v475 = vshrl.u32 %v474, 7
          %v476 = vsub.s32 0, %v475
          %v477 = vrot.slane %v456, %v476
          %v479 = vmul.f32 %v472, %v477
          %v481 = vlaneseq
          %v482 = vshrl.u32 %v481, 7
          %v483 = vsub.s32 0, %v482
          %v484 = vrot.slane %v457, %v483
          %v486 = vadd.f32 %v479, %v484
          %v487 = vpack.c.bf16 %v486, %v486
          %v488 = vld [vmem:[%s3] sm:$0xf]
          %v489 = vld [vmem:[%s3 + $0x4] sm:$0xf]
          %v490 = vld [vmem:[%s3 + $0x8] sm:$0xf]
          %v491 = vld [vmem:[%s3 + $0xc] sm:$0xf]
          %v492 = vld [vmem:[%s4] sm:$0x1]
          %v494 = vlaneseq
          %v495 = vshrl.u32 %v494, 7
          %v496 = vsub.s32 0, %v495
          %v497 = vrot.slane %v492, %v496
          %v503 = vunpack.c.l.b16 %v488
          %v504 = vunpack.c.l.b16 %v489
          %v505 = vunpack.c.l.b16 %v490
          %v506 = vunpack.c.l.b16 %v491
          %v507 = vpack.c.b16 %v504, %v503
          %v508 = vpack.c.b16 %v506, %v505
          %v512 = vsel %vm458, %v487, 0
          %514 = vmatprep.subr.bf16.mxu0 0
          %515 = vmatpush1.bf16.msra.mxu0 0
          %516 = vmatprep.subr.bf16.mxu0 0
          %517 = vmatpush1.bf16.msra.mxu0 0
          %518 = vmatprep.subr.bf16.mxu0 0
          %519 = vmatpush1.bf16.msra.mxu0 0
          %520 = vmatprep.subr.bf16.mxu0 0
          %521 = vmatpush1.bf16.msra.mxu0 0
          %522 = vmatprep.subr.bf16.mxu0 0
          %523 = vmatpush1.bf16.msra.mxu0 0
          %524 = vmatprep.subr.bf16.mxu0 0
          %525 = vmatpush1.bf16.msra.mxu0 0
          %526 = vmatprep.subr.bf16.mxu0 0
          %527 = vmatpush1.bf16.msra.mxu0 %v508
          %528 = vmatprep.subr.bf16.mxu0 0
          %529 = vmatpush1.bf16.msra.mxu0 %v507
          %530 = vmatprep.subr.bf16.mxu0 0
          %531 = vmatpush2.bf16.msra.mxu0 0
          %532 = vmatprep.subr.bf16.mxu0 0
          %533 = vmatpush2.bf16.msra.mxu0 0
          %534 = vmatprep.subr.bf16.mxu0 0
          %535 = vmatpush2.bf16.msra.mxu0 0
          %536 = vmatprep.subr.bf16.mxu0 0
          %537 = vmatpush2.bf16.msra.mxu0 0
          %538 = vmatprep.subr.bf16.mxu0 0
          %539 = vmatpush2.bf16.msra.mxu0 0
          %540 = vmatprep.subr.bf16.mxu0 0
          %541 = vmatpush2.bf16.msra.mxu0 0
          %542 = vmatprep.subr.bf16.mxu0 0
          %543 = vmatpush2.bf16.msra.mxu0 0
          %544 = vmatprep.subr.bf16.mxu0 0
          %545 = vmatpush2.bf16.msra.mxu0 0
          %546 = vmatprep.mubr.bf16.mxu0 0
          %547 = vmatmul.mubr.bf16.gmra.mxu0 %v512
          %v548 = vpop.f32.mrf.mxu0
          %v549 = vadd.f32 %v497, %v548
          %v550 = vpop.f32.mrf.mxu0
          %v551 = vpop.f32.mrf.mxu0
          %v552 = vpop.f32.mrf.mxu0
          %553 = vdwg.mxu0
          %v554 = vpack.c.bf16 %v549, %v549
          %vm555 = vcmask 60416
          %556 = vst.msk [vmem:[#allocation2] sm:$0xf] %vm555, %v554
          %v558 = vunpack.c.l.b16 %v554
          %v559 = vpack.c.b16 %v558, %v558
          %560 = vrot.lane.b32.xlu0 %v559, 96
          %v561 = vpop.permute.xlu0 %560
          %563 = vst.msk [vmem:[#allocation3] sm:$0xf] %vm555, %v561
          %564 = vrot.lane.b32.xlu0 %v559, 64
          %v565 = vpop.permute.xlu0 %564
          %567 = vst.msk [vmem:[#allocation4] sm:$0xf] %vm555, %v565
          %568 = vrot.lane.b32.xlu0 %v559, 120
          %v569 = vpop.permute.xlu0 %568
          %s571 = scalar_lea.vmem [#allocation2], 4
          %572 = vst.msk [vmem:[%s571] sm:$0xf] %vm555, %v569
          %573 = vrot.lane.b32.xlu0 %v559, 88
          %v574 = vpop.permute.xlu0 %573
          %s576 = scalar_lea.vmem [#allocation3], 4
          %577 = vst.msk [vmem:[%s576] sm:$0xf] %vm555, %v574
          %578 = vrot.lane.b32.xlu0 %v559, 56
          %v579 = vpop.permute.xlu0 %578
          %s581 = scalar_lea.vmem [#allocation4], 4
          %582 = vst.msk [vmem:[%s581] sm:$0xf] %vm555, %v579
          %583 = vrot.lane.b32.xlu0 %v559, 112
          %v584 = vpop.permute.xlu0 %583
          %s586 = scalar_lea.vmem [#allocation2], 8
          %587 = vst.msk [vmem:[%s586] sm:$0xf] %vm555, %v584
          %588 = vrot.lane.b32.xlu0 %v559, 80
          %v589 = vpop.permute.xlu0 %588
          %s591 = scalar_lea.vmem [#allocation3], 8
          %592 = vst.msk [vmem:[%s591] sm:$0xf] %vm555, %v589
          %593 = vrot.lane.b32.xlu0 %v559, 48
          %v594 = vpop.permute.xlu0 %593
          %s596 = scalar_lea.vmem [#allocation4], 8
          %597 = vst.msk [vmem:[%s596] sm:$0xf] %vm555, %v594
          %598 = vrot.lane.b32.xlu0 %v559, 104
          %v599 = vpop.permute.xlu0 %598
          %s601 = scalar_lea.vmem [#allocation2], 12
          %602 = vst.msk [vmem:[%s601] sm:$0xf] %vm555, %v599
          %603 = vrot.lane.b32.xlu0 %v559, 72
          %v604 = vpop.permute.xlu0 %603
          %s606 = scalar_lea.vmem [#allocation3], 12
          %607 = vst.msk [vmem:[%s606] sm:$0xf] %vm555, %v604
          %608 = vrot.lane.b32.xlu0 %v559, 40
          %v609 = vpop.permute.xlu0 %608
          %s611 = scalar_lea.vmem [#allocation4], 12
          %612 = vst.msk [vmem:[%s611] sm:$0xf] %vm555, %v609
        $region76: #{tpu_custom_call.1} parent=71 // pred_fallthru
          _
        %s613 = smul.u32 %s32, 8
        %s614 = sshra.s32 %s613, 3
        %s615 = sand.u32 %s613, 7
        %s616 = smul.addr %s614, 4
        %s617 = scalar_lea.vmem [#allocation2], %s616
        %v618 = vld [vmem:[%s617] sm:$0xf]
        %v619 = vld [vmem:[%s617 + $0x4] sm:$0xf]
        %v620 = vld [vmem:[%s617 + $0x8] sm:$0xf]
        %v621 = vld [vmem:[%s617 + $0xc] sm:$0xf]
        // While loop
        $region77: #{tpu_custom_call.1} parent=71 // loop_pre_header
          _
        $region78: #{tpu_custom_call.1} parent=71 // loop_header
          %s623 = sphi 0, %s625
          %p624 = scmp.ge.s32.totalorder %s623, %s32
          %v628 = vphi -inf, %v856
          %v629 = vphi -inf, %v857
          %v630 = vphi -inf, %v858
          %v631 = vphi -inf, %v859
          %v632 = vphi 0.0, %v900
          %v633 = vphi 0.0, %v901
          %v634 = vphi 0.0, %v902
          %v635 = vphi 0.0, %v903
          %v636 = vphi 0.0, %v1097
          %v637 = vphi 0.0, %v1098
          %v638 = vphi 0.0, %v1099
          %v639 = vphi 0.0, %v1100
        $region79: #{tpu_custom_call.1} parent=71 // loop_header_branch
          %627 = sbr.rel (%p624) target = $region83
        $region80: #{tpu_custom_call.1} parent=71 // loop_body
          %s640 = smul.u32 %s623, 8
          %s641 = sshra.s32 %s640, 3
          %s642 = sand.u32 %s640, 7
          %s643 = smul.addr %s641, 4
          %s644 = scalar_lea.vmem [#allocation3], %s643
          %v645 = vld [vmem:[%s644] sm:$0xf]
          %v646 = vld [vmem:[%s644 + $0x4] sm:$0xf]
          %v647 = vld [vmem:[%s644 + $0x8] sm:$0xf]
          %v648 = vld [vmem:[%s644 + $0xc] sm:$0xf]
          %s649 = smul.addr %s641, 4
          %s650 = scalar_lea.vmem [#allocation4], %s649
          %v651 = vld [vmem:[%s650] sm:$0xf]
          %v652 = vld [vmem:[%s650 + $0x4] sm:$0xf]
          %v653 = vld [vmem:[%s650 + $0x8] sm:$0xf]
          %v654 = vld [vmem:[%s650 + $0xc] sm:$0xf]
          %vm655 = vcmask 64512
          %v657 = vsel %vm655, %v618, 0
          %v660 = vsel %vm655, %v645, 0
          %662 = vmatprep.subr.bf16.mxu0 0
          %663 = vmatpush1.bf16.xpose.msra.mxu0 0
          %664 = vmatprep.subr.bf16.mxu0 0
          %665 = vmatpush1.bf16.xpose.msra.mxu0 0
          %666 = vmatprep.subr.bf16.mxu0 0
          %667 = vmatpush1.bf16.xpose.msra.mxu0 0
          %668 = vmatprep.subr.bf16.mxu0 0
          %669 = vmatpush1.bf16.xpose.msra.mxu0 0
          %670 = vmatprep.subr.bf16.mxu0 0
          %671 = vmatpush1.bf16.xpose.msra.mxu0 0
          %672 = vmatprep.subr.bf16.mxu0 0
          %673 = vmatpush1.bf16.xpose.msra.mxu0 0
          %674 = vmatprep.subr.bf16.mxu0 0
          %675 = vmatpush1.bf16.xpose.msra.mxu0 0
          %676 = vmatprep.subr.bf16.mxu0 0
          %677 = vmatpush1.bf16.xpose.msra.mxu0 %v660
          %678 = vmatprep.subr.bf16.mxu0 0
          %679 = vmatpush2.bf16.xpose.msra.mxu0 0
          %680 = vmatprep.subr.bf16.mxu0 0
          %681 = vmatpush2.bf16.xpose.msra.mxu0 0
          %682 = vmatprep.subr.bf16.mxu0 0
          %683 = vmatpush2.bf16.xpose.msra.mxu0 0
          %684 = vmatprep.subr.bf16.mxu0 0
          %685 = vmatpush2.bf16.xpose.msra.mxu0 0
          %686 = vmatprep.subr.bf16.mxu0 0
          %687 = vmatpush2.bf16.xpose.msra.mxu0 0
          %688 = vmatprep.subr.bf16.mxu0 0
          %689 = vmatpush2.bf16.xpose.msra.mxu0 0
          %690 = vmatprep.subr.bf16.mxu0 0
          %691 = vmatpush2.bf16.xpose.msra.mxu0 0
          %692 = vmatprep.subr.bf16.mxu0 0
          %693 = vmatpush2.bf16.xpose.msra.mxu0 0
          %694 = vmatprep.mubr.bf16.mxu0 0
          %695 = vmatmul.mubr.bf16.gmra.mxu0 %v657
          %v696 = vpop.f32.mrf.mxu0
          %v697 = vadd.f32 0.0, %v696
          %v698 = vpop.f32.mrf.mxu0
          %v699 = vpop.f32.mrf.mxu0
          %v700 = vpop.f32.mrf.mxu0
          %701 = vdwg.mxu0
          %v703 = vsel %vm655, %v619, 0
          %v706 = vsel %vm655, %v646, 0
          %708 = vmatprep.subr.bf16.mxu0 0
          %709 = vmatpush1.bf16.xpose.msra.mxu0 0
          %710 = vmatprep.subr.bf16.mxu0 0
          %711 = vmatpush1.bf16.xpose.msra.mxu0 0
          %712 = vmatprep.subr.bf16.mxu0 0
          %713 = vmatpush1.bf16.xpose.msra.mxu0 0
          %714 = vmatprep.subr.bf16.mxu0 0
          %715 = vmatpush1.bf16.xpose.msra.mxu0 0
          %716 = vmatprep.subr.bf16.mxu0 0
          %717 = vmatpush1.bf16.xpose.msra.mxu0 0
          %718 = vmatprep.subr.bf16.mxu0 0
          %719 = vmatpush1.bf16.xpose.msra.mxu0 0
          %720 = vmatprep.subr.bf16.mxu0 0
          %721 = vmatpush1.bf16.xpose.msra.mxu0 0
          %722 = vmatprep.subr.bf16.mxu0 0
          %723 = vmatpush1.bf16.xpose.msra.mxu0 %v706
          %724 = vmatprep.subr.bf16.mxu0 0
          %725 = vmatpush2.bf16.xpose.msra.mxu0 0
          %726 = vmatprep.subr.bf16.mxu0 0
          %727 = vmatpush2.bf16.xpose.msra.mxu0 0
          %728 = vmatprep.subr.bf16.mxu0 0
          %729 = vmatpush2.bf16.xpose.msra.mxu0 0
          %730 = vmatprep.subr.bf16.mxu0 0
          %731 = vmatpush2.bf16.xpose.msra.mxu0 0
          %732 = vmatprep.subr.bf16.mxu0 0
          %733 = vmatpush2.bf16.xpose.msra.mxu0 0
          %734 = vmatprep.subr.bf16.mxu0 0
          %735 = vmatpush2.bf16.xpose.msra.mxu0 0
          %736 = vmatprep.subr.bf16.mxu0 0
          %737 = vmatpush2.bf16.xpose.msra.mxu0 0
          %738 = vmatprep.subr.bf16.mxu0 0
          %739 = vmatpush2.bf16.xpose.msra.mxu0 0
          %740 = vmatprep.mubr.bf16.mxu0 0
          %741 = vmatmul.mubr.bf16.gmra.mxu0 %v703
          %v742 = vpop.f32.mrf.mxu0
          %v743 = vadd.f32 0.0, %v742
          %v744 = vpop.f32.mrf.mxu0
          %v745 = vpop.f32.mrf.mxu0
          %v746 = vpop.f32.mrf.mxu0
          %747 = vdwg.mxu0
          %v749 = vsel %vm655, %v620, 0
          %v752 = vsel %vm655, %v647, 0
          %754 = vmatprep.subr.bf16.mxu0 0
          %755 = vmatpush1.bf16.xpose.msra.mxu0 0
          %756 = vmatprep.subr.bf16.mxu0 0
          %757 = vmatpush1.bf16.xpose.msra.mxu0 0
          %758 = vmatprep.subr.bf16.mxu0 0
          %759 = vmatpush1.bf16.xpose.msra.mxu0 0
          %760 = vmatprep.subr.bf16.mxu0 0
          %761 = vmatpush1.bf16.xpose.msra.mxu0 0
          %762 = vmatprep.subr.bf16.mxu0 0
          %763 = vmatpush1.bf16.xpose.msra.mxu0 0
          %764 = vmatprep.subr.bf16.mxu0 0
          %765 = vmatpush1.bf16.xpose.msra.mxu0 0
          %766 = vmatprep.subr.bf16.mxu0 0
          %767 = vmatpush1.bf16.xpose.msra.mxu0 0
          %768 = vmatprep.subr.bf16.mxu0 0
          %769 = vmatpush1.bf16.xpose.msra.mxu0 %v752
          %770 = vmatprep.subr.bf16.mxu0 0
          %771 = vmatpush2.bf16.xpose.msra.mxu0 0
          %772 = vmatprep.subr.bf16.mxu0 0
          %773 = vmatpush2.bf16.xpose.msra.mxu0 0
          %774 = vmatprep.subr.bf16.mxu0 0
          %775 = vmatpush2.bf16.xpose.msra.mxu0 0
          %776 = vmatprep.subr.bf16.mxu0 0
          %777 = vmatpush2.bf16.xpose.msra.mxu0 0
          %778 = vmatprep.subr.bf16.mxu0 0
          %779 = vmatpush2.bf16.xpose.msra.mxu0 0
          %780 = vmatprep.subr.bf16.mxu0 0
          %781 = vmatpush2.bf16.xpose.msra.mxu0 0
          %782 = vmatprep.subr.bf16.mxu0 0
          %783 = vmatpush2.bf16.xpose.msra.mxu0 0
          %784 = vmatprep.subr.bf16.mxu0 0
          %785 = vmatpush2.bf16.xpose.msra.mxu0 0
          %786 = vmatprep.mubr.bf16.mxu0 0
          %787 = vmatmul.mubr.bf16.gmra.mxu0 %v749
          %v788 = vpop.f32.mrf.mxu0
          %v789 = vadd.f32 0.0, %v788
          %v790 = vpop.f32.mrf.mxu0
          %v791 = vpop.f32.mrf.mxu0
          %v792 = vpop.f32.mrf.mxu0
          %793 = vdwg.mxu0
          %v795 = vsel %vm655, %v621, 0
          %v798 = vsel %vm655, %v648, 0
          %800 = vmatprep.subr.bf16.mxu0 0
          %801 = vmatpush1.bf16.xpose.msra.mxu0 0
          %802 = vmatprep.subr.bf16.mxu0 0
          %803 = vmatpush1.bf16.xpose.msra.mxu0 0
          %804 = vmatprep.subr.bf16.mxu0 0
          %805 = vmatpush1.bf16.xpose.msra.mxu0 0
          %806 = vmatprep.subr.bf16.mxu0 0
          %807 = vmatpush1.bf16.xpose.msra.mxu0 0
          %808 = vmatprep.subr.bf16.mxu0 0
          %809 = vmatpush1.bf16.xpose.msra.mxu0 0
          %810 = vmatprep.subr.bf16.mxu0 0
          %811 = vmatpush1.bf16.xpose.msra.mxu0 0
          %812 = vmatprep.subr.bf16.mxu0 0
          %813 = vmatpush1.bf16.xpose.msra.mxu0 0
          %814 = vmatprep.subr.bf16.mxu0 0
          %815 = vmatpush1.bf16.xpose.msra.mxu0 %v798
          %816 = vmatprep.subr.bf16.mxu0 0
          %817 = vmatpush2.bf16.xpose.msra.mxu0 0
          %818 = vmatprep.subr.bf16.mxu0 0
          %819 = vmatpush2.bf16.xpose.msra.mxu0 0
          %820 = vmatprep.subr.bf16.mxu0 0
          %821 = vmatpush2.bf16.xpose.msra.mxu0 0
          %822 = vmatprep.subr.bf16.mxu0 0
          %823 = vmatpush2.bf16.xpose.msra.mxu0 0
          %824 = vmatprep.subr.bf16.mxu0 0
          %825 = vmatpush2.bf16.xpose.msra.mxu0 0
          %826 = vmatprep.subr.bf16.mxu0 0
          %827 = vmatpush2.bf16.xpose.msra.mxu0 0
          %828 = vmatprep.subr.bf16.mxu0 0
          %829 = vmatpush2.bf16.xpose.msra.mxu0 0
          %830 = vmatprep.subr.bf16.mxu0 0
          %831 = vmatpush2.bf16.xpose.msra.mxu0 0
          %832 = vmatprep.mubr.bf16.mxu0 0
          %833 = vmatmul.mubr.bf16.gmra.mxu0 %v795
          %v834 = vpop.f32.mrf.mxu0
          %v835 = vadd.f32 0.0, %v834
          %v836 = vpop.f32.mrf.mxu0
          %v837 = vpop.f32.mrf.mxu0
          %v838 = vpop.f32.mrf.mxu0
          %839 = vdwg.mxu0
          %v840 = vmul.f32 %v697, 0.35355338
          %v841 = vmul.f32 %v743, 0.35355338
          %v842 = vmul.f32 %v789, 0.35355338
          %v843 = vmul.f32 %v835, 0.35355338
          %v844 = vsel %vm655, %v840, -inf
          %845 = vmax.xlane.f32.xlu0 %v844
          %v846 = vpop.xlane.xlu0 %845
          %v847 = vsel %vm655, %v841, -inf
          %848 = vmax.xlane.f32.xlu0 %v847
          %v849 = vpop.xlane.xlu0 %848
          %v850 = vsel %vm655, %v842, -inf
          %851 = vmax.xlane.f32.xlu0 %v850
          %v852 = vpop.xlane.xlu0 %851
          %v853 = vsel %vm655, %v843, -inf
          %854 = vmax.xlane.f32.xlu0 %v853
          %v855 = vpop.xlane.xlu0 %854
          %v856 = vmax.f32 %v628, %v846
          %v857 = vmax.f32 %v629, %v849
          %v858 = vmax.f32 %v630, %v852
          %v859 = vmax.f32 %v631, %v855
          %v860 = vsub.f32 %v628, %v856
          %v861 = vsub.f32 %v629, %v857
          %v862 = vsub.f32 %v630, %v858
          %v863 = vsub.f32 %v631, %v859
          %v864 = vmul.f32 %v860, 1.442695
          %v865 = vpow.pop %v864
          %v866 = vmul.f32 %v861, 1.442695
          %v867 = vpow.pop %v866
          %v868 = vmul.f32 %v862, 1.442695
          %v869 = vpow.pop %v868
          %v870 = vmul.f32 %v863, 1.442695
          %v871 = vpow.pop %v870
          %v872 = vsub.f32 %v840, %v856
          %v873 = vsub.f32 %v841, %v857
          %v874 = vsub.f32 %v842, %v858
          %v875 = vsub.f32 %v843, %v859
          %v876 = vmul.f32 %v872, 1.442695
          %v877 = vpow.pop %v876
          %v878 = vmul.f32 %v873, 1.442695
          %v879 = vpow.pop %v878
          %v880 = vmul.f32 %v874, 1.442695
          %v881 = vpow.pop %v880
          %v882 = vmul.f32 %v875, 1.442695
          %v883 = vpow.pop %v882
          %v884 = vmul.f32 %v865, %v632
          %v885 = vmul.f32 %v867, %v633
          %v886 = vmul.f32 %v869, %v634
          %v887 = vmul.f32 %v871, %v635
          %v888 = vsel %vm655, %v877, 0.0
          %889 = vadd.xlane.f32.xlu0 %v888
          %v890 = vpop.xlane.xlu0 %889
          %v891 = vsel %vm655, %v879, 0.0
          %892 = vadd.xlane.f32.xlu0 %v891
          %v893 = vpop.xlane.xlu0 %892
          %v894 = vsel %vm655, %v881, 0.0
          %895 = vadd.xlane.f32.xlu0 %v894
          %v896 = vpop.xlane.xlu0 %895
          %v897 = vsel %vm655, %v883, 0.0
          %898 = vadd.xlane.f32.xlu0 %v897
          %v899 = vpop.xlane.xlu0 %898
          %v900 = vadd.f32 %v884, %v890
          %v901 = vadd.f32 %v885, %v893
          %v902 = vadd.f32 %v886, %v896
          %v903 = vadd.f32 %v887, %v899
          %v904 = vmul.f32 %v865, %v636
          %v905 = vmul.f32 %v867, %v637
          %v906 = vmul.f32 %v869, %v638
          %v907 = vmul.f32 %v871, %v639
          %v908 = vpack.c.bf16 %v877, %v877
          %v909 = vpack.c.bf16 %v879, %v879
          %v910 = vpack.c.bf16 %v881, %v881
          %v911 = vpack.c.bf16 %v883, %v883
          %v913 = vsel %vm655, %v908, 0
          %vm915 = vcmask 1043456
          %v917 = vsel %vm915, %v651, 0
          %919 = vmatprep.subr.bf16.mxu0 0
          %920 = vmatpush1.bf16.msra.mxu0 0
          %921 = vmatprep.subr.bf16.mxu0 0
          %922 = vmatpush1.bf16.msra.mxu0 0
          %923 = vmatprep.subr.bf16.mxu0 0
          %924 = vmatpush1.bf16.msra.mxu0 0
          %925 = vmatprep.subr.bf16.mxu0 0
          %926 = vmatpush1.bf16.msra.mxu0 0
          %927 = vmatprep.subr.bf16.mxu0 0
          %928 = vmatpush1.bf16.msra.mxu0 0
          %929 = vmatprep.subr.bf16.mxu0 0
          %930 = vmatpush1.bf16.msra.mxu0 0
          %931 = vmatprep.subr.bf16.mxu0 0
          %932 = vmatpush1.bf16.msra.mxu0 0
          %933 = vmatprep.subr.bf16.mxu0 0
          %934 = vmatpush1.bf16.msra.mxu0 %v917
          %935 = vmatprep.subr.bf16.mxu0 0
          %936 = vmatpush2.bf16.msra.mxu0 0
          %937 = vmatprep.subr.bf16.mxu0 0
          %938 = vmatpush2.bf16.msra.mxu0 0
          %939 = vmatprep.subr.bf16.mxu0 0
          %940 = vmatpush2.bf16.msra.mxu0 0
          %941 = vmatprep.subr.bf16.mxu0 0
          %942 = vmatpush2.bf16.msra.mxu0 0
          %943 = vmatprep.subr.bf16.mxu0 0
          %944 = vmatpush2.bf16.msra.mxu0 0
          %945 = vmatprep.subr.bf16.mxu0 0
          %946 = vmatpush2.bf16.msra.mxu0 0
          %947 = vmatprep.subr.bf16.mxu0 0
          %948 = vmatpush2.bf16.msra.mxu0 0
          %949 = vmatprep.subr.bf16.mxu0 0
          %950 = vmatpush2.bf16.msra.mxu0 0
          %951 = vmatprep.mubr.bf16.mxu0 0
          %952 = vmatmul.mubr.bf16.gmra.mxu0 %v913
          %v953 = vpop.f32.mrf.mxu0
          %v954 = vadd.f32 0.0, %v953
          %v955 = vpop.f32.mrf.mxu0
          %v956 = vpop.f32.mrf.mxu0
          %v957 = vpop.f32.mrf.mxu0
          %958 = vdwg.mxu0
          %v960 = vsel %vm655, %v909, 0
          %v963 = vsel %vm915, %v652, 0
          %965 = vmatprep.subr.bf16.mxu0 0
          %966 = vmatpush1.bf16.msra.mxu0 0
          %967 = vmatprep.subr.bf16.mxu0 0
          %968 = vmatpush1.bf16.msra.mxu0 0
          %969 = vmatprep.subr.bf16.mxu0 0
          %970 = vmatpush1.bf16.msra.mxu0 0
          %971 = vmatprep.subr.bf16.mxu0 0
          %972 = vmatpush1.bf16.msra.mxu0 0
          %973 = vmatprep.subr.bf16.mxu0 0
          %974 = vmatpush1.bf16.msra.mxu0 0
          %975 = vmatprep.subr.bf16.mxu0 0
          %976 = vmatpush1.bf16.msra.mxu0 0
          %977 = vmatprep.subr.bf16.mxu0 0
          %978 = vmatpush1.bf16.msra.mxu0 0
          %979 = vmatprep.subr.bf16.mxu0 0
          %980 = vmatpush1.bf16.msra.mxu0 %v963
          %981 = vmatprep.subr.bf16.mxu0 0
          %982 = vmatpush2.bf16.msra.mxu0 0
          %983 = vmatprep.subr.bf16.mxu0 0
          %984 = vmatpush2.bf16.msra.mxu0 0
          %985 = vmatprep.subr.bf16.mxu0 0
          %986 = vmatpush2.bf16.msra.mxu0 0
          %987 = vmatprep.subr.bf16.mxu0 0
          %988 = vmatpush2.bf16.msra.mxu0 0
          %989 = vmatprep.subr.bf16.mxu0 0
          %990 = vmatpush2.bf16.msra.mxu0 0
          %991 = vmatprep.subr.bf16.mxu0 0
          %992 = vmatpush2.bf16.msra.mxu0 0
          %993 = vmatprep.subr.bf16.mxu0 0
          %994 = vmatpush2.bf16.msra.mxu0 0
          %995 = vmatprep.subr.bf16.mxu0 0
          %996 = vmatpush2.bf16.msra.mxu0 0
          %997 = vmatprep.mubr.bf16.mxu0 0
          %998 = vmatmul.mubr.bf16.gmra.mxu0 %v960
          %v999 = vpop.f32.mrf.mxu0
          %v1000 = vadd.f32 0.0, %v999
          %v1001 = vpop.f32.mrf.mxu0
          %v1002 = vpop.f32.mrf.mxu0
          %v1003 = vpop.f32.mrf.mxu0
          %1004 = vdwg.mxu0
          %v1006 = vsel %vm655, %v910, 0
          %v1009 = vsel %vm915, %v653, 0
          %1011 = vmatprep.subr.bf16.mxu0 0
          %1012 = vmatpush1.bf16.msra.mxu0 0
          %1013 = vmatprep.subr.bf16.mxu0 0
          %1014 = vmatpush1.bf16.msra.mxu0 0
          %1015 = vmatprep.subr.bf16.mxu0 0
          %1016 = vmatpush1.bf16.msra.mxu0 0
          %1017 = vmatprep.subr.bf16.mxu0 0
          %1018 = vmatpush1.bf16.msra.mxu0 0
          %1019 = vmatprep.subr.bf16.mxu0 0
          %1020 = vmatpush1.bf16.msra.mxu0 0
          %1021 = vmatprep.subr.bf16.mxu0 0
          %1022 = vmatpush1.bf16.msra.mxu0 0
          %1023 = vmatprep.subr.bf16.mxu0 0
          %1024 = vmatpush1.bf16.msra.mxu0 0
          %1025 = vmatprep.subr.bf16.mxu0 0
          %1026 = vmatpush1.bf16.msra.mxu0 %v1009
          %1027 = vmatprep.subr.bf16.mxu0 0
          %1028 = vmatpush2.bf16.msra.mxu0 0
          %1029 = vmatprep.subr.bf16.mxu0 0
          %1030 = vmatpush2.bf16.msra.mxu0 0
          %1031 = vmatprep.subr.bf16.mxu0 0
          %1032 = vmatpush2.bf16.msra.mxu0 0
          %1033 = vmatprep.subr.bf16.mxu0 0
          %1034 = vmatpush2.bf16.msra.mxu0 0
          %1035 = vmatprep.subr.bf16.mxu0 0
          %1036 = vmatpush2.bf16.msra.mxu0 0
          %1037 = vmatprep.subr.bf16.mxu0 0
          %1038 = vmatpush2.bf16.msra.mxu0 0
          %1039 = vmatprep.subr.bf16.mxu0 0
          %1040 = vmatpush2.bf16.msra.mxu0 0
          %1041 = vmatprep.subr.bf16.mxu0 0
          %1042 = vmatpush2.bf16.msra.mxu0 0
          %1043 = vmatprep.mubr.bf16.mxu0 0
          %1044 = vmatmul.mubr.bf16.gmra.mxu0 %v1006
          %v1045 = vpop.f32.mrf.mxu0
          %v1046 = vadd.f32 0.0, %v1045
          %v1047 = vpop.f32.mrf.mxu0
          %v1048 = vpop.f32.mrf.mxu0
          %v1049 = vpop.f32.mrf.mxu0
          %1050 = vdwg.mxu0
          %v1052 = vsel %vm655, %v911, 0
          %v1055 = vsel %vm915, %v654, 0
          %1057 = vmatprep.subr.bf16.mxu0 0
          %1058 = vmatpush1.bf16.msra.mxu0 0
          %1059 = vmatprep.subr.bf16.mxu0 0
          %1060 = vmatpush1.bf16.msra.mxu0 0
          %1061 = vmatprep.subr.bf16.mxu0 0
          %1062 = vmatpush1.bf16.msra.mxu0 0
          %1063 = vmatprep.subr.bf16.mxu0 0
          %1064 = vmatpush1.bf16.msra.mxu0 0
          %1065 = vmatprep.subr.bf16.mxu0 0
          %1066 = vmatpush1.bf16.msra.mxu0 0
          %1067 = vmatprep.subr.bf16.mxu0 0
          %1068 = vmatpush1.bf16.msra.mxu0 0
          %1069 = vmatprep.subr.bf16.mxu0 0
          %1070 = vmatpush1.bf16.msra.mxu0 0
          %1071 = vmatprep.subr.bf16.mxu0 0
          %1072 = vmatpush1.bf16.msra.mxu0 %v1055
          %1073 = vmatprep.subr.bf16.mxu0 0
          %1074 = vmatpush2.bf16.msra.mxu0 0
          %1075 = vmatprep.subr.bf16.mxu0 0
          %1076 = vmatpush2.bf16.msra.mxu0 0
          %1077 = vmatprep.subr.bf16.mxu0 0
          %1078 = vmatpush2.bf16.msra.mxu0 0
          %1079 = vmatprep.subr.bf16.mxu0 0
          %1080 = vmatpush2.bf16.msra.mxu0 0
          %1081 = vmatprep.subr.bf16.mxu0 0
          %1082 = vmatpush2.bf16.msra.mxu0 0
          %1083 = vmatprep.subr.bf16.mxu0 0
          %1084 = vmatpush2.bf16.msra.mxu0 0
          %1085 = vmatprep.subr.bf16.mxu0 0
          %1086 = vmatpush2.bf16.msra.mxu0 0
          %1087 = vmatprep.subr.bf16.mxu0 0
          %1088 = vmatpush2.bf16.msra.mxu0 0
          %1089 = vmatprep.mubr.bf16.mxu0 0
          %1090 = vmatmul.mubr.bf16.gmra.mxu0 %v1052
          %v1091 = vpop.f32.mrf.mxu0
          %v1092 = vadd.f32 0.0, %v1091
          %v1093 = vpop.f32.mrf.mxu0
          %v1094 = vpop.f32.mrf.mxu0
          %v1095 = vpop.f32.mrf.mxu0
          %1096 = vdwg.mxu0
          %v1097 = vadd.f32 %v904, %v954
          %v1098 = vadd.f32 %v905, %v1000
          %v1099 = vadd.f32 %v906, %v1046
          %v1100 = vadd.f32 %v907, %v1092
        $region81: #{tpu_custom_call.1} parent=71 // loop_footer
          %s625 = sadd.s32 %s623, 1
        $region82: #{tpu_custom_call.1} parent=71 // loop_footer_branch
          %622 = sbr.rel target = $region78
        $region83: #{tpu_custom_call.1} parent=71 // loop_exit
          _
        %s1101 = smul.addr %s614, 4
        %s1102 = scalar_lea.vmem [#allocation3], %s1101
        %v1103 = vld [vmem:[%s1102] sm:$0xf]
        %v1104 = vld [vmem:[%s1102 + $0x4] sm:$0xf]
        %v1105 = vld [vmem:[%s1102 + $0x8] sm:$0xf]
        %v1106 = vld [vmem:[%s1102 + $0xc] sm:$0xf]
        %s1107 = smul.addr %s614, 4
        %s1108 = scalar_lea.vmem [#allocation4], %s1107
        %v1109 = vld [vmem:[%s1108] sm:$0xf]
        %v1110 = vld [vmem:[%s1108 + $0x4] sm:$0xf]
        %v1111 = vld [vmem:[%s1108 + $0x8] sm:$0xf]
        %v1112 = vld [vmem:[%s1108 + $0xc] sm:$0xf]
        %vm1113 = vcmask 64512
        %v1115 = vsel %vm1113, %v618, 0
        %v1118 = vsel %vm1113, %v1103, 0
        %1120 = vmatprep.subr.bf16.mxu0 0
        %1121 = vmatpush1.bf16.xpose.msra.mxu0 0
        %1122 = vmatprep.subr.bf16.mxu0 0
        %1123 = vmatpush1.bf16.xpose.msra.mxu0 0
        %1124 = vmatprep.subr.bf16.mxu0 0
        %1125 = vmatpush1.bf16.xpose.msra.mxu0 0
        %1126 = vmatprep.subr.bf16.mxu0 0
        %1127 = vmatpush1.bf16.xpose.msra.mxu0 0
        %1128 = vmatprep.subr.bf16.mxu0 0
        %1129 = vmatpush1.bf16.xpose.msra.mxu0 0
        %1130 = vmatprep.subr.bf16.mxu0 0
        %1131 = vmatpush1.bf16.xpose.msra.mxu0 0
        %1132 = vmatprep.subr.bf16.mxu0 0
        %1133 = vmatpush1.bf16.xpose.msra.mxu0 0
        %1134 = vmatprep.subr.bf16.mxu0 0
        %1135 = vmatpush1.bf16.xpose.msra.mxu0 %v1118
        %1136 = vmatprep.subr.bf16.mxu0 0
        %1137 = vmatpush2.bf16.xpose.msra.mxu0 0
        %1138 = vmatprep.subr.bf16.mxu0 0
        %1139 = vmatpush2.bf16.xpose.msra.mxu0 0
        %1140 = vmatprep.subr.bf16.mxu0 0
        %1141 = vmatpush2.bf16.xpose.msra.mxu0 0
        %1142 = vmatprep.subr.bf16.mxu0 0
        %1143 = vmatpush2.bf16.xpose.msra.mxu0 0
        %1144 = vmatprep.subr.bf16.mxu0 0
        %1145 = vmatpush2.bf16.xpose.msra.mxu0 0
        %1146 = vmatprep.subr.bf16.mxu0 0
        %1147 = vmatpush2.bf16.xpose.msra.mxu0 0
        %1148 = vmatprep.subr.bf16.mxu0 0
        %1149 = vmatpush2.bf16.xpose.msra.mxu0 0
        %1150 = vmatprep.subr.bf16.mxu0 0
        %1151 = vmatpush2.bf16.xpose.msra.mxu0 0
        %1152 = vmatprep.mubr.bf16.mxu0 0
        %1153 = vmatmul.mubr.bf16.gmra.mxu0 %v1115
        %v1154 = vpop.f32.mrf.mxu0
        %v1155 = vadd.f32 0.0, %v1154
        %v1156 = vpop.f32.mrf.mxu0
        %v1157 = vpop.f32.mrf.mxu0
        %v1158 = vpop.f32.mrf.mxu0
        %1159 = vdwg.mxu0
        %v1161 = vsel %vm1113, %v619, 0
        %v1164 = vsel %vm1113, %v1104, 0
        %1166 = vmatprep.subr.bf16.mxu0 0
        %1167 = vmatpush1.bf16.xpose.msra.mxu0 0
        %1168 = vmatprep.subr.bf16.mxu0 0
        %1169 = vmatpush1.bf16.xpose.msra.mxu0 0
        %1170 = vmatprep.subr.bf16.mxu0 0
        %1171 = vmatpush1.bf16.xpose.msra.mxu0 0
        %1172 = vmatprep.subr.bf16.mxu0 0
        %1173 = vmatpush1.bf16.xpose.msra.mxu0 0
        %1174 = vmatprep.subr.bf16.mxu0 0
        %1175 = vmatpush1.bf16.xpose.msra.mxu0 0
        %1176 = vmatprep.subr.bf16.mxu0 0
        %1177 = vmatpush1.bf16.xpose.msra.mxu0 0
        %1178 = vmatprep.subr.bf16.mxu0 0
        %1179 = vmatpush1.bf16.xpose.msra.mxu0 0
        %1180 = vmatprep.subr.bf16.mxu0 0
        %1181 = vmatpush1.bf16.xpose.msra.mxu0 %v1164
        %1182 = vmatprep.subr.bf16.mxu0 0
        %1183 = vmatpush2.bf16.xpose.msra.mxu0 0
        %1184 = vmatprep.subr.bf16.mxu0 0
        %1185 = vmatpush2.bf16.xpose.msra.mxu0 0
        %1186 = vmatprep.subr.bf16.mxu0 0
        %1187 = vmatpush2.bf16.xpose.msra.mxu0 0
        %1188 = vmatprep.subr.bf16.mxu0 0
        %1189 = vmatpush2.bf16.xpose.msra.mxu0 0
        %1190 = vmatprep.subr.bf16.mxu0 0
        %1191 = vmatpush2.bf16.xpose.msra.mxu0 0
        %1192 = vmatprep.subr.bf16.mxu0 0
        %1193 = vmatpush2.bf16.xpose.msra.mxu0 0
        %1194 = vmatprep.subr.bf16.mxu0 0
        %1195 = vmatpush2.bf16.xpose.msra.mxu0 0
        %1196 = vmatprep.subr.bf16.mxu0 0
        %1197 = vmatpush2.bf16.xpose.msra.mxu0 0
        %1198 = vmatprep.mubr.bf16.mxu0 0
        %1199 = vmatmul.mubr.bf16.gmra.mxu0 %v1161
        %v1200 = vpop.f32.mrf.mxu0
        %v1201 = vadd.f32 0.0, %v1200
        %v1202 = vpop.f32.mrf.mxu0
        %v1203 = vpop.f32.mrf.mxu0
        %v1204 = vpop.f32.mrf.mxu0
        %1205 = vdwg.mxu0
        %v1207 = vsel %vm1113, %v620, 0
        %v1210 = vsel %vm1113, %v1105, 0
        %1212 = vmatprep.subr.bf16.mxu0 0
        %1213 = vmatpush1.bf16.xpose.msra.mxu0 0
        %1214 = vmatprep.subr.bf16.mxu0 0
        %1215 = vmatpush1.bf16.xpose.msra.mxu0 0
        %1216 = vmatprep.subr.bf16.mxu0 0
        %1217 = vmatpush1.bf16.xpose.msra.mxu0 0
        %1218 = vmatprep.subr.bf16.mxu0 0
        %1219 = vmatpush1.bf16.xpose.msra.mxu0 0
        %1220 = vmatprep.subr.bf16.mxu0 0
        %1221 = vmatpush1.bf16.xpose.msra.mxu0 0
        %1222 = vmatprep.subr.bf16.mxu0 0
        %1223 = vmatpush1.bf16.xpose.msra.mxu0 0
        %1224 = vmatprep.subr.bf16.mxu0 0
        %1225 = vmatpush1.bf16.xpose.msra.mxu0 0
        %1226 = vmatprep.subr.bf16.mxu0 0
        %1227 = vmatpush1.bf16.xpose.msra.mxu0 %v1210
        %1228 = vmatprep.subr.bf16.mxu0 0
        %1229 = vmatpush2.bf16.xpose.msra.mxu0 0
        %1230 = vmatprep.subr.bf16.mxu0 0
        %1231 = vmatpush2.bf16.xpose.msra.mxu0 0
        %1232 = vmatprep.subr.bf16.mxu0 0
        %1233 = vmatpush2.bf16.xpose.msra.mxu0 0
        %1234 = vmatprep.subr.bf16.mxu0 0
        %1235 = vmatpush2.bf16.xpose.msra.mxu0 0
        %1236 = vmatprep.subr.bf16.mxu0 0
        %1237 = vmatpush2.bf16.xpose.msra.mxu0 0
        %1238 = vmatprep.subr.bf16.mxu0 0
        %1239 = vmatpush2.bf16.xpose.msra.mxu0 0
        %1240 = vmatprep.subr.bf16.mxu0 0
        %1241 = vmatpush2.bf16.xpose.msra.mxu0 0
        %1242 = vmatprep.subr.bf16.mxu0 0
        %1243 = vmatpush2.bf16.xpose.msra.mxu0 0
        %1244 = vmatprep.mubr.bf16.mxu0 0
        %1245 = vmatmul.mubr.bf16.gmra.mxu0 %v1207
        %v1246 = vpop.f32.mrf.mxu0
        %v1247 = vadd.f32 0.0, %v1246
        %v1248 = vpop.f32.mrf.mxu0
        %v1249 = vpop.f32.mrf.mxu0
        %v1250 = vpop.f32.mrf.mxu0
        %1251 = vdwg.mxu0
        %v1253 = vsel %vm1113, %v621, 0
        %v1256 = vsel %vm1113, %v1106, 0
        %1258 = vmatprep.subr.bf16.mxu0 0
        %1259 = vmatpush1.bf16.xpose.msra.mxu0 0
        %1260 = vmatprep.subr.bf16.mxu0 0
        %1261 = vmatpush1.bf16.xpose.msra.mxu0 0
        %1262 = vmatprep.subr.bf16.mxu0 0
        %1263 = vmatpush1.bf16.xpose.msra.mxu0 0
        %1264 = vmatprep.subr.bf16.mxu0 0
        %1265 = vmatpush1.bf16.xpose.msra.mxu0 0
        %1266 = vmatprep.subr.bf16.mxu0 0
        %1267 = vmatpush1.bf16.xpose.msra.mxu0 0
        %1268 = vmatprep.subr.bf16.mxu0 0
        %1269 = vmatpush1.bf16.xpose.msra.mxu0 0
        %1270 = vmatprep.subr.bf16.mxu0 0
        %1271 = vmatpush1.bf16.xpose.msra.mxu0 0
        %1272 = vmatprep.subr.bf16.mxu0 0
        %1273 = vmatpush1.bf16.xpose.msra.mxu0 %v1256
        %1274 = vmatprep.subr.bf16.mxu0 0
        %1275 = vmatpush2.bf16.xpose.msra.mxu0 0
        %1276 = vmatprep.subr.bf16.mxu0 0
        %1277 = vmatpush2.bf16.xpose.msra.mxu0 0
        %1278 = vmatprep.subr.bf16.mxu0 0
        %1279 = vmatpush2.bf16.xpose.msra.mxu0 0
        %1280 = vmatprep.subr.bf16.mxu0 0
        %1281 = vmatpush2.bf16.xpose.msra.mxu0 0
        %1282 = vmatprep.subr.bf16.mxu0 0
        %1283 = vmatpush2.bf16.xpose.msra.mxu0 0
        %1284 = vmatprep.subr.bf16.mxu0 0
        %1285 = vmatpush2.bf16.xpose.msra.mxu0 0
        %1286 = vmatprep.subr.bf16.mxu0 0
        %1287 = vmatpush2.bf16.xpose.msra.mxu0 0
        %1288 = vmatprep.subr.bf16.mxu0 0
        %1289 = vmatpush2.bf16.xpose.msra.mxu0 0
        %1290 = vmatprep.mubr.bf16.mxu0 0
        %1291 = vmatmul.mubr.bf16.gmra.mxu0 %v1253
        %v1292 = vpop.f32.mrf.mxu0
        %v1293 = vadd.f32 0.0, %v1292
        %v1294 = vpop.f32.mrf.mxu0
        %v1295 = vpop.f32.mrf.mxu0
        %v1296 = vpop.f32.mrf.mxu0
        %1297 = vdwg.mxu0
        %v1298 = vmul.f32 %v1155, 0.35355338
        %v1299 = vmul.f32 %v1201, 0.35355338
        %v1300 = vmul.f32 %v1247, 0.35355338
        %v1301 = vmul.f32 %v1293, 0.35355338
        %v1302 = vlaneseq
        %v1303 = vshrl.u32 %v1302, 7
        %v1304 = vstv %s613
        %v1305 = vadd.s32 %v1304, %v1303
        %v1306 = vlaneseq
        %v1307 = vand.u32 %v1306, 127
        %v1308 = vadd.s32 %v1304, %v1307
        %vm1309 = vcmp.le.s32.totalorder %v1308, %v1305
        %v1310 = vsel %vm1309, 1, 0
        %vm1311 = vcmp.eq.s32.totalorder %v1310, 1
        %v1312 = vsel %vm1311, %v1298, -1e+30
        %v1313 = vsel %vm1311, %v1299, -1e+30
        %v1314 = vsel %vm1311, %v1300, -1e+30
        %v1315 = vsel %vm1311, %v1301, -1e+30
        %v1316 = vsel %vm1113, %v1312, -inf
        %1317 = vmax.xlane.f32.xlu0 %v1316
        %v1318 = vpop.xlane.xlu0 %1317
        %v1319 = vsel %vm1113, %v1313, -inf
        %1320 = vmax.xlane.f32.xlu0 %v1319
        %v1321 = vpop.xlane.xlu0 %1320
        %v1322 = vsel %vm1113, %v1314, -inf
        %1323 = vmax.xlane.f32.xlu0 %v1322
        %v1324 = vpop.xlane.xlu0 %1323
        %v1325 = vsel %vm1113, %v1315, -inf
        %1326 = vmax.xlane.f32.xlu0 %v1325
        %v1327 = vpop.xlane.xlu0 %1326
        %v1328 = vmax.f32 %v628, %v1318
        %v1329 = vmax.f32 %v629, %v1321
        %v1330 = vmax.f32 %v630, %v1324
        %v1331 = vmax.f32 %v631, %v1327
        %v1332 = vsub.f32 %v628, %v1328
        %v1333 = vsub.f32 %v629, %v1329
        %v1334 = vsub.f32 %v630, %v1330
        %v1335 = vsub.f32 %v631, %v1331
        %v1336 = vmul.f32 %v1332, 1.442695
        %v1337 = vpow.pop %v1336
        %v1338 = vmul.f32 %v1333, 1.442695
        %v1339 = vpow.pop %v1338
        %v1340 = vmul.f32 %v1334, 1.442695
        %v1341 = vpow.pop %v1340
        %v1342 = vmul.f32 %v1335, 1.442695
        %v1343 = vpow.pop %v1342
        %v1344 = vsub.f32 %v1312, %v1328
        %v1345 = vsub.f32 %v1313, %v1329
        %v1346 = vsub.f32 %v1314, %v1330
        %v1347 = vsub.f32 %v1315, %v1331
        %v1348 = vmul.f32 %v1344, 1.442695
        %v1349 = vpow.pop %v1348
        %v1350 = vmul.f32 %v1345, 1.442695
        %v1351 = vpow.pop %v1350
        %v1352 = vmul.f32 %v1346, 1.442695
        %v1353 = vpow.pop %v1352
        %v1354 = vmul.f32 %v1347, 1.442695
        %v1355 = vpow.pop %v1354
        %v1356 = vmul.f32 %v1337, %v632
        %v1357 = vmul.f32 %v1339, %v633
        %v1358 = vmul.f32 %v1341, %v634
        %v1359 = vmul.f32 %v1343, %v635
        %v1360 = vsel %vm1113, %v1349, 0.0
        %1361 = vadd.xlane.f32.xlu0 %v1360
        %v1362 = vpop.xlane.xlu0 %1361
        %v1363 = vsel %vm1113, %v1351, 0.0
        %1364 = vadd.xlane.f32.xlu0 %v1363
        %v1365 = vpop.xlane.xlu0 %1364
        %v1366 = vsel %vm1113, %v1353, 0.0
        %1367 = vadd.xlane.f32.xlu0 %v1366
        %v1368 = vpop.xlane.xlu0 %1367
        %v1369 = vsel %vm1113, %v1355, 0.0
        %1370 = vadd.xlane.f32.xlu0 %v1369
        %v1371 = vpop.xlane.xlu0 %1370
        %v1372 = vadd.f32 %v1356, %v1362
        %v1373 = vadd.f32 %v1357, %v1365
        %v1374 = vadd.f32 %v1358, %v1368
        %v1375 = vadd.f32 %v1359, %v1371
        %v1376 = vmul.f32 %v1337, %v636
        %v1377 = vmul.f32 %v1339, %v637
        %v1378 = vmul.f32 %v1341, %v638
        %v1379 = vmul.f32 %v1343, %v639
        %v1380 = vpack.c.bf16 %v1349, %v1349
        %v1381 = vpack.c.bf16 %v1351, %v1351
        %v1382 = vpack.c.bf16 %v1353, %v1353
        %v1383 = vpack.c.bf16 %v1355, %v1355
        %v1385 = vsel %vm1113, %v1380, 0
        %vm1387 = vcmask 1043456
        %v1389 = vsel %vm1387, %v1109, 0
        %1391 = vmatprep.subr.bf16.mxu0 0
        %1392 = vmatpush1.bf16.msra.mxu0 0
        %1393 = vmatprep.subr.bf16.mxu0 0
        %1394 = vmatpush1.bf16.msra.mxu0 0
        %1395 = vmatprep.subr.bf16.mxu0 0
        %1396 = vmatpush1.bf16.msra.mxu0 0
        %1397 = vmatprep.subr.bf16.mxu0 0
        %1398 = vmatpush1.bf16.msra.mxu0 0
        %1399 = vmatprep.subr.bf16.mxu0 0
        %1400 = vmatpush1.bf16.msra.mxu0 0
        %1401 = vmatprep.subr.bf16.mxu0 0
        %1402 = vmatpush1.bf16.msra.mxu0 0
        %1403 = vmatprep.subr.bf16.mxu0 0
        %1404 = vmatpush1.bf16.msra.mxu0 0
        %1405 = vmatprep.subr.bf16.mxu0 0
        %1406 = vmatpush1.bf16.msra.mxu0 %v1389
        %1407 = vmatprep.subr.bf16.mxu0 0
        %1408 = vmatpush2.bf16.msra.mxu0 0
        %1409 = vmatprep.subr.bf16.mxu0 0
        %1410 = vmatpush2.bf16.msra.mxu0 0
        %1411 = vmatprep.subr.bf16.mxu0 0
        %1412 = vmatpush2.bf16.msra.mxu0 0
        %1413 = vmatprep.subr.bf16.mxu0 0
        %1414 = vmatpush2.bf16.msra.mxu0 0
        %1415 = vmatprep.subr.bf16.mxu0 0
        %1416 = vmatpush2.bf16.msra.mxu0 0
        %1417 = vmatprep.subr.bf16.mxu0 0
        %1418 = vmatpush2.bf16.msra.mxu0 0
        %1419 = vmatprep.subr.bf16.mxu0 0
        %1420 = vmatpush2.bf16.msra.mxu0 0
        %1421 = vmatprep.subr.bf16.mxu0 0
        %1422 = vmatpush2.bf16.msra.mxu0 0
        %1423 = vmatprep.mubr.bf16.mxu0 0
        %1424 = vmatmul.mubr.bf16.gmra.mxu0 %v1385
        %v1425 = vpop.f32.mrf.mxu0
        %v1426 = vadd.f32 0.0, %v1425
        %v1427 = vpop.f32.mrf.mxu0
        %v1428 = vpop.f32.mrf.mxu0
        %v1429 = vpop.f32.mrf.mxu0
        %1430 = vdwg.mxu0
        %v1432 = vsel %vm1113, %v1381, 0
        %v1435 = vsel %vm1387, %v1110, 0
        %1437 = vmatprep.subr.bf16.mxu0 0
        %1438 = vmatpush1.bf16.msra.mxu0 0
        %1439 = vmatprep.subr.bf16.mxu0 0
        %1440 = vmatpush1.bf16.msra.mxu0 0
        %1441 = vmatprep.subr.bf16.mxu0 0
        %1442 = vmatpush1.bf16.msra.mxu0 0
        %1443 = vmatprep.subr.bf16.mxu0 0
        %1444 = vmatpush1.bf16.msra.mxu0 0
        %1445 = vmatprep.subr.bf16.mxu0 0
        %1446 = vmatpush1.bf16.msra.mxu0 0
        %1447 = vmatprep.subr.bf16.mxu0 0
        %1448 = vmatpush1.bf16.msra.mxu0 0
        %1449 = vmatprep.subr.bf16.mxu0 0
        %1450 = vmatpush1.bf16.msra.mxu0 0
        %1451 = vmatprep.subr.bf16.mxu0 0
        %1452 = vmatpush1.bf16.msra.mxu0 %v1435
        %1453 = vmatprep.subr.bf16.mxu0 0
        %1454 = vmatpush2.bf16.msra.mxu0 0
        %1455 = vmatprep.subr.bf16.mxu0 0
        %1456 = vmatpush2.bf16.msra.mxu0 0
        %1457 = vmatprep.subr.bf16.mxu0 0
        %1458 = vmatpush2.bf16.msra.mxu0 0
        %1459 = vmatprep.subr.bf16.mxu0 0
        %1460 = vmatpush2.bf16.msra.mxu0 0
        %1461 = vmatprep.subr.bf16.mxu0 0
        %1462 = vmatpush2.bf16.msra.mxu0 0
        %1463 = vmatprep.subr.bf16.mxu0 0
        %1464 = vmatpush2.bf16.msra.mxu0 0
        %1465 = vmatprep.subr.bf16.mxu0 0
        %1466 = vmatpush2.bf16.msra.mxu0 0
        %1467 = vmatprep.subr.bf16.mxu0 0
        %1468 = vmatpush2.bf16.msra.mxu0 0
        %1469 = vmatprep.mubr.bf16.mxu0 0
        %1470 = vmatmul.mubr.bf16.gmra.mxu0 %v1432
        %v1471 = vpop.f32.mrf.mxu0
        %v1472 = vadd.f32 0.0, %v1471
        %v1473 = vpop.f32.mrf.mxu0
        %v1474 = vpop.f32.mrf.mxu0
        %v1475 = vpop.f32.mrf.mxu0
        %1476 = vdwg.mxu0
        %v1478 = vsel %vm1113, %v1382, 0
        %v1481 = vsel %vm1387, %v1111, 0
        %1483 = vmatprep.subr.bf16.mxu0 0
        %1484 = vmatpush1.bf16.msra.mxu0 0
        %1485 = vmatprep.subr.bf16.mxu0 0
        %1486 = vmatpush1.bf16.msra.mxu0 0
        %1487 = vmatprep.subr.bf16.mxu0 0
        %1488 = vmatpush1.bf16.msra.mxu0 0
        %1489 = vmatprep.subr.bf16.mxu0 0
        %1490 = vmatpush1.bf16.msra.mxu0 0
        %1491 = vmatprep.subr.bf16.mxu0 0
        %1492 = vmatpush1.bf16.msra.mxu0 0
        %1493 = vmatprep.subr.bf16.mxu0 0
        %1494 = vmatpush1.bf16.msra.mxu0 0
        %1495 = vmatprep.subr.bf16.mxu0 0
        %1496 = vmatpush1.bf16.msra.mxu0 0
        %1497 = vmatprep.subr.bf16.mxu0 0
        %1498 = vmatpush1.bf16.msra.mxu0 %v1481
        %1499 = vmatprep.subr.bf16.mxu0 0
        %1500 = vmatpush2.bf16.msra.mxu0 0
        %1501 = vmatprep.subr.bf16.mxu0 0
        %1502 = vmatpush2.bf16.msra.mxu0 0
        %1503 = vmatprep.subr.bf16.mxu0 0
        %1504 = vmatpush2.bf16.msra.mxu0 0
        %1505 = vmatprep.subr.bf16.mxu0 0
        %1506 = vmatpush2.bf16.msra.mxu0 0
        %1507 = vmatprep.subr.bf16.mxu0 0
        %1508 = vmatpush2.bf16.msra.mxu0 0
        %1509 = vmatprep.subr.bf16.mxu0 0
        %1510 = vmatpush2.bf16.msra.mxu0 0
        %1511 = vmatprep.subr.bf16.mxu0 0
        %1512 = vmatpush2.bf16.msra.mxu0 0
        %1513 = vmatprep.subr.bf16.mxu0 0
        %1514 = vmatpush2.bf16.msra.mxu0 0
        %1515 = vmatprep.mubr.bf16.mxu0 0
        %1516 = vmatmul.mubr.bf16.gmra.mxu0 %v1478
        %v1517 = vpop.f32.mrf.mxu0
        %v1518 = vadd.f32 0.0, %v1517
        %v1519 = vpop.f32.mrf.mxu0
        %v1520 = vpop.f32.mrf.mxu0
        %v1521 = vpop.f32.mrf.mxu0
        %1522 = vdwg.mxu0
        %v1524 = vsel %vm1113, %v1383, 0
        %v1527 = vsel %vm1387, %v1112, 0
        %1529 = vmatprep.subr.bf16.mxu0 0
        %1530 = vmatpush1.bf16.msra.mxu0 0
        %1531 = vmatprep.subr.bf16.mxu0 0
        %1532 = vmatpush1.bf16.msra.mxu0 0
        %1533 = vmatprep.subr.bf16.mxu0 0
        %1534 = vmatpush1.bf16.msra.mxu0 0
        %1535 = vmatprep.subr.bf16.mxu0 0
        %1536 = vmatpush1.bf16.msra.mxu0 0
        %1537 = vmatprep.subr.bf16.mxu0 0
        %1538 = vmatpush1.bf16.msra.mxu0 0
        %1539 = vmatprep.subr.bf16.mxu0 0
        %1540 = vmatpush1.bf16.msra.mxu0 0
        %1541 = vmatprep.subr.bf16.mxu0 0
        %1542 = vmatpush1.bf16.msra.mxu0 0
        %1543 = vmatprep.subr.bf16.mxu0 0
        %1544 = vmatpush1.bf16.msra.mxu0 %v1527
        %1545 = vmatprep.subr.bf16.mxu0 0
        %1546 = vmatpush2.bf16.msra.mxu0 0
        %1547 = vmatprep.subr.bf16.mxu0 0
        %1548 = vmatpush2.bf16.msra.mxu0 0
        %1549 = vmatprep.subr.bf16.mxu0 0
        %1550 = vmatpush2.bf16.msra.mxu0 0
        %1551 = vmatprep.subr.bf16.mxu0 0
        %1552 = vmatpush2.bf16.msra.mxu0 0
        %1553 = vmatprep.subr.bf16.mxu0 0
        %1554 = vmatpush2.bf16.msra.mxu0 0
        %1555 = vmatprep.subr.bf16.mxu0 0
        %1556 = vmatpush2.bf16.msra.mxu0 0
        %1557 = vmatprep.subr.bf16.mxu0 0
        %1558 = vmatpush2.bf16.msra.mxu0 0
        %1559 = vmatprep.subr.bf16.mxu0 0
        %1560 = vmatpush2.bf16.msra.mxu0 0
        %1561 = vmatprep.mubr.bf16.mxu0 0
        %1562 = vmatmul.mubr.bf16.gmra.mxu0 %v1524
        %v1563 = vpop.f32.mrf.mxu0
        %v1564 = vadd.f32 0.0, %v1563
        %v1565 = vpop.f32.mrf.mxu0
        %v1566 = vpop.f32.mrf.mxu0
        %v1567 = vpop.f32.mrf.mxu0
        %1568 = vdwg.mxu0
        %v1569 = vadd.f32 %v1376, %v1426
        %v1570 = vadd.f32 %v1377, %v1472
        %v1571 = vadd.f32 %v1378, %v1518
        %v1572 = vadd.f32 %v1379, %v1564
        %v1573 = vrcp.pop %v1372
        %v1574 = vrcp.pop %v1373
        %v1575 = vrcp.pop %v1374
        %v1576 = vrcp.pop %v1375
        %v1577 = vmul.f32 %v1569, %v1573
        %v1578 = vmul.f32 %v1570, %v1574
        %v1579 = vmul.f32 %v1571, %v1575
        %v1580 = vmul.f32 %v1572, %v1576
        %v1581 = vpack.c.bf16 %v1577, %v1577
        %v1582 = vpack.c.bf16 %v1578, %v1578
        %v1583 = vpack.c.bf16 %v1579, %v1579
        %v1584 = vpack.c.bf16 %v1580, %v1580
        %1586 = vrot.lane.b32.xlu0 %v1582, 8
        %v1587 = vpop.permute.xlu0 %1586
        %1589 = vrot.lane.b32.xlu0 %v1583, 16
        %v1590 = vpop.permute.xlu0 %1589
        %1592 = vrot.lane.b32.xlu0 %v1584, 24
        %v1593 = vpop.permute.xlu0 %1592
        %v1596 = vsel %vm1113, %v1581, %v1587
        %vm1597 = vcmask 130048
        %v1599 = vsel %vm1597, %v1596, %v1590
        %vm1600 = vcmask 195584
        %v1602 = vsel %vm1600, %v1599, %v1593
        %v1603 = vld [vmem:[%s5] sm:$0xf]
        %v1604 = vld [vmem:[%s5 + $0x4] sm:$0xf]
        %v1605 = vld [vmem:[%s5 + $0x8] sm:$0xf]
        %v1606 = vld [vmem:[%s5 + $0xc] sm:$0xf]
        %v1607 = vld [vmem:[%s6] sm:$0x1]
        %v1609 = vlaneseq
        %v1610 = vshrl.u32 %v1609, 7
        %v1611 = vsub.s32 0, %v1610
        %v1612 = vrot.slane %v1607, %v1611
        %v1618 = vunpack.c.l.b16 %v1603
        %v1619 = vunpack.c.l.b16 %v1604
        %v1620 = vunpack.c.l.b16 %v1605
        %v1621 = vunpack.c.l.b16 %v1606
        %v1622 = vpack.c.b16 %v1619, %v1618
        %v1623 = vpack.c.b16 %v1621, %v1620
        %vm1626 = vcmask 261120
        %v1627 = vsel %vm1626, %v1602, 0
        %1629 = vmatprep.subr.bf16.mxu0 0
        %1630 = vmatpush1.bf16.msra.mxu0 0
        %1631 = vmatprep.subr.bf16.mxu0 0
        %1632 = vmatpush1.bf16.msra.mxu0 0
        %1633 = vmatprep.subr.bf16.mxu0 0
        %1634 = vmatpush1.bf16.msra.mxu0 0
        %1635 = vmatprep.subr.bf16.mxu0 0
        %1636 = vmatpush1.bf16.msra.mxu0 0
        %1637 = vmatprep.subr.bf16.mxu0 0
        %1638 = vmatpush1.bf16.msra.mxu0 0
        %1639 = vmatprep.subr.bf16.mxu0 0
        %1640 = vmatpush1.bf16.msra.mxu0 0
        %1641 = vmatprep.subr.bf16.mxu0 0
        %1642 = vmatpush1.bf16.msra.mxu0 %v1623
        %1643 = vmatprep.subr.bf16.mxu0 0
        %1644 = vmatpush1.bf16.msra.mxu0 %v1622
        %1645 = vmatprep.subr.bf16.mxu0 0
        %1646 = vmatpush2.bf16.msra.mxu0 0
        %1647 = vmatprep.subr.bf16.mxu0 0
        %1648 = vmatpush2.bf16.msra.mxu0 0
        %1649 = vmatprep.subr.bf16.mxu0 0
        %1650 = vmatpush2.bf16.msra.mxu0 0
        %1651 = vmatprep.subr.bf16.mxu0 0
        %1652 = vmatpush2.bf16.msra.mxu0 0
        %1653 = vmatprep.subr.bf16.mxu0 0
        %1654 = vmatpush2.bf16.msra.mxu0 0
        %1655 = vmatprep.subr.bf16.mxu0 0
        %1656 = vmatpush2.bf16.msra.mxu0 0
        %1657 = vmatprep.subr.bf16.mxu0 0
        %1658 = vmatpush2.bf16.msra.mxu0 0
        %1659 = vmatprep.subr.bf16.mxu0 0
        %1660 = vmatpush2.bf16.msra.mxu0 0
        %1661 = vmatprep.mubr.bf16.mxu0 0
        %1662 = vmatmul.mubr.bf16.gmra.mxu0 %v1627
        %v1663 = vpop.f32.mrf.mxu0
        %v1664 = vadd.f32 %v1612, %v1663
        %v1665 = vpop.f32.mrf.mxu0
        %v1666 = vpop.f32.mrf.mxu0
        %v1667 = vpop.f32.mrf.mxu0
        %1668 = vdwg.mxu0
        %s1669 = scalar_lea.vmem %s449, %s613
        %v1670 = vld [vmem:[%s1669] sm:$0xff]
        %v1671 = vadd.f32 %v1670, %v1664
        %v1672 = vld [vmem:[%s7] sm:$0x1]
        %v1673 = vld [vmem:[%s8] sm:$0x1]
        %v1674 = vsel %vm1626, %v1671, 0.0
        %1675 = vadd.xlane.f32.xlu0 %v1674
        %v1676 = vpop.xlane.xlu0 %1675
        %v1677 = vrcp.pop 32.0
        %v1678 = vmul.f32 %v1676, %v1677
        %v1679 = vsub.f32 %v1671, %v1678
        %v1680 = vmul.f32 %v1679, %v1679
        %v1681 = vsel %vm1626, %v1680, 0.0
        %1682 = vadd.xlane.f32.xlu0 %v1681
        %v1683 = vpop.xlane.xlu0 %1682
        %v1684 = vmul.f32 %v1683, %v1677
        %v1685 = vadd.f32 %v1684, 1e-05
        %v1686 = vrsqrt.pop %v1685
        %v1687 = vmul.f32 %v1679, %v1686
        %v1689 = vlaneseq
        %v1690 = vshrl.u32 %v1689, 7
        %v1691 = vsub.s32 0, %v1690
        %v1692 = vrot.slane %v1672, %v1691
        %v1694 = vmul.f32 %v1687, %v1692
        %v1696 = vlaneseq
        %v1697 = vshrl.u32 %v1696, 7
        %v1698 = vsub.s32 0, %v1697
        %v1699 = vrot.slane %v1673, %v1698
        %v1701 = vadd.f32 %v1694, %v1699
        %v1702 = vpack.c.bf16 %v1701, %v1701
        %v1703 = vld [vmem:[%s9] sm:$0xf]
        %v1704 = vld [vmem:[%s9 + $0x4] sm:$0xf]
        %v1705 = vld [vmem:[%s9 + $0x8] sm:$0xf]
        %v1706 = vld [vmem:[%s9 + $0xc] sm:$0xf]
        %v1707 = vld [vmem:[%s10] sm:$0x1]
        %v1709 = vlaneseq
        %v1710 = vshrl.u32 %v1709, 7
        %v1711 = vsub.s32 0, %v1710
        %v1712 = vrot.slane %v1707, %v1711
        %v1718 = vunpack.c.l.b16 %v1703
        %v1719 = vunpack.c.l.b16 %v1704
        %v1720 = vunpack.c.l.b16 %v1705
        %v1721 = vunpack.c.l.b16 %v1706
        %v1722 = vpack.c.b16 %v1719, %v1718
        %v1723 = vpack.c.b16 %v1721, %v1720
        %v1727 = vsel %vm1626, %v1702, 0
        %1729 = vmatprep.subr.bf16.mxu0 0
        %1730 = vmatpush1.bf16.msra.mxu0 0
        %1731 = vmatprep.subr.bf16.mxu0 0
        %1732 = vmatpush1.bf16.msra.mxu0 0
        %1733 = vmatprep.subr.bf16.mxu0 0
        %1734 = vmatpush1.bf16.msra.mxu0 0
        %1735 = vmatprep.subr.bf16.mxu0 0
        %1736 = vmatpush1.bf16.msra.mxu0 0
        %1737 = vmatprep.subr.bf16.mxu0 0
        %1738 = vmatpush1.bf16.msra.mxu0 0
        %1739 = vmatprep.subr.bf16.mxu0 0
        %1740 = vmatpush1.bf16.msra.mxu0 0
        %1741 = vmatprep.subr.bf16.mxu0 0
        %1742 = vmatpush1.bf16.msra.mxu0 %v1723
        %1743 = vmatprep.subr.bf16.mxu0 0
        %1744 = vmatpush1.bf16.msra.mxu0 %v1722
        %1745 = vmatprep.subr.bf16.mxu0 0
        %1746 = vmatpush2.bf16.msra.mxu0 0
        %1747 = vmatprep.subr.bf16.mxu0 0
        %1748 = vmatpush2.bf16.msra.mxu0 0
        %1749 = vmatprep.subr.bf16.mxu0 0
        %1750 = vmatpush2.bf16.msra.mxu0 0
        %1751 = vmatprep.subr.bf16.mxu0 0
        %1752 = vmatpush2.bf16.msra.mxu0 0
        %1753 = vmatprep.subr.bf16.mxu0 0
        %1754 = vmatpush2.bf16.msra.mxu0 0
        %1755 = vmatprep.subr.bf16.mxu0 0
        %1756 = vmatpush2.bf16.msra.mxu0 0
        %1757 = vmatprep.subr.bf16.mxu0 0
        %1758 = vmatpush2.bf16.msra.mxu0 0
        %1759 = vmatprep.subr.bf16.mxu0 0
        %1760 = vmatpush2.bf16.msra.mxu0 0
        %1761 = vmatprep.mubr.bf16.mxu0 0
        %1762 = vmatmul.mubr.bf16.gmra.mxu0 %v1727
        %v1763 = vpop.f32.mrf.mxu0
        %v1764 = vadd.f32 %v1712, %v1763
        %v1765 = vpop.f32.mrf.mxu0
        %v1766 = vpop.f32.mrf.mxu0
        %v1767 = vpop.f32.mrf.mxu0
        %1768 = vdwg.mxu0
        %v1769 = vmul.f32 %v1764, %v1764
        %v1770 = vmul.f32 %v1764, %v1769
        %v1771 = vmul.f32 %v1770, 0.044715
        %v1772 = vadd.f32 %v1764, %v1771
        %v1773 = vmul.f32 %v1772, 0.7978846
        %v1774 = vtanh.pop %v1773
        %v1775 = vadd.f32 %v1774, 1.0
        %v1776 = vmul.f32 %v1775, 0.5
        %v1777 = vmul.f32 %v1764, %v1776
        %v1778 = vpack.c.bf16 %v1777, %v1777
        %v1779 = vld [vmem:[%s11] sm:$0xf]
        %v1780 = vld [vmem:[%s11 + $0x4] sm:$0xf]
        %v1781 = vld [vmem:[%s11 + $0x8] sm:$0xf]
        %v1782 = vld [vmem:[%s11 + $0xc] sm:$0xf]
        %v1783 = vld [vmem:[%s11 + $0x10] sm:$0xf]
        %v1784 = vld [vmem:[%s11 + $0x14] sm:$0xf]
        %v1785 = vld [vmem:[%s11 + $0x18] sm:$0xf]
        %v1786 = vld [vmem:[%s11 + $0x1c] sm:$0xf]
        %v1787 = vld [vmem:[%s11 + $0x20] sm:$0xf]
        %v1788 = vld [vmem:[%s11 + $0x24] sm:$0xf]
        %v1789 = vld [vmem:[%s11 + $0x28] sm:$0xf]
        %v1790 = vld [vmem:[%s11 + $0x2c] sm:$0xf]
        %v1791 = vld [vmem:[%s11 + $0x30] sm:$0xf]
        %v1792 = vld [vmem:[%s11 + $0x34] sm:$0xf]
        %v1793 = vld [vmem:[%s11 + $0x38] sm:$0xf]
        %v1794 = vld [vmem:[%s11 + $0x3c] sm:$0xf]
        %v1795 = vld [vmem:[%s12] sm:$0x1]
        %v1797 = vlaneseq
        %v1798 = vshrl.u32 %v1797, 7
        %v1799 = vsub.s32 0, %v1798
        %v1800 = vrot.slane %v1795, %v1799
        %v1818 = vunpack.c.l.b16 %v1779
        %v1819 = vunpack.c.l.b16 %v1780
        %v1820 = vunpack.c.l.b16 %v1781
        %v1821 = vunpack.c.l.b16 %v1782
        %v1822 = vunpack.c.l.b16 %v1783
        %v1823 = vunpack.c.l.b16 %v1784
        %v1824 = vunpack.c.l.b16 %v1785
        %v1825 = vunpack.c.l.b16 %v1786
        %v1826 = vunpack.c.l.b16 %v1787
        %v1827 = vunpack.c.l.b16 %v1788
        %v1828 = vunpack.c.l.b16 %v1789
        %v1829 = vunpack.c.l.b16 %v1790
        %v1830 = vunpack.c.l.b16 %v1791
        %v1831 = vunpack.c.l.b16 %v1792
        %v1832 = vunpack.c.l.b16 %v1793
        %v1833 = vunpack.c.l.b16 %v1794
        %v1834 = vpack.c.b16 %v1819, %v1818
        %v1835 = vpack.c.b16 %v1821, %v1820
        %v1836 = vpack.c.b16 %v1823, %v1822
        %v1837 = vpack.c.b16 %v1825, %v1824
        %v1838 = vpack.c.b16 %v1827, %v1826
        %v1839 = vpack.c.b16 %v1829, %v1828
        %v1840 = vpack.c.b16 %v1831, %v1830
        %v1841 = vpack.c.b16 %v1833, %v1832
        %1850 = vmatprep.subr.bf16.mxu0 0
        %1851 = vmatpush1.bf16.msra.mxu0 %v1841
        %1852 = vmatprep.subr.bf16.mxu0 0
        %1853 = vmatpush1.bf16.msra.mxu0 %v1840
        %1854 = vmatprep.subr.bf16.mxu0 0
        %1855 = vmatpush1.bf16.msra.mxu0 %v1839
        %1856 = vmatprep.subr.bf16.mxu0 0
        %1857 = vmatpush1.bf16.msra.mxu0 %v1838
        %1858 = vmatprep.subr.bf16.mxu0 0
        %1859 = vmatpush1.bf16.msra.mxu0 %v1837
        %1860 = vmatprep.subr.bf16.mxu0 0
        %1861 = vmatpush1.bf16.msra.mxu0 %v1836
        %1862 = vmatprep.subr.bf16.mxu0 0
        %1863 = vmatpush1.bf16.msra.mxu0 %v1835
        %1864 = vmatprep.subr.bf16.mxu0 0
        %1865 = vmatpush1.bf16.msra.mxu0 %v1834
        %1866 = vmatprep.subr.bf16.mxu0 0
        %1867 = vmatpush2.bf16.msra.mxu0 0
        %1868 = vmatprep.subr.bf16.mxu0 0
        %1869 = vmatpush2.bf16.msra.mxu0 0
        %1870 = vmatprep.subr.bf16.mxu0 0
        %1871 = vmatpush2.bf16.msra.mxu0 0
        %1872 = vmatprep.subr.bf16.mxu0 0
        %1873 = vmatpush2.bf16.msra.mxu0 0
        %1874 = vmatprep.subr.bf16.mxu0 0
        %1875 = vmatpush2.bf16.msra.mxu0 0
        %1876 = vmatprep.subr.bf16.mxu0 0
        %1877 = vmatpush2.bf16.msra.mxu0 0
        %1878 = vmatprep.subr.bf16.mxu0 0
        %1879 = vmatpush2.bf16.msra.mxu0 0
        %1880 = vmatprep.subr.bf16.mxu0 0
        %1881 = vmatpush2.bf16.msra.mxu0 0
        %1882 = vmatprep.mubr.bf16.mxu0 0
        %1883 = vmatmul.mubr.bf16.gmra.mxu0 %v1778
        %v1884 = vpop.f32.mrf.mxu0
        %v1885 = vadd.f32 %v1800, %v1884
        %v1886 = vpop.f32.mrf.mxu0
        %v1887 = vpop.f32.mrf.mxu0
        %v1888 = vpop.f32.mrf.mxu0
        %1889 = vdwg.mxu0
        %v1890 = vadd.f32 %v1671, %v1885
        %1891 = vst.msk [vmem:[%s445] sm:$0xff] %vm1626, %v1890
        %s1892 = sand.u32 %s327, 1
        %s1893 = scalar_lea.sflag [#allocation6], %s1892
        %s1894 = sand.u32 %s327, 1
        %s1895 = smul.addr %s1894, 8
        %s1896 = scalar_lea.vmem [#allocation5], %s1895
        // Predicated region
        $region84: #{tpu_custom_call.1} parent=71 // pred_check
          %p1897 = pneg %p337
        $region85: #{tpu_custom_call.1} parent=71 // pred_check_branch
          %1899 = sbr.rel (%p1897) target = $region87
        $region86: #{tpu_custom_call.1} parent=71 // pred_region
          %s1901 = ssub.s32 128, 128
          %1902 = vsyncadd %s1893, %s1901
          %s1903 = sadd.s32 %s32, %s31
          %s1904 = smul.addr %s1903, 128
          %s1905 = scalar_lea.hbm %s13, %s1904
          %s1907 = sshll.u32 %s1896, 4
          %s1908 = int_to_ptr.vmem [resolvable:$true] %s1907
          %1910 = dma.vmem_to_hbm [thread:$0]  %s1908, 128, %s1905, %s1893
        $region87: #{tpu_custom_call.1} parent=71 // pred_fallthru
          _
      $region72: #{tpu_custom_call.1} parent=5 // pred_fallthru
        _
      %p1911 = scmp.le.s32.totalorder 2, %s22
      // Predicated region
      $region88: #{tpu_custom_call.1} parent=5 // pred_check
        %p1912 = pneg %p1911
      $region89: #{tpu_custom_call.1} parent=5 // pred_check_branch
        %1914 = sbr.rel (%p1912) target = $region91
      $region90: #{tpu_custom_call.1} parent=5 // pred_region
        %s1915 = ssub.s32 %s22, 2
        // Predicated region
        $region92: #{tpu_custom_call.1} parent=90 // pred_check
          %p1916 = pneg %p343
        $region93: #{tpu_custom_call.1} parent=90 // pred_check_branch
          %1918 = sbr.rel (%p1916) target = $region95
        $region94: #{tpu_custom_call.1} parent=90 // pred_region
          %s1919 = sand.u32 %s328, 1
          %s1920 = scalar_lea.sflag [#allocation6], %s1919
          %s1921 = sand.u32 %s328, 1
          %s1922 = smul.addr %s1921, 8
          %s1923 = scalar_lea.vmem [#allocation5], %s1922
          %1924 = dma.done %s1920, 128
        $region95: #{tpu_custom_call.1} parent=90 // pred_fallthru
          _
      $region91: #{tpu_custom_call.1} parent=5 // pred_fallthru
        _
    $region6: #{tpu_custom_call.1} parent=1 // loop_footer
      %s26 = sadd.s32 1, %s22
    $region7: #{tpu_custom_call.1} parent=1 // loop_footer_branch
      %21 = sbr.rel target = $region3
    $region8: #{tpu_custom_call.1} parent=1 // loop_exit
      _
    %1925 = vsyncpa [#allocation6], 1
    %s1926 = scalar_lea.sflag [#allocation6], 1
    %1927 = vsyncpa %s1926, 1

</llo_original>
